<compile_context>
chip_gen: v7x
topology: tpu7x:2x2x1
jax: 0.10.0
libtpu: 0.0.40
codegen_flags: <defaults>
</compile_context>

<pallas_src>
import jax
import jax.numpy as jnp
from jax.experimental import pallas as pl
from jax.experimental.pallas import tpu as pltpu


def _dense_block2_kernel(x_ref,
                         wdw1_ref, bdw1_ref, wpw1_ref, bpw1_ref,
                         wdw2a_ref, bdw2a_ref, wdw2b_ref, bdw2b_ref,
                         wpw2a_ref, wpw2b_ref, bpw2_ref,
                         o_ref,
                         xpad_ref, o1pad_ref):
    """One batch element of the whole DenseBlock2_noExpand, channels-last."""
    _, H, W, C = x_ref.shape
    C1 = o1pad_ref.shape[-1]          # 3C/4
    Ct = o_ref.shape[-1]              # C  (= C1 + C/4)
    HW = H * W

    def dw3x3_relu(xp_val, w_ref, b_ref):
        """Depthwise 3x3 (+folded BN bias) + ReLU on a spatially padded (Hp,Wp,cin) value."""
        cin = xp_val.shape[-1]
        w = w_ref[...]                                          # (9, cin), tap = dy*3+dx
        acc = jnp.broadcast_to(b_ref[...], (H, W, cin))         # bias-initialised accumulator
        for dy in range(3):
            for dx in range(3):
                acc = acc + xp_val[dy:dy + H, dx:dx + W, :] * w[dy * 3 + dx, :]
        return jnp.maximum(acc, 0.0)

    # ---- in-VMEM halo for x (no HBM pad round trip) --------------------------------
    xpad_ref[...] = jnp.zeros_like(xpad_ref)
    xpad_ref[1:H + 1, 1:W + 1, :] = x_ref[0]
    xp = xpad_ref[...]

    # ---- mobile_unit #1 -------------------------------------------------------------
    dw1 = dw3x3_relu(xp, wdw1_ref, bdw1_ref)                    # (H, W, C)
    # Widened 1x1 weights: cols [0:C1] hold conv1's pointwise, the rest are zero, so
    # t1 = [out1 | 0] already sits in the final channel layout.
    t1 = jnp.maximum(
        jnp.dot(dw1.reshape(HW, C), wpw1_ref[...],
                preferred_element_type=jnp.float32) + bpw1_ref[...], 0.0)   # (HW, Ct)
    out1 = t1[:, :C1].reshape(H, W, C1)

    # ---- comb1 = [x | out1]: depthwise is per-channel, so pad out1 separately -------
    o1pad_ref[...] = jnp.zeros_like(o1pad_ref)
    o1pad_ref[1:H + 1, 1:W + 1, :] = out1
    op = o1pad_ref[...]

    # ---- mobile_unit #2, split along comb1's channel blocks -------------------------
    dw2a = dw3x3_relu(xp, wdw2a_ref, bdw2a_ref)                 # (H, W, C)    (x part)
    dw2b = dw3x3_relu(op, wdw2b_ref, bdw2b_ref)                 # (H, W, C1)   (out1 part)
    # Widened 1x1 weights: cols [C1:Ct] hold conv2's pointwise, so t2 = [0 | out2].
    t2 = jnp.maximum(
        jnp.dot(dw2a.reshape(HW, C), wpw2a_ref[...], preferred_element_type=jnp.float32)
        + jnp.dot(dw2b.reshape(HW, C1), wpw2b_ref[...], preferred_element_type=jnp.float32)
        + bpw2_ref[...], 0.0)                                   # (HW, Ct)

    # ---- comb2 = concat([out1, out2], ch) == t1 + t2 (disjoint channel blocks) ------
    o_ref[0] = (t1 + t2).reshape(H, W, Ct)


def _dense_block2_nhwc(x, p):
    """Fused DenseBlock2_noExpand, NHWC in/out: (B,H,W,C) f32 -> (B,H,W,C) f32."""
    B, H, W, C = x.shape
    C1 = C * 3 // 4
    C2 = C // 4
    Ct = C1 + C2                      # == C
    Hp, Wp = H + 2, W + 2
    f32 = jnp.float32

    # Trace-time weight re-packing (tiny, one-off): split conv2's depthwise weights along
    # comb1 = [x | out1], widen both pointwise weight matrices so the two units write
    # disjoint channel blocks of the final output (no in-kernel concat needed).
    wdw2a, wdw2b = p["wdw2"][:, :C], p["wdw2"][:, C:]
    bdw2a, bdw2b = p["bdw2"][:, :C], p["bdw2"][:, C:]
    wpw1w = jnp.concatenate([p["wpw1"], jnp.zeros((C, C2), f32)], axis=1)           # (C, Ct)
    bpw1w = jnp.concatenate([p["bpw1"], jnp.zeros((1, C2), f32)], axis=1)           # (1, Ct)
    wpw2aw = jnp.concatenate([jnp.zeros((C, C1), f32), p["wpw2"][:C, :]], axis=1)   # (C, Ct)
    wpw2bw = jnp.concatenate([jnp.zeros((C1, C1), f32), p["wpw2"][C:, :]], axis=1)  # (C1, Ct)
    bpw2w = jnp.concatenate([jnp.zeros((1, C1), f32), p["bpw2"]], axis=1)           # (1, Ct)

    # VMEM budget: actual need + headroom (no large floor); cap below v7x's 64 MiB physical.
    weight_bytes = 4 * (9 * C + C + C * Ct + Ct + 9 * C + C + 9 * C1 + C1
                        + C * Ct + C1 * Ct + Ct)
    block_bytes = 4 * H * W * (C + Ct)                       # per-step x block + out block
    scratch_bytes = 4 * Hp * Wp * (C + C1)
    interm_bytes = 4 * H * W * (3 * C + 2 * C1 + 3 * Ct)     # dw1/dw2a/dw2b/t1/t2 etc.
    vmem_need = 2 * block_bytes + 2 * weight_bytes + scratch_bytes + interm_bytes
    vmem_limit = int(min(max(2 * vmem_need, 4 << 20), 56 << 20))

    flops = 2 * B * H * W * (9 * C + C * Ct + 9 * C + 9 * C1 + C * Ct + C1 * Ct)

    const = lambda b: (0, 0)
    out = pl.pallas_call(
        _dense_block2_kernel,
        out_shape=jax.ShapeDtypeStruct((B, H, W, Ct), f32),
        grid=(B,),
        in_specs=[
            pl.BlockSpec((1, H, W, C), lambda b: (b, 0, 0, 0)),   # per-batch activation slab
            pl.BlockSpec((9, C), const), pl.BlockSpec((1, C), const),       # conv1 dw
            pl.BlockSpec((C, Ct), const), pl.BlockSpec((1, Ct), const),     # conv1 pw (wide)
            pl.BlockSpec((9, C), const), pl.BlockSpec((1, C), const),       # conv2 dw (x part)
            pl.BlockSpec((9, C1), const), pl.BlockSpec((1, C1), const),     # conv2 dw (out1 part)
            pl.BlockSpec((C, Ct), const), pl.BlockSpec((C1, Ct), const),    # conv2 pw (wide)
            pl.BlockSpec((1, Ct), const),
        ],
        out_specs=pl.BlockSpec((1, H, W, Ct), lambda b: (b, 0, 0, 0)),
        scratch_shapes=[pltpu.VMEM((Hp, Wp, C), f32),     # padded x
                        pltpu.VMEM((Hp, Wp, C1), f32)],   # padded out1
        compiler_params=pltpu.CompilerParams(
            dimension_semantics=("parallel",),            # batch across TCs (v7x megacore)
            vmem_limit_bytes=vmem_limit,
        ),
        cost_estimate=pl.CostEstimate(
            flops=flops, transcendentals=0,
            bytes_accessed=4 * B * H * W * (C + Ct) + weight_bytes),
    )(x, p["wdw1"], p["bdw1"], wpw1w, bpw1w,
      wdw2a, bdw2a, wdw2b, bdw2b, wpw2aw, wpw2bw, bpw2w)
    return out


def dense_block2_no_expand(x_nchw, p):
    """DenseBlock2_noExpand forward. x: (B, C, H, W) NCHW f32 -> (B, C, H, W)."""
    # TODO(synk): in the full densestack backbone keep activations NHWC end-to-end and drop
    #             these two transposes; they only exist here because the module boundary is NCHW.
    x = jnp.transpose(x_nchw, (0, 2, 3, 1))
    y = _dense_block2_nhwc(x, p)
    return jnp.transpose(y, (0, 3, 1, 2))


def make_params(key, C):
    C1 = C * 3 // 4          # conv1 output channels
    Cc = C + C1              # conv2 input channels (7C/4)
    C2 = C // 4              # conv2 output channels
    ks = jax.random.split(key, 8)

    def w(k, shape):
        return jax.random.normal(k, shape, jnp.float32) * 0.2

    return {
        "wdw1": w(ks[0], (9, C)),   "bdw1": w(ks[1], (1, C)),
        "wpw1": w(ks[2], (C, C1)),  "bpw1": w(ks[3], (1, C1)),
        "wdw2": w(ks[4], (9, Cc)),  "bdw2": w(ks[5], (1, Cc)),
        "wpw2": w(ks[6], (Cc, C2)), "bpw2": w(ks[7], (1, C2)),
    }


# ---------------------------- pure-JAX reference ----------------------------

def mobile_unit_ref(x_nchw, wdw, bdw, wpw, bpw):
    Cin = x_nchw.shape[1]
    k = jnp.transpose(wdw, (1, 0)).reshape(Cin, 1, 3, 3)   # OIHW, O=Cin groups
    y = jax.lax.conv_general_dilated(
        x_nchw, k, window_strides=(1, 1), padding=((1, 1), (1, 1)),
        feature_group_count=Cin,
        dimension_numbers=("NCHW", "OIHW", "NCHW"))
    y = jnp.maximum(y + bdw.reshape(1, Cin, 1, 1), 0.0)
    z = jnp.einsum("bchw,cd->bdhw", y, wpw) + bpw.reshape(1, -1, 1, 1)
    return jnp.maximum(z, 0.0)


def dense_block2_ref(x_nchw, p):
    out1 = mobile_unit_ref(x_nchw, p["wdw1"], p["bdw1"], p["wpw1"], p["bpw1"])
    comb1 = jnp.concatenate([x_nchw, out1], axis=1)
    out2 = mobile_unit_ref(comb1, p["wdw2"], p["bdw2"], p["wpw2"], p["bpw2"])
    return jnp.concatenate([out1, out2], axis=1)


if __name__ == "__main__":
    key = jax.random.PRNGKey(0)
    kx, kp = jax.random.split(key)

    B, C, H, W = 2, 8, 16, 16
    x = jax.random.normal(kx, (B, C, H, W), jnp.float32)
    params = make_params(kp, C)

    fwd = jax.jit(dense_block2_no_expand)
    out = jax.block_until_ready(fwd(x, params))

    ref = dense_block2_ref(x, params)
    assert out.shape == (B, C, H, W)
    assert jnp.allclose(out, ref, atol=2e-4, rtol=2e-4), float(jnp.max(jnp.abs(out - ref)))

    print("KERNEL_OK")
</pallas_src>

<mosaic_0001>
module attributes {stable_mosaic.version = 11 : i64} {
  func.func @_dense_block2_kernel(%arg0: i32, %arg1: memref<1x16x16x8xf32, #tpu.memory_space<vmem>>, %arg2: memref<9x8xf32, #tpu.memory_space<vmem>>, %arg3: memref<1x8xf32, #tpu.memory_space<vmem>>, %arg4: memref<8x8xf32, #tpu.memory_space<vmem>>, %arg5: memref<1x8xf32, #tpu.memory_space<vmem>>, %arg6: memref<9x8xf32, #tpu.memory_space<vmem>>, %arg7: memref<1x8xf32, #tpu.memory_space<vmem>>, %arg8: memref<9x6xf32, #tpu.memory_space<vmem>>, %arg9: memref<1x6xf32, #tpu.memory_space<vmem>>, %arg10: memref<8x8xf32, #tpu.memory_space<vmem>>, %arg11: memref<6x8xf32, #tpu.memory_space<vmem>>, %arg12: memref<1x8xf32, #tpu.memory_space<vmem>>, %arg13: memref<1x16x16x8xf32, #tpu.memory_space<vmem>>, %arg14: memref<18x18x8xf32, #tpu.memory_space<vmem>>, %arg15: memref<18x18x6xf32, #tpu.memory_space<vmem>>) attributes {dimension_semantics = [#tpu.dimension_semantics<parallel>], iteration_bounds = array<i64: 2>, scalar_prefetch = 0 : i64, scratch_operands = 2 : i64, tpu.core_type = #tpu.core_type<tc>, window_params = [{transform_indices = @transform_0, window_bounds = array<i64: 1, 16, 16, 8>}, {pipeline_mode = #tpu.pipeline_mode<synchronous>, transform_indices = @transform_1, window_bounds = array<i64: 9, 8>}, {pipeline_mode = #tpu.pipeline_mode<synchronous>, transform_indices = @transform_2, window_bounds = array<i64: 1, 8>}, {pipeline_mode = #tpu.pipeline_mode<synchronous>, transform_indices = @transform_3, window_bounds = array<i64: 8, 8>}, {pipeline_mode = #tpu.pipeline_mode<synchronous>, transform_indices = @transform_4, window_bounds = array<i64: 1, 8>}, {pipeline_mode = #tpu.pipeline_mode<synchronous>, transform_indices = @transform_5, window_bounds = array<i64: 9, 8>}, {pipeline_mode = #tpu.pipeline_mode<synchronous>, transform_indices = @transform_6, window_bounds = array<i64: 1, 8>}, {pipeline_mode = #tpu.pipeline_mode<synchronous>, transform_indices = @transform_7, window_bounds = array<i64: 9, 6>}, {pipeline_mode = #tpu.pipeline_mode<synchronous>, transform_indices = @transform_8, window_bounds = array<i64: 1, 6>}, {pipeline_mode = #tpu.pipeline_mode<synchronous>, transform_indices = @transform_9, window_bounds = array<i64: 8, 8>}, {pipeline_mode = #tpu.pipeline_mode<synchronous>, transform_indices = @transform_10, window_bounds = array<i64: 6, 8>}, {pipeline_mode = #tpu.pipeline_mode<synchronous>, transform_indices = @transform_11, window_bounds = array<i64: 1, 8>}, {transform_indices = @transform_12, window_bounds = array<i64: 1, 16, 16, 8>}]} {
    %cst = arith.constant 0.000000e+00 : f32
    %0 = vector.broadcast %cst : f32 to vector<18x18x8xf32>
    %c0 = arith.constant 0 : index
    %c0_0 = arith.constant 0 : index
    %c0_1 = arith.constant 0 : index
    %1 = vector.load %arg14[%c0, %c0_0, %c0_1] : memref<18x18x8xf32, #tpu.memory_space<vmem>>, vector<18x18x8xf32>
    tpu.vector_store %arg14[%c0, %c0_0, %c0_1], %0 {strides = array<i32>} : memref<18x18x8xf32, #tpu.memory_space<vmem>>, vector<18x18x8xf32>,
    %c0_2 = arith.constant 0 : index
    %c0_3 = arith.constant 0 : index
    %c0_4 = arith.constant 0 : index
    %c0_5 = arith.constant 0 : index
    %2 = vector.load %arg1[%c0_2, %c0_3, %c0_4, %c0_5] : memref<1x16x16x8xf32, #tpu.memory_space<vmem>>, vector<1x16x16x8xf32>
    %3 = vector.shape_cast %2 : vector<1x16x16x8xf32> to vector<16x16x8xf32>
    %c1 = arith.constant 1 : index
    %c1_6 = arith.constant 1 : index
    %c0_7 = arith.constant 0 : index
    %4 = vector.load %arg14[%c1, %c1_6, %c0_7] : memref<18x18x8xf32, #tpu.memory_space<vmem>>, vector<16x16x8xf32>
    tpu.vector_store %arg14[%c1, %c1_6, %c0_7], %3 {strides = array<i32>} : memref<18x18x8xf32, #tpu.memory_space<vmem>>, vector<16x16x8xf32>,
    %c0_8 = arith.constant 0 : index
    %c0_9 = arith.constant 0 : index
    %c0_10 = arith.constant 0 : index
    %5 = vector.load %arg14[%c0_8, %c0_9, %c0_10] : memref<18x18x8xf32, #tpu.memory_space<vmem>>, vector<18x18x8xf32>
    %c0_11 = arith.constant 0 : index
    %c0_12 = arith.constant 0 : index
    %6 = vector.load %arg2[%c0_11, %c0_12] : memref<9x8xf32, #tpu.memory_space<vmem>>, vector<9x8xf32>
    %c0_13 = arith.constant 0 : index
    %c0_14 = arith.constant 0 : index
    %7 = vector.load %arg3[%c0_13, %c0_14] : memref<1x8xf32, #tpu.memory_space<vmem>>, vector<1x8xf32>
    %8 = vector.shape_cast %7 : vector<1x8xf32> to vector<1x1x8xf32>
    %9 = vector.broadcast %8 : vector<1x1x8xf32> to vector<16x16x8xf32>
    %10 = vector.extract_strided_slice %5 {offsets = [0, 0, 0], sizes = [16, 16, 8], strides = [1, 1, 1]} : vector<18x18x8xf32> to vector<16x16x8xf32>
    %11 = vector.extract_strided_slice %6 {offsets = [0, 0], sizes = [1, 8], strides = [1, 1]} : vector<9x8xf32> to vector<1x8xf32>
    %12 = vector.shape_cast %11 : vector<1x8xf32> to vector<8xf32>
    %13 = vector.shape_cast %12 : vector<8xf32> to vector<1x1x8xf32>
    %14 = vector.broadcast %13 : vector<1x1x8xf32> to vector<16x16x8xf32>
    %15 = arith.mulf %10, %14 : vector<16x16x8xf32>
    %16 = arith.addf %9, %15 : vector<16x16x8xf32>
    %17 = vector.extract_strided_slice %5 {offsets = [0, 1, 0], sizes = [16, 16, 8], strides = [1, 1, 1]} : vector<18x18x8xf32> to vector<16x16x8xf32>
    %18 = vector.extract_strided_slice %6 {offsets = [1, 0], sizes = [1, 8], strides = [1, 1]} : vector<9x8xf32> to vector<1x8xf32>
    %19 = vector.shape_cast %18 : vector<1x8xf32> to vector<8xf32>
    %20 = vector.shape_cast %19 : vector<8xf32> to vector<1x1x8xf32>
    %21 = vector.broadcast %20 : vector<1x1x8xf32> to vector<16x16x8xf32>
    %22 = arith.mulf %17, %21 : vector<16x16x8xf32>
    %23 = arith.addf %16, %22 : vector<16x16x8xf32>
    %24 = vector.extract_strided_slice %5 {offsets = [0, 2, 0], sizes = [16, 16, 8], strides = [1, 1, 1]} : vector<18x18x8xf32> to vector<16x16x8xf32>
    %25 = vector.extract_strided_slice %6 {offsets = [2, 0], sizes = [1, 8], strides = [1, 1]} : vector<9x8xf32> to vector<1x8xf32>
    %26 = vector.shape_cast %25 : vector<1x8xf32> to vector<8xf32>
    %27 = vector.shape_cast %26 : vector<8xf32> to vector<1x1x8xf32>
    %28 = vector.broadcast %27 : vector<1x1x8xf32> to vector<16x16x8xf32>
    %29 = arith.mulf %24, %28 : vector<16x16x8xf32>
    %30 = arith.addf %23, %29 : vector<16x16x8xf32>
    %31 = vector.extract_strided_slice %5 {offsets = [1, 0, 0], sizes = [16, 16, 8], strides = [1, 1, 1]} : vector<18x18x8xf32> to vector<16x16x8xf32>
    %32 = vector.extract_strided_slice %6 {offsets = [3, 0], sizes = [1, 8], strides = [1, 1]} : vector<9x8xf32> to vector<1x8xf32>
    %33 = vector.shape_cast %32 : vector<1x8xf32> to vector<8xf32>
    %34 = vector.shape_cast %33 : vector<8xf32> to vector<1x1x8xf32>
    %35 = vector.broadcast %34 : vector<1x1x8xf32> to vector<16x16x8xf32>
    %36 = arith.mulf %31, %35 : vector<16x16x8xf32>
    %37 = arith.addf %30, %36 : vector<16x16x8xf32>
    %38 = vector.extract_strided_slice %5 {offsets = [1, 1, 0], sizes = [16, 16, 8], strides = [1, 1, 1]} : vector<18x18x8xf32> to vector<16x16x8xf32>
    %39 = vector.extract_strided_slice %6 {offsets = [4, 0], sizes = [1, 8], strides = [1, 1]} : vector<9x8xf32> to vector<1x8xf32>
    %40 = vector.shape_cast %39 : vector<1x8xf32> to vector<8xf32>
    %41 = vector.shape_cast %40 : vector<8xf32> to vector<1x1x8xf32>
    %42 = vector.broadcast %41 : vector<1x1x8xf32> to vector<16x16x8xf32>
    %43 = arith.mulf %38, %42 : vector<16x16x8xf32>
    %44 = arith.addf %37, %43 : vector<16x16x8xf32>
    %45 = vector.extract_strided_slice %5 {offsets = [1, 2, 0], sizes = [16, 16, 8], strides = [1, 1, 1]} : vector<18x18x8xf32> to vector<16x16x8xf32>
    %46 = vector.extract_strided_slice %6 {offsets = [5, 0], sizes = [1, 8], strides = [1, 1]} : vector<9x8xf32> to vector<1x8xf32>
    %47 = vector.shape_cast %46 : vector<1x8xf32> to vector<8xf32>
    %48 = vector.shape_cast %47 : vector<8xf32> to vector<1x1x8xf32>
    %49 = vector.broadcast %48 : vector<1x1x8xf32> to vector<16x16x8xf32>
    %50 = arith.mulf %45, %49 : vector<16x16x8xf32>
    %51 = arith.addf %44, %50 : vector<16x16x8xf32>
    %52 = vector.extract_strided_slice %5 {offsets = [2, 0, 0], sizes = [16, 16, 8], strides = [1, 1, 1]} : vector<18x18x8xf32> to vector<16x16x8xf32>
    %53 = vector.extract_strided_slice %6 {offsets = [6, 0], sizes = [1, 8], strides = [1, 1]} : vector<9x8xf32> to vector<1x8xf32>
    %54 = vector.shape_cast %53 : vector<1x8xf32> to vector<8xf32>
    %55 = vector.shape_cast %54 : vector<8xf32> to vector<1x1x8xf32>
    %56 = vector.broadcast %55 : vector<1x1x8xf32> to vector<16x16x8xf32>
    %57 = arith.mulf %52, %56 : vector<16x16x8xf32>
    %58 = arith.addf %51, %57 : vector<16x16x8xf32>
    %59 = vector.extract_strided_slice %5 {offsets = [2, 1, 0], sizes = [16, 16, 8], strides = [1, 1, 1]} : vector<18x18x8xf32> to vector<16x16x8xf32>
    %60 = vector.extract_strided_slice %6 {offsets = [7, 0], sizes = [1, 8], strides = [1, 1]} : vector<9x8xf32> to vector<1x8xf32>
    %61 = vector.shape_cast %60 : vector<1x8xf32> to vector<8xf32>
    %62 = vector.shape_cast %61 : vector<8xf32> to vector<1x1x8xf32>
    %63 = vector.broadcast %62 : vector<1x1x8xf32> to vector<16x16x8xf32>
    %64 = arith.mulf %59, %63 : vector<16x16x8xf32>
    %65 = arith.addf %58, %64 : vector<16x16x8xf32>
    %66 = vector.extract_strided_slice %5 {offsets = [2, 2, 0], sizes = [16, 16, 8], strides = [1, 1, 1]} : vector<18x18x8xf32> to vector<16x16x8xf32>
    %67 = vector.extract_strided_slice %6 {offsets = [8, 0], sizes = [1, 8], strides = [1, 1]} : vector<9x8xf32> to vector<1x8xf32>
    %68 = vector.shape_cast %67 : vector<1x8xf32> to vector<8xf32>
    %69 = vector.shape_cast %68 : vector<8xf32> to vector<1x1x8xf32>
    %70 = vector.broadcast %69 : vector<1x1x8xf32> to vector<16x16x8xf32>
    %71 = arith.mulf %66, %70 : vector<16x16x8xf32>
    %72 = arith.addf %65, %71 : vector<16x16x8xf32>
    %cst_15 = arith.constant 0.000000e+00 : f32
    %73 = vector.broadcast %cst_15 : f32 to vector<16x16x8xf32>
    %74 = arith.maximumf %72, %73 : vector<16x16x8xf32>
    %75 = vector.shape_cast %74 : vector<16x16x8xf32> to vector<256x8xf32>
    %c0_16 = arith.constant 0 : index
    %c0_17 = arith.constant 0 : index
    %76 = vector.load %arg4[%c0_16, %c0_17] : memref<8x8xf32, #tpu.memory_space<vmem>>, vector<8x8xf32>
    %cst_18 = arith.constant dense<0.000000e+00> : vector<256x8xf32>
    %77 = tpu.matmul %75, %76, %cst_18 {dimension_numbers = #tpu.dot_dimension_numbers<[1], [0], [0], [1], [0, 0, 1, 1], [], []>} : vector<256x8xf32>, vector<8x8xf32>, vector<256x8xf32> -> vector<256x8xf32>
    %c0_19 = arith.constant 0 : index
    %c0_20 = arith.constant 0 : index
    %78 = vector.load %arg5[%c0_19, %c0_20] : memref<1x8xf32, #tpu.memory_space<vmem>>, vector<1x8xf32>
    %79 = vector.broadcast %78 : vector<1x8xf32> to vector<256x8xf32>
    %80 = arith.addf %77, %79 : vector<256x8xf32>
    %cst_21 = arith.constant 0.000000e+00 : f32
    %81 = vector.broadcast %cst_21 : f32 to vector<256x8xf32>
    %82 = arith.maximumf %80, %81 : vector<256x8xf32>
    %83 = vector.extract_strided_slice %82 {offsets = [0, 0], sizes = [256, 6], strides = [1, 1]} : vector<256x8xf32> to vector<256x6xf32>
    %84 = vector.shape_cast %83 : vector<256x6xf32> to vector<16x16x6xf32>
    %cst_22 = arith.constant 0.000000e+00 : f32
    %85 = vector.broadcast %cst_22 : f32 to vector<18x18x6xf32>
    %c0_23 = arith.constant 0 : index
    %c0_24 = arith.constant 0 : index
    %c0_25 = arith.constant 0 : index
    %86 = vector.load %arg15[%c0_23, %c0_24, %c0_25] : memref<18x18x6xf32, #tpu.memory_space<vmem>>, vector<18x18x6xf32>
    tpu.vector_store %arg15[%c0_23, %c0_24, %c0_25], %85 {strides = array<i32>} : memref<18x18x6xf32, #tpu.memory_space<vmem>>, vector<18x18x6xf32>,
    %c1_26 = arith.constant 1 : index
    %c1_27 = arith.constant 1 : index
    %c0_28 = arith.constant 0 : index
    %87 = vector.load %arg15[%c1_26, %c1_27, %c0_28] : memref<18x18x6xf32, #tpu.memory_space<vmem>>, vector<16x16x6xf32>
    tpu.vector_store %arg15[%c1_26, %c1_27, %c0_28], %84 {strides = array<i32>} : memref<18x18x6xf32, #tpu.memory_space<vmem>>, vector<16x16x6xf32>,
    %c0_29 = arith.constant 0 : index
    %c0_30 = arith.constant 0 : index
    %c0_31 = arith.constant 0 : index
    %88 = vector.load %arg15[%c0_29, %c0_30, %c0_31] : memref<18x18x6xf32, #tpu.memory_space<vmem>>, vector<18x18x6xf32>
    %c0_32 = arith.constant 0 : index
    %c0_33 = arith.constant 0 : index
    %89 = vector.load %arg6[%c0_32, %c0_33] : memref<9x8xf32, #tpu.memory_space<vmem>>, vector<9x8xf32>
    %c0_34 = arith.constant 0 : index
    %c0_35 = arith.constant 0 : index
    %90 = vector.load %arg7[%c0_34, %c0_35] : memref<1x8xf32, #tpu.memory_space<vmem>>, vector<1x8xf32>
    %91 = vector.shape_cast %90 : vector<1x8xf32> to vector<1x1x8xf32>
    %92 = vector.broadcast %91 : vector<1x1x8xf32> to vector<16x16x8xf32>
    %93 = vector.extract_strided_slice %5 {offsets = [0, 0, 0], sizes = [16, 16, 8], strides = [1, 1, 1]} : vector<18x18x8xf32> to vector<16x16x8xf32>
    %94 = vector.extract_strided_slice %89 {offsets = [0, 0], sizes = [1, 8], strides = [1, 1]} : vector<9x8xf32> to vector<1x8xf32>
    %95 = vector.shape_cast %94 : vector<1x8xf32> to vector<8xf32>
    %96 = vector.shape_cast %95 : vector<8xf32> to vector<1x1x8xf32>
    %97 = vector.broadcast %96 : vector<1x1x8xf32> to vector<16x16x8xf32>
    %98 = arith.mulf %93, %97 : vector<16x16x8xf32>
    %99 = arith.addf %92, %98 : vector<16x16x8xf32>
    %100 = vector.extract_strided_slice %5 {offsets = [0, 1, 0], sizes = [16, 16, 8], strides = [1, 1, 1]} : vector<18x18x8xf32> to vector<16x16x8xf32>
    %101 = vector.extract_strided_slice %89 {offsets = [1, 0], sizes = [1, 8], strides = [1, 1]} : vector<9x8xf32> to vector<1x8xf32>
    %102 = vector.shape_cast %101 : vector<1x8xf32> to vector<8xf32>
    %103 = vector.shape_cast %102 : vector<8xf32> to vector<1x1x8xf32>
    %104 = vector.broadcast %103 : vector<1x1x8xf32> to vector<16x16x8xf32>
    %105 = arith.mulf %100, %104 : vector<16x16x8xf32>
    %106 = arith.addf %99, %105 : vector<16x16x8xf32>
    %107 = vector.extract_strided_slice %5 {offsets = [0, 2, 0], sizes = [16, 16, 8], strides = [1, 1, 1]} : vector<18x18x8xf32> to vector<16x16x8xf32>
    %108 = vector.extract_strided_slice %89 {offsets = [2, 0], sizes = [1, 8], strides = [1, 1]} : vector<9x8xf32> to vector<1x8xf32>
    %109 = vector.shape_cast %108 : vector<1x8xf32> to vector<8xf32>
    %110 = vector.shape_cast %109 : vector<8xf32> to vector<1x1x8xf32>
    %111 = vector.broadcast %110 : vector<1x1x8xf32> to vector<16x16x8xf32>
    %112 = arith.mulf %107, %111 : vector<16x16x8xf32>
    %113 = arith.addf %106, %112 : vector<16x16x8xf32>
    %114 = vector.extract_strided_slice %5 {offsets = [1, 0, 0], sizes = [16, 16, 8], strides = [1, 1, 1]} : vector<18x18x8xf32> to vector<16x16x8xf32>
    %115 = vector.extract_strided_slice %89 {offsets = [3, 0], sizes = [1, 8], strides = [1, 1]} : vector<9x8xf32> to vector<1x8xf32>
    %116 = vector.shape_cast %115 : vector<1x8xf32> to vector<8xf32>
    %117 = vector.shape_cast %116 : vector<8xf32> to vector<1x1x8xf32>
    %118 = vector.broadcast %117 : vector<1x1x8xf32> to vector<16x16x8xf32>
    %119 = arith.mulf %114, %118 : vector<16x16x8xf32>
    %120 = arith.addf %113, %119 : vector<16x16x8xf32>
    %121 = vector.extract_strided_slice %5 {offsets = [1, 1, 0], sizes = [16, 16, 8], strides = [1, 1, 1]} : vector<18x18x8xf32> to vector<16x16x8xf32>
    %122 = vector.extract_strided_slice %89 {offsets = [4, 0], sizes = [1, 8], strides = [1, 1]} : vector<9x8xf32> to vector<1x8xf32>
    %123 = vector.shape_cast %122 : vector<1x8xf32> to vector<8xf32>
    %124 = vector.shape_cast %123 : vector<8xf32> to vector<1x1x8xf32>
    %125 = vector.broadcast %124 : vector<1x1x8xf32> to vector<16x16x8xf32>
    %126 = arith.mulf %121, %125 : vector<16x16x8xf32>
    %127 = arith.addf %120, %126 : vector<16x16x8xf32>
    %128 = vector.extract_strided_slice %5 {offsets = [1, 2, 0], sizes = [16, 16, 8], strides = [1, 1, 1]} : vector<18x18x8xf32> to vector<16x16x8xf32>
    %129 = vector.extract_strided_slice %89 {offsets = [5, 0], sizes = [1, 8], strides = [1, 1]} : vector<9x8xf32> to vector<1x8xf32>
    %130 = vector.shape_cast %129 : vector<1x8xf32> to vector<8xf32>
    %131 = vector.shape_cast %130 : vector<8xf32> to vector<1x1x8xf32>
    %132 = vector.broadcast %131 : vector<1x1x8xf32> to vector<16x16x8xf32>
    %133 = arith.mulf %128, %132 : vector<16x16x8xf32>
    %134 = arith.addf %127, %133 : vector<16x16x8xf32>
    %135 = vector.extract_strided_slice %5 {offsets = [2, 0, 0], sizes = [16, 16, 8], strides = [1, 1, 1]} : vector<18x18x8xf32> to vector<16x16x8xf32>
    %136 = vector.extract_strided_slice %89 {offsets = [6, 0], sizes = [1, 8], strides = [1, 1]} : vector<9x8xf32> to vector<1x8xf32>
    %137 = vector.shape_cast %136 : vector<1x8xf32> to vector<8xf32>
    %138 = vector.shape_cast %137 : vector<8xf32> to vector<1x1x8xf32>
    %139 = vector.broadcast %138 : vector<1x1x8xf32> to vector<16x16x8xf32>
    %140 = arith.mulf %135, %139 : vector<16x16x8xf32>
    %141 = arith.addf %134, %140 : vector<16x16x8xf32>
    %142 = vector.extract_strided_slice %5 {offsets = [2, 1, 0], sizes = [16, 16, 8], strides = [1, 1, 1]} : vector<18x18x8xf32> to vector<16x16x8xf32>
    %143 = vector.extract_strided_slice %89 {offsets = [7, 0], sizes = [1, 8], strides = [1, 1]} : vector<9x8xf32> to vector<1x8xf32>
    %144 = vector.shape_cast %143 : vector<1x8xf32> to vector<8xf32>
    %145 = vector.shape_cast %144 : vector<8xf32> to vector<1x1x8xf32>
    %146 = vector.broadcast %145 : vector<1x1x8xf32> to vector<16x16x8xf32>
    %147 = arith.mulf %142, %146 : vector<16x16x8xf32>
    %148 = arith.addf %141, %147 : vector<16x16x8xf32>
    %149 = vector.extract_strided_slice %5 {offsets = [2, 2, 0], sizes = [16, 16, 8], strides = [1, 1, 1]} : vector<18x18x8xf32> to vector<16x16x8xf32>
    %150 = vector.extract_strided_slice %89 {offsets = [8, 0], sizes = [1, 8], strides = [1, 1]} : vector<9x8xf32> to vector<1x8xf32>
    %151 = vector.shape_cast %150 : vector<1x8xf32> to vector<8xf32>
    %152 = vector.shape_cast %151 : vector<8xf32> to vector<1x1x8xf32>
    %153 = vector.broadcast %152 : vector<1x1x8xf32> to vector<16x16x8xf32>
    %154 = arith.mulf %149, %153 : vector<16x16x8xf32>
    %155 = arith.addf %148, %154 : vector<16x16x8xf32>
    %cst_36 = arith.constant 0.000000e+00 : f32
    %156 = vector.broadcast %cst_36 : f32 to vector<16x16x8xf32>
    %157 = arith.maximumf %155, %156 : vector<16x16x8xf32>
    %c0_37 = arith.constant 0 : index
    %c0_38 = arith.constant 0 : index
    %158 = vector.load %arg8[%c0_37, %c0_38] : memref<9x6xf32, #tpu.memory_space<vmem>>, vector<9x6xf32>
    %c0_39 = arith.constant 0 : index
    %c0_40 = arith.constant 0 : index
    %159 = vector.load %arg9[%c0_39, %c0_40] : memref<1x6xf32, #tpu.memory_space<vmem>>, vector<1x6xf32>
    %160 = vector.shape_cast %159 : vector<1x6xf32> to vector<1x1x6xf32>
    %161 = vector.broadcast %160 : vector<1x1x6xf32> to vector<16x16x6xf32>
    %162 = vector.extract_strided_slice %88 {offsets = [0, 0, 0], sizes = [16, 16, 6], strides = [1, 1, 1]} : vector<18x18x6xf32> to vector<16x16x6xf32>
    %163 = vector.extract_strided_slice %158 {offsets = [0, 0], sizes = [1, 6], strides = [1, 1]} : vector<9x6xf32> to vector<1x6xf32>
    %164 = vector.shape_cast %163 : vector<1x6xf32> to vector<6xf32>
    %165 = vector.shape_cast %164 : vector<6xf32> to vector<1x1x6xf32>
    %166 = vector.broadcast %165 : vector<1x1x6xf32> to vector<16x16x6xf32>
    %167 = arith.mulf %162, %166 : vector<16x16x6xf32>
    %168 = arith.addf %161, %167 : vector<16x16x6xf32>
    %169 = vector.extract_strided_slice %88 {offsets = [0, 1, 0], sizes = [16, 16, 6], strides = [1, 1, 1]} : vector<18x18x6xf32> to vector<16x16x6xf32>
    %170 = vector.extract_strided_slice %158 {offsets = [1, 0], sizes = [1, 6], strides = [1, 1]} : vector<9x6xf32> to vector<1x6xf32>
    %171 = vector.shape_cast %170 : vector<1x6xf32> to vector<6xf32>
    %172 = vector.shape_cast %171 : vector<6xf32> to vector<1x1x6xf32>
    %173 = vector.broadcast %172 : vector<1x1x6xf32> to vector<16x16x6xf32>
    %174 = arith.mulf %169, %173 : vector<16x16x6xf32>
    %175 = arith.addf %168, %174 : vector<16x16x6xf32>
    %176 = vector.extract_strided_slice %88 {offsets = [0, 2, 0], sizes = [16, 16, 6], strides = [1, 1, 1]} : vector<18x18x6xf32> to vector<16x16x6xf32>
    %177 = vector.extract_strided_slice %158 {offsets = [2, 0], sizes = [1, 6], strides = [1, 1]} : vector<9x6xf32> to vector<1x6xf32>
    %178 = vector.shape_cast %177 : vector<1x6xf32> to vector<6xf32>
    %179 = vector.shape_cast %178 : vector<6xf32> to vector<1x1x6xf32>
    %180 = vector.broadcast %179 : vector<1x1x6xf32> to vector<16x16x6xf32>
    %181 = arith.mulf %176, %180 : vector<16x16x6xf32>
    %182 = arith.addf %175, %181 : vector<16x16x6xf32>
    %183 = vector.extract_strided_slice %88 {offsets = [1, 0, 0], sizes = [16, 16, 6], strides = [1, 1, 1]} : vector<18x18x6xf32> to vector<16x16x6xf32>
    %184 = vector.extract_strided_slice %158 {offsets = [3, 0], sizes = [1, 6], strides = [1, 1]} : vector<9x6xf32> to vector<1x6xf32>
    %185 = vector.shape_cast %184 : vector<1x6xf32> to vector<6xf32>
    %186 = vector.shape_cast %185 : vector<6xf32> to vector<1x1x6xf32>
    %187 = vector.broadcast %186 : vector<1x1x6xf32> to vector<16x16x6xf32>
    %188 = arith.mulf %183, %187 : vector<16x16x6xf32>
    %189 = arith.addf %182, %188 : vector<16x16x6xf32>
    %190 = vector.extract_strided_slice %88 {offsets = [1, 1, 0], sizes = [16, 16, 6], strides = [1, 1, 1]} : vector<18x18x6xf32> to vector<16x16x6xf32>
    %191 = vector.extract_strided_slice %158 {offsets = [4, 0], sizes = [1, 6], strides = [1, 1]} : vector<9x6xf32> to vector<1x6xf32>
    %192 = vector.shape_cast %191 : vector<1x6xf32> to vector<6xf32>
    %193 = vector.shape_cast %192 : vector<6xf32> to vector<1x1x6xf32>
    %194 = vector.broadcast %193 : vector<1x1x6xf32> to vector<16x16x6xf32>
    %195 = arith.mulf %190, %194 : vector<16x16x6xf32>
    %196 = arith.addf %189, %195 : vector<16x16x6xf32>
    %197 = vector.extract_strided_slice %88 {offsets = [1, 2, 0], sizes = [16, 16, 6], strides = [1, 1, 1]} : vector<18x18x6xf32> to vector<16x16x6xf32>
    %198 = vector.extract_strided_slice %158 {offsets = [5, 0], sizes = [1, 6], strides = [1, 1]} : vector<9x6xf32> to vector<1x6xf32>
    %199 = vector.shape_cast %198 : vector<1x6xf32> to vector<6xf32>
    %200 = vector.shape_cast %199 : vector<6xf32> to vector<1x1x6xf32>
    %201 = vector.broadcast %200 : vector<1x1x6xf32> to vector<16x16x6xf32>
    %202 = arith.mulf %197, %201 : vector<16x16x6xf32>
    %203 = arith.addf %196, %202 : vector<16x16x6xf32>
    %204 = vector.extract_strided_slice %88 {offsets = [2, 0, 0], sizes = [16, 16, 6], strides = [1, 1, 1]} : vector<18x18x6xf32> to vector<16x16x6xf32>
    %205 = vector.extract_strided_slice %158 {offsets = [6, 0], sizes = [1, 6], strides = [1, 1]} : vector<9x6xf32> to vector<1x6xf32>
    %206 = vector.shape_cast %205 : vector<1x6xf32> to vector<6xf32>
    %207 = vector.shape_cast %206 : vector<6xf32> to vector<1x1x6xf32>
    %208 = vector.broadcast %207 : vector<1x1x6xf32> to vector<16x16x6xf32>
    %209 = arith.mulf %204, %208 : vector<16x16x6xf32>
    %210 = arith.addf %203, %209 : vector<16x16x6xf32>
    %211 = vector.extract_strided_slice %88 {offsets = [2, 1, 0], sizes = [16, 16, 6], strides = [1, 1, 1]} : vector<18x18x6xf32> to vector<16x16x6xf32>
    %212 = vector.extract_strided_slice %158 {offsets = [7, 0], sizes = [1, 6], strides = [1, 1]} : vector<9x6xf32> to vector<1x6xf32>
    %213 = vector.shape_cast %212 : vector<1x6xf32> to vector<6xf32>
    %214 = vector.shape_cast %213 : vector<6xf32> to vector<1x1x6xf32>
    %215 = vector.broadcast %214 : vector<1x1x6xf32> to vector<16x16x6xf32>
    %216 = arith.mulf %211, %215 : vector<16x16x6xf32>
    %217 = arith.addf %210, %216 : vector<16x16x6xf32>
    %218 = vector.extract_strided_slice %88 {offsets = [2, 2, 0], sizes = [16, 16, 6], strides = [1, 1, 1]} : vector<18x18x6xf32> to vector<16x16x6xf32>
    %219 = vector.extract_strided_slice %158 {offsets = [8, 0], sizes = [1, 6], strides = [1, 1]} : vector<9x6xf32> to vector<1x6xf32>
    %220 = vector.shape_cast %219 : vector<1x6xf32> to vector<6xf32>
    %221 = vector.shape_cast %220 : vector<6xf32> to vector<1x1x6xf32>
    %222 = vector.broadcast %221 : vector<1x1x6xf32> to vector<16x16x6xf32>
    %223 = arith.mulf %218, %222 : vector<16x16x6xf32>
    %224 = arith.addf %217, %223 : vector<16x16x6xf32>
    %cst_41 = arith.constant 0.000000e+00 : f32
    %225 = vector.broadcast %cst_41 : f32 to vector<16x16x6xf32>
    %226 = arith.maximumf %224, %225 : vector<16x16x6xf32>
    %227 = vector.shape_cast %157 : vector<16x16x8xf32> to vector<256x8xf32>
    %c0_42 = arith.constant 0 : index
    %c0_43 = arith.constant 0 : index
    %228 = vector.load %arg10[%c0_42, %c0_43] : memref<8x8xf32, #tpu.memory_space<vmem>>, vector<8x8xf32>
    %cst_44 = arith.constant dense<0.000000e+00> : vector<256x8xf32>
    %229 = tpu.matmul %227, %228, %cst_44 {dimension_numbers = #tpu.dot_dimension_numbers<[1], [0], [0], [1], [0, 0, 1, 1], [], []>} : vector<256x8xf32>, vector<8x8xf32>, vector<256x8xf32> -> vector<256x8xf32>
    %230 = vector.shape_cast %226 : vector<16x16x6xf32> to vector<256x6xf32>
    %c0_45 = arith.constant 0 : index
    %c0_46 = arith.constant 0 : index
    %231 = vector.load %arg11[%c0_45, %c0_46] : memref<6x8xf32, #tpu.memory_space<vmem>>, vector<6x8xf32>
    %cst_47 = arith.constant dense<0.000000e+00> : vector<256x8xf32>
    %232 = tpu.matmul %230, %231, %cst_47 {dimension_numbers = #tpu.dot_dimension_numbers<[1], [0], [0], [1], [0, 0, 1, 1], [], []>} : vector<256x6xf32>, vector<6x8xf32>, vector<256x8xf32> -> vector<256x8xf32>
    %233 = arith.addf %229, %232 : vector<256x8xf32>
    %c0_48 = arith.constant 0 : index
    %c0_49 = arith.constant 0 : index
    %234 = vector.load %arg12[%c0_48, %c0_49] : memref<1x8xf32, #tpu.memory_space<vmem>>, vector<1x8xf32>
    %235 = vector.broadcast %234 : vector<1x8xf32> to vector<256x8xf32>
    %236 = arith.addf %233, %235 : vector<256x8xf32>
    %cst_50 = arith.constant 0.000000e+00 : f32
    %237 = vector.broadcast %cst_50 : f32 to vector<256x8xf32>
    %238 = arith.maximumf %236, %237 : vector<256x8xf32>
    %239 = arith.addf %82, %238 : vector<256x8xf32>
    %240 = vector.shape_cast %239 : vector<256x8xf32> to vector<16x16x8xf32>
    %c0_51 = arith.constant 0 : index
    %c0_52 = arith.constant 0 : index
    %c0_53 = arith.constant 0 : index
    %c0_54 = arith.constant 0 : index
    %241 = vector.load %arg13[%c0_51, %c0_52, %c0_53, %c0_54] : memref<1x16x16x8xf32, #tpu.memory_space<vmem>>, vector<1x16x16x8xf32>
    %242 = vector.shape_cast %241 : vector<1x16x16x8xf32> to vector<16x16x8xf32>
    %243 = vector.shape_cast %240 : vector<16x16x8xf32> to vector<1x16x16x8xf32>
    tpu.vector_store %arg13[%c0_51, %c0_52, %c0_53, %c0_54], %243 {strides = array<i32>} : memref<1x16x16x8xf32, #tpu.memory_space<vmem>>, vector<1x16x16x8xf32>,
    return
  }
  func.func @transform_0(%arg0: i32) -> (i32, i32, i32, i32) {
    %c0_i32 = arith.constant 0 : i32
    %c0_i32_0 = arith.constant 0 : i32
    %c0_i32_1 = arith.constant 0 : i32
    %c0_i32_2 = arith.constant 0 : i32
    return %arg0, %c0_i32, %c0_i32_0, %c0_i32_1 : i32, i32, i32, i32
  }
  func.func @transform_1(%arg0: i32) -> (i32, i32) {
    %c0_i32 = arith.constant 0 : i32
    %c0_i32_0 = arith.constant 0 : i32
    %c0_i32_1 = arith.constant 0 : i32
    return %c0_i32, %c0_i32_0 : i32, i32
  }
  func.func @transform_2(%arg0: i32) -> (i32, i32) {
    %c0_i32 = arith.constant 0 : i32
    %c0_i32_0 = arith.constant 0 : i32
    %c0_i32_1 = arith.constant 0 : i32
    return %c0_i32, %c0_i32_0 : i32, i32
  }
  func.func @transform_3(%arg0: i32) -> (i32, i32) {
    %c0_i32 = arith.constant 0 : i32
    %c0_i32_0 = arith.constant 0 : i32
    %c0_i32_1 = arith.constant 0 : i32
    return %c0_i32, %c0_i32_0 : i32, i32
  }
  func.func @transform_4(%arg0: i32) -> (i32, i32) {
    %c0_i32 = arith.constant 0 : i32
    %c0_i32_0 = arith.constant 0 : i32
    %c0_i32_1 = arith.constant 0 : i32
    return %c0_i32, %c0_i32_0 : i32, i32
  }
  func.func @transform_5(%arg0: i32) -> (i32, i32) {
    %c0_i32 = arith.constant 0 : i32
    %c0_i32_0 = arith.constant 0 : i32
    %c0_i32_1 = arith.constant 0 : i32
    return %c0_i32, %c0_i32_0 : i32, i32
  }
  func.func @transform_6(%arg0: i32) -> (i32, i32) {
    %c0_i32 = arith.constant 0 : i32
    %c0_i32_0 = arith.constant 0 : i32
    %c0_i32_1 = arith.constant 0 : i32
    return %c0_i32, %c0_i32_0 : i32, i32
  }
  func.func @transform_7(%arg0: i32) -> (i32, i32) {
    %c0_i32 = arith.constant 0 : i32
    %c0_i32_0 = arith.constant 0 : i32
    %c0_i32_1 = arith.constant 0 : i32
    return %c0_i32, %c0_i32_0 : i32, i32
  }
  func.func @transform_8(%arg0: i32) -> (i32, i32) {
    %c0_i32 = arith.constant 0 : i32
    %c0_i32_0 = arith.constant 0 : i32
    %c0_i32_1 = arith.constant 0 : i32
    return %c0_i32, %c0_i32_0 : i32, i32
  }
  func.func @transform_9(%arg0: i32) -> (i32, i32) {
    %c0_i32 = arith.constant 0 : i32
    %c0_i32_0 = arith.constant 0 : i32
    %c0_i32_1 = arith.constant 0 : i32
    return %c0_i32, %c0_i32_0 : i32, i32
  }
  func.func @transform_10(%arg0: i32) -> (i32, i32) {
    %c0_i32 = arith.constant 0 : i32
    %c0_i32_0 = arith.constant 0 : i32
    %c0_i32_1 = arith.constant 0 : i32
    return %c0_i32, %c0_i32_0 : i32, i32
  }
  func.func @transform_11(%arg0: i32) -> (i32, i32) {
    %c0_i32 = arith.constant 0 : i32
    %c0_i32_0 = arith.constant 0 : i32
    %c0_i32_1 = arith.constant 0 : i32
    return %c0_i32, %c0_i32_0 : i32, i32
  }
  func.func @transform_12(%arg0: i32) -> (i32, i32, i32, i32) {
    %c0_i32 = arith.constant 0 : i32
    %c0_i32_0 = arith.constant 0 : i32
    %c0_i32_1 = arith.constant 0 : i32
    %c0_i32_2 = arith.constant 0 : i32
    return %arg0, %c0_i32, %c0_i32_0, %c0_i32_1 : i32, i32, i32, i32
  }
}

</mosaic_0001>

<llo_original>
// kernel: dense_block2_no_expand.1
$region0: #{dense_block2_no_expand.1}
  #allocation0 [shape = 'u32[]', space=smem, size = 0x4, offset = 0x4, fixed_abs, tag = 'smem constant byte address 0x4 - core index']
  #allocation1 [shape = 'u32[144,128]{1,0:T(1,128)}', space=vmem, size = 0x12000, scoped, tag = 'internal scratch']
  #allocation2 [shape = 'f32[18,18,8]{2,1,0:T(8,128)}', space=vmem, size = 0x36000, scoped, tag = 'scratch operand']
  #allocation3 [shape = 'f32[18,18,6]{2,1,0:T(8,128)}', space=vmem, size = 0x36000, scoped, tag = 'scratch operand']
  %s0 = inlined_call_operand.vmem [shape: f32[2,16,16,8], index: 0, kind: input, shape index: {}]
  %s1 = inlined_call_operand.vmem [shape: f32[9,8], index: 1, kind: input, shape index: {}]
  %s2 = inlined_call_operand.vmem [shape: f32[1,8], index: 2, kind: input, shape index: {}]
  %s3 = inlined_call_operand.vmem [shape: f32[8,8], index: 3, kind: input, shape index: {}]
  %s4 = inlined_call_operand.vmem [shape: f32[1,8], index: 4, kind: input, shape index: {}]
  %s5 = inlined_call_operand.vmem [shape: f32[9,8], index: 5, kind: input, shape index: {}]
  %s6 = inlined_call_operand.vmem [shape: f32[1,8], index: 6, kind: input, shape index: {}]
  %s7 = inlined_call_operand.vmem [shape: f32[9,6], index: 7, kind: input, shape index: {}]
  %s8 = inlined_call_operand.vmem [shape: f32[1,6], index: 8, kind: input, shape index: {}]
  %s9 = inlined_call_operand.vmem [shape: f32[8,8], index: 9, kind: input, shape index: {}]
  %s10 = inlined_call_operand.vmem [shape: f32[6,8], index: 10, kind: input, shape index: {}]
  %s11 = inlined_call_operand.vmem [shape: f32[1,8], index: 11, kind: input, shape index: {}]
  %s12 = inlined_call_operand.vmem [shape: f32[2,16,16,8], index: 12, kind: output, shape index: {}]
  %s13 = sld [smem:[#allocation0]]
  $region81: #{dense_block2_no_expand.1} parent=0
    _
  %s15 = ssub.s32 1, %s13
  %s16 = scalar_select 0, %s15, %s13
  loop: start=0, step=1, limit=4
  $region2: #{dense_block2_no_expand.1} parent=0 // loop_pre_header
    _
  $region3: #{dense_block2_no_expand.1} parent=0 // loop_header
    %s18 = sphi 0, %s22
    %p19 = scmp.ge.s32.totalorder %s18, 4
    %s28 = sphi 0, %s30
    %s31 = sphi 0, %s28
    %s32 = sphi 0, %s31
    %s48 = sphi 0, %s32
    %s52 = sphi 0, %s52
    %s54 = sphi 0, %s52
    %s55 = sphi 0, %s54
    %s69 = sphi 0, %s55
    %s73 = sphi 0, %s73
    %s75 = sphi 0, %s73
    %s76 = sphi 0, %s75
    %s90 = sphi 0, %s76
    %s94 = sphi 0, %s94
    %s96 = sphi 0, %s94
    %s97 = sphi 0, %s96
    %s111 = sphi 0, %s97
    %s115 = sphi 0, %s115
    %s117 = sphi 0, %s115
    %s118 = sphi 0, %s117
    %s132 = sphi 0, %s118
    %s136 = sphi 0, %s136
    %s138 = sphi 0, %s136
    %s139 = sphi 0, %s138
    %s153 = sphi 0, %s139
    %s157 = sphi 0, %s157
    %s159 = sphi 0, %s157
    %s160 = sphi 0, %s159
    %s174 = sphi 0, %s160
    %s178 = sphi 0, %s178
    %s180 = sphi 0, %s178
    %s181 = sphi 0, %s180
    %s195 = sphi 0, %s181
    %s199 = sphi 0, %s199
    %s201 = sphi 0, %s199
    %s202 = sphi 0, %s201
    %s216 = sphi 0, %s202
    %s220 = sphi 0, %s220
    %s222 = sphi 0, %s220
    %s223 = sphi 0, %s222
    %s237 = sphi 0, %s223
    %s241 = sphi 0, %s241
    %s243 = sphi 0, %s241
    %s244 = sphi 0, %s243
    %s258 = sphi 0, %s244
    %s262 = sphi 0, %s262
    %s264 = sphi 0, %s262
    %s265 = sphi 0, %s264
    %s279 = sphi 0, %s265
    %s285 = sphi 0, %s287
    %s288 = sphi 0, %s285
    %s289 = sphi 0, %s288
    %s305 = sphi 0, %s289
  $region4: #{dense_block2_no_expand.1} parent=0 // loop_header_branch
    %21 = sbr.rel (%p19) target = $region8
  $region5: #{dense_block2_no_expand.1} parent=0 // loop_body
    %s23 = ssub.s32 %s18, 1
    %s24 = ssub.s32 %s18, 2
    %s25 = sadd.s32 %s18, 1
    %s26 = ssub.s32 %s18, %s25
    %p27 = scmp.eq.s32.totalorder %s26, 0
    %s29 = sadd.s32 %s28, 1
    %s30 = scalar_select %p27, %s28, %s29
    %p33 = pneg %p27
    %p34 = scmp.eq.s32.totalorder %s18, 1
    %p35 = por %p33, %p34
    %p36 = scmp.ne.s32.totalorder %s28, %s31
    %p37 = scmp.eq.s32.totalorder %s18, 0
    %p38 = por %p36, %p37
    %p39 = scmp.ne.s32.totalorder %s28, %s31
    %p40 = scmp.eq.s32.totalorder %s23, 1
    %p41 = por %p39, %p40
    %p42 = scmp.ne.s32.totalorder %s31, %s32
    %p43 = scmp.eq.s32.totalorder %s23, 0
    %p44 = por %p42, %p43
    %p45 = scmp.ne.s32.totalorder %s31, %s32
    %p46 = scmp.eq.s32.totalorder %s24, 1
    %p47 = por %p45, %p46
    %p49 = scmp.ne.s32.totalorder %s32, %s48
    %p50 = scmp.eq.s32.totalorder %s24, 0
    %p51 = por %p49, %p50
    %s53 = sadd.s32 %s52, 1
    %p56 = scmp.eq.s32.totalorder %s18, 1
    %p57 = scmp.ne.s32.totalorder %s52, %s54
    %p58 = scmp.eq.s32.totalorder %s18, 0
    %p59 = por %p57, %p58
    %p60 = scmp.ne.s32.totalorder %s52, %s54
    %p61 = scmp.eq.s32.totalorder %s23, 1
    %p62 = por %p60, %p61
    %p63 = scmp.ne.s32.totalorder %s54, %s55
    %p64 = scmp.eq.s32.totalorder %s23, 0
    %p65 = por %p63, %p64
    %p66 = scmp.ne.s32.totalorder %s54, %s55
    %p67 = scmp.eq.s32.totalorder %s24, 1
    %p68 = por %p66, %p67
    %p70 = scmp.ne.s32.totalorder %s55, %s69
    %p71 = scmp.eq.s32.totalorder %s24, 0
    %p72 = por %p70, %p71
    %s74 = sadd.s32 %s73, 1
    %p77 = scmp.eq.s32.totalorder %s18, 1
    %p78 = scmp.ne.s32.totalorder %s73, %s75
    %p79 = scmp.eq.s32.totalorder %s18, 0
    %p80 = por %p78, %p79
    %p81 = scmp.ne.s32.totalorder %s73, %s75
    %p82 = scmp.eq.s32.totalorder %s23, 1
    %p83 = por %p81, %p82
    %p84 = scmp.ne.s32.totalorder %s75, %s76
    %p85 = scmp.eq.s32.totalorder %s23, 0
    %p86 = por %p84, %p85
    %p87 = scmp.ne.s32.totalorder %s75, %s76
    %p88 = scmp.eq.s32.totalorder %s24, 1
    %p89 = por %p87, %p88
    %p91 = scmp.ne.s32.totalorder %s76, %s90
    %p92 = scmp.eq.s32.totalorder %s24, 0
    %p93 = por %p91, %p92
    %s95 = sadd.s32 %s94, 1
    %p98 = scmp.eq.s32.totalorder %s18, 1
    %p99 = scmp.ne.s32.totalorder %s94, %s96
    %p100 = scmp.eq.s32.totalorder %s18, 0
    %p101 = por %p99, %p100
    %p102 = scmp.ne.s32.totalorder %s94, %s96
    %p103 = scmp.eq.s32.totalorder %s23, 1
    %p104 = por %p102, %p103
    %p105 = scmp.ne.s32.totalorder %s96, %s97
    %p106 = scmp.eq.s32.totalorder %s23, 0
    %p107 = por %p105, %p106
    %p108 = scmp.ne.s32.totalorder %s96, %s97
    %p109 = scmp.eq.s32.totalorder %s24, 1
    %p110 = por %p108, %p109
    %p112 = scmp.ne.s32.totalorder %s97, %s111
    %p113 = scmp.eq.s32.totalorder %s24, 0
    %p114 = por %p112, %p113
    %s116 = sadd.s32 %s115, 1
    %p119 = scmp.eq.s32.totalorder %s18, 1
    %p120 = scmp.ne.s32.totalorder %s115, %s117
    %p121 = scmp.eq.s32.totalorder %s18, 0
    %p122 = por %p120, %p121
    %p123 = scmp.ne.s32.totalorder %s115, %s117
    %p124 = scmp.eq.s32.totalorder %s23, 1
    %p125 = por %p123, %p124
    %p126 = scmp.ne.s32.totalorder %s117, %s118
    %p127 = scmp.eq.s32.totalorder %s23, 0
    %p128 = por %p126, %p127
    %p129 = scmp.ne.s32.totalorder %s117, %s118
    %p130 = scmp.eq.s32.totalorder %s24, 1
    %p131 = por %p129, %p130
    %p133 = scmp.ne.s32.totalorder %s118, %s132
    %p134 = scmp.eq.s32.totalorder %s24, 0
    %p135 = por %p133, %p134
    %s137 = sadd.s32 %s136, 1
    %p140 = scmp.eq.s32.totalorder %s18, 1
    %p141 = scmp.ne.s32.totalorder %s136, %s138
    %p142 = scmp.eq.s32.totalorder %s18, 0
    %p143 = por %p141, %p142
    %p144 = scmp.ne.s32.totalorder %s136, %s138
    %p145 = scmp.eq.s32.totalorder %s23, 1
    %p146 = por %p144, %p145
    %p147 = scmp.ne.s32.totalorder %s138, %s139
    %p148 = scmp.eq.s32.totalorder %s23, 0
    %p149 = por %p147, %p148
    %p150 = scmp.ne.s32.totalorder %s138, %s139
    %p151 = scmp.eq.s32.totalorder %s24, 1
    %p152 = por %p150, %p151
    %p154 = scmp.ne.s32.totalorder %s139, %s153
    %p155 = scmp.eq.s32.totalorder %s24, 0
    %p156 = por %p154, %p155
    %s158 = sadd.s32 %s157, 1
    %p161 = scmp.eq.s32.totalorder %s18, 1
    %p162 = scmp.ne.s32.totalorder %s157, %s159
    %p163 = scmp.eq.s32.totalorder %s18, 0
    %p164 = por %p162, %p163
    %p165 = scmp.ne.s32.totalorder %s157, %s159
    %p166 = scmp.eq.s32.totalorder %s23, 1
    %p167 = por %p165, %p166
    %p168 = scmp.ne.s32.totalorder %s159, %s160
    %p169 = scmp.eq.s32.totalorder %s23, 0
    %p170 = por %p168, %p169
    %p171 = scmp.ne.s32.totalorder %s159, %s160
    %p172 = scmp.eq.s32.totalorder %s24, 1
    %p173 = por %p171, %p172
    %p175 = scmp.ne.s32.totalorder %s160, %s174
    %p176 = scmp.eq.s32.totalorder %s24, 0
    %p177 = por %p175, %p176
    %s179 = sadd.s32 %s178, 1
    %p182 = scmp.eq.s32.totalorder %s18, 1
    %p183 = scmp.ne.s32.totalorder %s178, %s180
    %p184 = scmp.eq.s32.totalorder %s18, 0
    %p185 = por %p183, %p184
    %p186 = scmp.ne.s32.totalorder %s178, %s180
    %p187 = scmp.eq.s32.totalorder %s23, 1
    %p188 = por %p186, %p187
    %p189 = scmp.ne.s32.totalorder %s180, %s181
    %p190 = scmp.eq.s32.totalorder %s23, 0
    %p191 = por %p189, %p190
    %p192 = scmp.ne.s32.totalorder %s180, %s181
    %p193 = scmp.eq.s32.totalorder %s24, 1
    %p194 = por %p192, %p193
    %p196 = scmp.ne.s32.totalorder %s181, %s195
    %p197 = scmp.eq.s32.totalorder %s24, 0
    %p198 = por %p196, %p197
    %s200 = sadd.s32 %s199, 1
    %p203 = scmp.eq.s32.totalorder %s18, 1
    %p204 = scmp.ne.s32.totalorder %s199, %s201
    %p205 = scmp.eq.s32.totalorder %s18, 0
    %p206 = por %p204, %p205
    %p207 = scmp.ne.s32.totalorder %s199, %s201
    %p208 = scmp.eq.s32.totalorder %s23, 1
    %p209 = por %p207, %p208
    %p210 = scmp.ne.s32.totalorder %s201, %s202
    %p211 = scmp.eq.s32.totalorder %s23, 0
    %p212 = por %p210, %p211
    %p213 = scmp.ne.s32.totalorder %s201, %s202
    %p214 = scmp.eq.s32.totalorder %s24, 1
    %p215 = por %p213, %p214
    %p217 = scmp.ne.s32.totalorder %s202, %s216
    %p218 = scmp.eq.s32.totalorder %s24, 0
    %p219 = por %p217, %p218
    %s221 = sadd.s32 %s220, 1
    %p224 = scmp.eq.s32.totalorder %s18, 1
    %p225 = scmp.ne.s32.totalorder %s220, %s222
    %p226 = scmp.eq.s32.totalorder %s18, 0
    %p227 = por %p225, %p226
    %p228 = scmp.ne.s32.totalorder %s220, %s222
    %p229 = scmp.eq.s32.totalorder %s23, 1
    %p230 = por %p228, %p229
    %p231 = scmp.ne.s32.totalorder %s222, %s223
    %p232 = scmp.eq.s32.totalorder %s23, 0
    %p233 = por %p231, %p232
    %p234 = scmp.ne.s32.totalorder %s222, %s223
    %p235 = scmp.eq.s32.totalorder %s24, 1
    %p236 = por %p234, %p235
    %p238 = scmp.ne.s32.totalorder %s223, %s237
    %p239 = scmp.eq.s32.totalorder %s24, 0
    %p240 = por %p238, %p239
    %s242 = sadd.s32 %s241, 1
    %p245 = scmp.eq.s32.totalorder %s18, 1
    %p246 = scmp.ne.s32.totalorder %s241, %s243
    %p247 = scmp.eq.s32.totalorder %s18, 0
    %p248 = por %p246, %p247
    %p249 = scmp.ne.s32.totalorder %s241, %s243
    %p250 = scmp.eq.s32.totalorder %s23, 1
    %p251 = por %p249, %p250
    %p252 = scmp.ne.s32.totalorder %s243, %s244
    %p253 = scmp.eq.s32.totalorder %s23, 0
    %p254 = por %p252, %p253
    %p255 = scmp.ne.s32.totalorder %s243, %s244
    %p256 = scmp.eq.s32.totalorder %s24, 1
    %p257 = por %p255, %p256
    %p259 = scmp.ne.s32.totalorder %s244, %s258
    %p260 = scmp.eq.s32.totalorder %s24, 0
    %p261 = por %p259, %p260
    %s263 = sadd.s32 %s262, 1
    %p266 = scmp.eq.s32.totalorder %s18, 1
    %p267 = scmp.ne.s32.totalorder %s262, %s264
    %p268 = scmp.eq.s32.totalorder %s18, 0
    %p269 = por %p267, %p268
    %p270 = scmp.ne.s32.totalorder %s262, %s264
    %p271 = scmp.eq.s32.totalorder %s23, 1
    %p272 = por %p270, %p271
    %p273 = scmp.ne.s32.totalorder %s264, %s265
    %p274 = scmp.eq.s32.totalorder %s23, 0
    %p275 = por %p273, %p274
    %p276 = scmp.ne.s32.totalorder %s264, %s265
    %p277 = scmp.eq.s32.totalorder %s24, 1
    %p278 = por %p276, %p277
    %p280 = scmp.ne.s32.totalorder %s265, %s279
    %p281 = scmp.eq.s32.totalorder %s24, 0
    %p282 = por %p280, %p281
    %s283 = ssub.s32 %s18, %s25
    %p284 = scmp.eq.s32.totalorder %s283, 0
    %s286 = sadd.s32 %s285, 1
    %s287 = scalar_select %p284, %s285, %s286
    %p290 = pneg %p284
    %p291 = scmp.eq.s32.totalorder %s18, 1
    %p292 = por %p290, %p291
    %p293 = scmp.ne.s32.totalorder %s285, %s288
    %p294 = scmp.eq.s32.totalorder %s18, 0
    %p295 = por %p293, %p294
    %p296 = scmp.ne.s32.totalorder %s285, %s288
    %p297 = scmp.eq.s32.totalorder %s23, 1
    %p298 = por %p296, %p297
    %p299 = scmp.ne.s32.totalorder %s288, %s289
    %p300 = scmp.eq.s32.totalorder %s23, 0
    %p301 = por %p299, %p300
    %p302 = scmp.ne.s32.totalorder %s288, %s289
    %p303 = scmp.eq.s32.totalorder %s24, 1
    %p304 = por %p302, %p303
    %p306 = scmp.ne.s32.totalorder %s289, %s305
    %p307 = scmp.eq.s32.totalorder %s24, 0
    %p308 = por %p306, %p307
    %p309 = scmp.le.s32.totalorder 1, %s18
    %p310 = scmp.lt.s32.totalorder %s18, 3
    %p311 = pnand %p309, %p310
    %p312 = pneg %p311
    // Predicated region
    $region9: #{dense_block2_no_expand.1} parent=5 // pred_check
      _
    $region10: #{dense_block2_no_expand.1} parent=5 // pred_check_branch
      %314 = sbr.rel (%p311) target = $region12
    $region11: #{dense_block2_no_expand.1} parent=5 // pred_region
      %s315 = ssub.s32 %s18, 1
      // Predicated region
      $region13: #{dense_block2_no_expand.1} parent=11 // pred_check
        %p316 = pneg %p65
      $region14: #{dense_block2_no_expand.1} parent=11 // pred_check_branch
        %318 = sbr.rel (%p316) target = $region16
      $region15: #{dense_block2_no_expand.1} parent=11 // pred_region
        _
      $region16: #{dense_block2_no_expand.1} parent=11 // pred_fallthru
        _
      // Predicated region
      $region17: #{dense_block2_no_expand.1} parent=11 // pred_check
        %p319 = pneg %p86
      $region18: #{dense_block2_no_expand.1} parent=11 // pred_check_branch
        %321 = sbr.rel (%p319) target = $region20
      $region19: #{dense_block2_no_expand.1} parent=11 // pred_region
        _
      $region20: #{dense_block2_no_expand.1} parent=11 // pred_fallthru
        _
      // Predicated region
      $region21: #{dense_block2_no_expand.1} parent=11 // pred_check
        %p322 = pneg %p107
      $region22: #{dense_block2_no_expand.1} parent=11 // pred_check_branch
        %324 = sbr.rel (%p322) target = $region24
      $region23: #{dense_block2_no_expand.1} parent=11 // pred_region
        _
      $region24: #{dense_block2_no_expand.1} parent=11 // pred_fallthru
        _
      // Predicated region
      $region25: #{dense_block2_no_expand.1} parent=11 // pred_check
        %p325 = pneg %p128
      $region26: #{dense_block2_no_expand.1} parent=11 // pred_check_branch
        %327 = sbr.rel (%p325) target = $region28
      $region27: #{dense_block2_no_expand.1} parent=11 // pred_region
        _
      $region28: #{dense_block2_no_expand.1} parent=11 // pred_fallthru
        _
      // Predicated region
      $region29: #{dense_block2_no_expand.1} parent=11 // pred_check
        %p328 = pneg %p149
      $region30: #{dense_block2_no_expand.1} parent=11 // pred_check_branch
        %330 = sbr.rel (%p328) target = $region32
      $region31: #{dense_block2_no_expand.1} parent=11 // pred_region
        _
      $region32: #{dense_block2_no_expand.1} parent=11 // pred_fallthru
        _
      // Predicated region
      $region33: #{dense_block2_no_expand.1} parent=11 // pred_check
        %p331 = pneg %p170
      $region34: #{dense_block2_no_expand.1} parent=11 // pred_check_branch
        %333 = sbr.rel (%p331) target = $region36
      $region35: #{dense_block2_no_expand.1} parent=11 // pred_region
        _
      $region36: #{dense_block2_no_expand.1} parent=11 // pred_fallthru
        _
      // Predicated region
      $region37: #{dense_block2_no_expand.1} parent=11 // pred_check
        %p334 = pneg %p191
      $region38: #{dense_block2_no_expand.1} parent=11 // pred_check_branch
        %336 = sbr.rel (%p334) target = $region40
      $region39: #{dense_block2_no_expand.1} parent=11 // pred_region
        _
      $region40: #{dense_block2_no_expand.1} parent=11 // pred_fallthru
        _
      // Predicated region
      $region41: #{dense_block2_no_expand.1} parent=11 // pred_check
        %p337 = pneg %p212
      $region42: #{dense_block2_no_expand.1} parent=11 // pred_check_branch
        %339 = sbr.rel (%p337) target = $region44
      $region43: #{dense_block2_no_expand.1} parent=11 // pred_region
        _
      $region44: #{dense_block2_no_expand.1} parent=11 // pred_fallthru
        _
      // Predicated region
      $region45: #{dense_block2_no_expand.1} parent=11 // pred_check
        %p340 = pneg %p233
      $region46: #{dense_block2_no_expand.1} parent=11 // pred_check_branch
        %342 = sbr.rel (%p340) target = $region48
      $region47: #{dense_block2_no_expand.1} parent=11 // pred_region
        _
      $region48: #{dense_block2_no_expand.1} parent=11 // pred_fallthru
        _
      // Predicated region
      $region49: #{dense_block2_no_expand.1} parent=11 // pred_check
        %p343 = pneg %p254
      $region50: #{dense_block2_no_expand.1} parent=11 // pred_check_branch
        %345 = sbr.rel (%p343) target = $region52
      $region51: #{dense_block2_no_expand.1} parent=11 // pred_region
        _
      $region52: #{dense_block2_no_expand.1} parent=11 // pred_fallthru
        _
      // Predicated region
      $region53: #{dense_block2_no_expand.1} parent=11 // pred_check
        %p346 = pneg %p275
      $region54: #{dense_block2_no_expand.1} parent=11 // pred_check_branch
        %348 = sbr.rel (%p346) target = $region56
      $region55: #{dense_block2_no_expand.1} parent=11 // pred_region
        _
      $region56: #{dense_block2_no_expand.1} parent=11 // pred_fallthru
        _
    $region12: #{dense_block2_no_expand.1} parent=5 // pred_fallthru
      _
    %p349 = scmp.lt.s32.totalorder %s18, 2
    // Predicated region
    $region57: #{dense_block2_no_expand.1} parent=5 // pred_check
      %p350 = pneg %p349
    $region58: #{dense_block2_no_expand.1} parent=5 // pred_check_branch
      %352 = sbr.rel (%p350) target = $region60
    $region59: #{dense_block2_no_expand.1} parent=5 // pred_region
      // Predicated region
      $region61: #{dense_block2_no_expand.1} parent=59 // pred_check
        %p353 = pneg %p38
      $region62: #{dense_block2_no_expand.1} parent=59 // pred_check_branch
        %355 = sbr.rel (%p353) target = $region64
      $region63: #{dense_block2_no_expand.1} parent=59 // pred_region
        %p356 = scmp.lt.s32.totalorder %s18, 1
        %s357 = scalar_select %p356, %s18, 1
        %s358 = smul.addr %s357, 32
        %s359 = smul.addr %s358, 8
        %s360 = scalar_lea.vmem %s0, %s359
      $region64: #{dense_block2_no_expand.1} parent=59 // pred_fallthru
        _
    $region60: #{dense_block2_no_expand.1} parent=5 // pred_fallthru
      _
    %p361 = scmp.le.s32.totalorder 1, %s18
    %p362 = scmp.lt.s32.totalorder %s18, 3
    %p363 = pnand %p361, %p362
    %p364 = pneg %p363
    // Predicated region
    $region65: #{dense_block2_no_expand.1} parent=5 // pred_check
      _
    $region66: #{dense_block2_no_expand.1} parent=5 // pred_check_branch
      %366 = sbr.rel (%p363) target = $region68
    $region67: #{dense_block2_no_expand.1} parent=5 // pred_region
      %s367 = ssub.s32 %s18, 1
      %p368 = scmp.lt.s32.totalorder %s23, 1
      %s369 = scalar_select %p368, %s23, 1
      %s370 = smul.addr %s369, 32
      %s371 = smul.addr %s370, 8
      %s372 = scalar_lea.vmem %s0, %s371
      %p373 = pneg %p44
      %p374 = pneg %p41
      %p375 = pneg %p65
      %p376 = pneg %p62
      %p377 = pneg %p86
      %p378 = pneg %p83
      %p379 = pneg %p107
      %p380 = pneg %p104
      %p381 = pneg %p128
      %p382 = pneg %p125
      %p383 = pneg %p149
      %p384 = pneg %p146
      %p385 = pneg %p170
      %p386 = pneg %p167
      %p387 = pneg %p191
      %p388 = pneg %p188
      %p389 = pneg %p212
      %p390 = pneg %p209
      %p391 = pneg %p233
      %p392 = pneg %p230
      %p393 = pneg %p254
      %p394 = pneg %p251
      %p395 = pneg %p275
      %p396 = pneg %p272
      %p397 = pneg %p301
      %p398 = pneg %p298
      %p399 = scmp.lt.s32.totalorder %s23, 1
      %s400 = scalar_select %p399, %s23, 1
      %s401 = smul.addr %s400, 32
      %s402 = smul.addr %s401, 8
      %s403 = scalar_lea.vmem %s12, %s402
      %p404 = scmp.lt.s32.totalorder %s23, 1
      %s405 = scalar_select %p404, %s23, 1
      %s406 = smul.addr %s405, 32
      %s407 = smul.addr %s406, 8
      %s408 = scalar_lea.vmem %s0, %s407
      %p409 = scmp.lt.s32.totalorder %s23, 1
      %s410 = scalar_select %p409, %s23, 1
      %s411 = smul.addr %s410, 32
      %s412 = smul.addr %s411, 8
      %s413 = scalar_lea.vmem %s12, %s412
      %vm414 = vcmask 64512
      %415 = vst.msk [vmem:[#allocation2] sm:$0xff] %vm414, 0.0
      %416 = vst.msk [vmem:[#allocation2 + $0x8] sm:$0xff] %vm414, 0.0
      %vm417 = vcmask 58368
      %418 = vst.msk [vmem:[#allocation2 + $0x10] sm:$0x3] %vm417, 0.0
      %419 = vst.msk [vmem:[#allocation2 + $0x18] sm:$0xff] %vm414, 0.0
      %420 = vst.msk [vmem:[#allocation2 + $0x20] sm:$0xff] %vm414, 0.0
      %421 = vst.msk [vmem:[#allocation2 + $0x28] sm:$0x3] %vm417, 0.0
      %422 = vst.msk [vmem:[#allocation2 + $0x30] sm:$0xff] %vm414, 0.0
      %423 = vst.msk [vmem:[#allocation2 + $0x38] sm:$0xff] %vm414, 0.0
      %424 = vst.msk [vmem:[#allocation2 + $0x40] sm:$0x3] %vm417, 0.0
      %425 = vst.msk [vmem:[#allocation2 + $0x48] sm:$0xff] %vm414, 0.0
      %426 = vst.msk [vmem:[#allocation2 + $0x50] sm:$0xff] %vm414, 0.0
      %427 = vst.msk [vmem:[#allocation2 + $0x58] sm:$0x3] %vm417, 0.0
      %428 = vst.msk [vmem:[#allocation2 + $0x60] sm:$0xff] %vm414, 0.0
      %429 = vst.msk [vmem:[#allocation2 + $0x68] sm:$0xff] %vm414, 0.0
      %430 = vst.msk [vmem:[#allocation2 + $0x70] sm:$0x3] %vm417, 0.0
      %431 = vst.msk [vmem:[#allocation2 + $0x78] sm:$0xff] %vm414, 0.0
      %432 = vst.msk [vmem:[#allocation2 + $0x80] sm:$0xff] %vm414, 0.0
      %433 = vst.msk [vmem:[#allocation2 + $0x88] sm:$0x3] %vm417, 0.0
      %434 = vst.msk [vmem:[#allocation2 + $0x90] sm:$0xff] %vm414, 0.0
      %435 = vst.msk [vmem:[#allocation2 + $0x98] sm:$0xff] %vm414, 0.0
      %436 = vst.msk [vmem:[#allocation2 + $0xa0] sm:$0x3] %vm417, 0.0
      %437 = vst.msk [vmem:[#allocation2 + $0xa8] sm:$0xff] %vm414, 0.0
      %438 = vst.msk [vmem:[#allocation2 + $0xb0] sm:$0xff] %vm414, 0.0
      %439 = vst.msk [vmem:[#allocation2 + $0xb8] sm:$0x3] %vm417, 0.0
      %440 = vst.msk [vmem:[#allocation2 + $0xc0] sm:$0xff] %vm414, 0.0
      %441 = vst.msk [vmem:[#allocation2 + $0xc8] sm:$0xff] %vm414, 0.0
      %442 = vst.msk [vmem:[#allocation2 + $0xd0] sm:$0x3] %vm417, 0.0
      %443 = vst.msk [vmem:[#allocation2 + $0xd8] sm:$0xff] %vm414, 0.0
      %444 = vst.msk [vmem:[#allocation2 + $0xe0] sm:$0xff] %vm414, 0.0
      %445 = vst.msk [vmem:[#allocation2 + $0xe8] sm:$0x3] %vm417, 0.0
      %446 = vst.msk [vmem:[#allocation2 + $0xf0] sm:$0xff] %vm414, 0.0
      %447 = vst.msk [vmem:[#allocation2 + $0xf8] sm:$0xff] %vm414, 0.0
      %448 = vst.msk [vmem:[#allocation2 + $0x100] sm:$0x3] %vm417, 0.0
      %449 = vst.msk [vmem:[#allocation2 + $0x108] sm:$0xff] %vm414, 0.0
      %450 = vst.msk [vmem:[#allocation2 + $0x110] sm:$0xff] %vm414, 0.0
      %451 = vst.msk [vmem:[#allocation2 + $0x118] sm:$0x3] %vm417, 0.0
      %452 = vst.msk [vmem:[#allocation2 + $0x120] sm:$0xff] %vm414, 0.0
      %453 = vst.msk [vmem:[#allocation2 + $0x128] sm:$0xff] %vm414, 0.0
      %454 = vst.msk [vmem:[#allocation2 + $0x130] sm:$0x3] %vm417, 0.0
      %455 = vst.msk [vmem:[#allocation2 + $0x138] sm:$0xff] %vm414, 0.0
      %456 = vst.msk [vmem:[#allocation2 + $0x140] sm:$0xff] %vm414, 0.0
      %457 = vst.msk [vmem:[#allocation2 + $0x148] sm:$0x3] %vm417, 0.0
      %458 = vst.msk [vmem:[#allocation2 + $0x150] sm:$0xff] %vm414, 0.0
      %459 = vst.msk [vmem:[#allocation2 + $0x158] sm:$0xff] %vm414, 0.0
      %460 = vst.msk [vmem:[#allocation2 + $0x160] sm:$0x3] %vm417, 0.0
      %461 = vst.msk [vmem:[#allocation2 + $0x168] sm:$0xff] %vm414, 0.0
      %462 = vst.msk [vmem:[#allocation2 + $0x170] sm:$0xff] %vm414, 0.0
      %463 = vst.msk [vmem:[#allocation2 + $0x178] sm:$0x3] %vm417, 0.0
      %464 = vst.msk [vmem:[#allocation2 + $0x180] sm:$0xff] %vm414, 0.0
      %465 = vst.msk [vmem:[#allocation2 + $0x188] sm:$0xff] %vm414, 0.0
      %466 = vst.msk [vmem:[#allocation2 + $0x190] sm:$0x3] %vm417, 0.0
      %467 = vst.msk [vmem:[#allocation2 + $0x198] sm:$0xff] %vm414, 0.0
      %468 = vst.msk [vmem:[#allocation2 + $0x1a0] sm:$0xff] %vm414, 0.0
      %469 = vst.msk [vmem:[#allocation2 + $0x1a8] sm:$0x3] %vm417, 0.0
      %v470 = vld [vmem:[%s408] sm:$0xff]
      %v471 = vld [vmem:[%s408 + $0x8] sm:$0xff]
      %v472 = vld [vmem:[%s408 + $0x10] sm:$0xff]
      %v473 = vld [vmem:[%s408 + $0x18] sm:$0xff]
      %v474 = vld [vmem:[%s408 + $0x20] sm:$0xff]
      %v475 = vld [vmem:[%s408 + $0x28] sm:$0xff]
      %v476 = vld [vmem:[%s408 + $0x30] sm:$0xff]
      %v477 = vld [vmem:[%s408 + $0x38] sm:$0xff]
      %v478 = vld [vmem:[%s408 + $0x40] sm:$0xff]
      %v479 = vld [vmem:[%s408 + $0x48] sm:$0xff]
      %v480 = vld [vmem:[%s408 + $0x50] sm:$0xff]
      %v481 = vld [vmem:[%s408 + $0x58] sm:$0xff]
      %v482 = vld [vmem:[%s408 + $0x60] sm:$0xff]
      %v483 = vld [vmem:[%s408 + $0x68] sm:$0xff]
      %v484 = vld [vmem:[%s408 + $0x70] sm:$0xff]
      %v485 = vld [vmem:[%s408 + $0x78] sm:$0xff]
      %v486 = vld [vmem:[%s408 + $0x80] sm:$0xff]
      %v487 = vld [vmem:[%s408 + $0x88] sm:$0xff]
      %v488 = vld [vmem:[%s408 + $0x90] sm:$0xff]
      %v489 = vld [vmem:[%s408 + $0x98] sm:$0xff]
      %v490 = vld [vmem:[%s408 + $0xa0] sm:$0xff]
      %v491 = vld [vmem:[%s408 + $0xa8] sm:$0xff]
      %v492 = vld [vmem:[%s408 + $0xb0] sm:$0xff]
      %v493 = vld [vmem:[%s408 + $0xb8] sm:$0xff]
      %v494 = vld [vmem:[%s408 + $0xc0] sm:$0xff]
      %v495 = vld [vmem:[%s408 + $0xc8] sm:$0xff]
      %v496 = vld [vmem:[%s408 + $0xd0] sm:$0xff]
      %v497 = vld [vmem:[%s408 + $0xd8] sm:$0xff]
      %v498 = vld [vmem:[%s408 + $0xe0] sm:$0xff]
      %v499 = vld [vmem:[%s408 + $0xe8] sm:$0xff]
      %v500 = vld [vmem:[%s408 + $0xf0] sm:$0xff]
      %v501 = vld [vmem:[%s408 + $0xf8] sm:$0xff]
      %s502 = scalar_lea.vmem [#allocation2], 24
      %503 = vst.msk [vmem:[%s502 + $0x1] sm:$0xff] %vm414, %v470
      %504 = vst.msk [vmem:[%s502 + $0x9] sm:$0xff] %vm414, %v471
      %505 = vst.msk [vmem:[%s502 + $0x19] sm:$0xff] %vm414, %v472
      %506 = vst.msk [vmem:[%s502 + $0x21] sm:$0xff] %vm414, %v473
      %507 = vst.msk [vmem:[%s502 + $0x31] sm:$0xff] %vm414, %v474
      %508 = vst.msk [vmem:[%s502 + $0x39] sm:$0xff] %vm414, %v475
      %509 = vst.msk [vmem:[%s502 + $0x49] sm:$0xff] %vm414, %v476
      %510 = vst.msk [vmem:[%s502 + $0x51] sm:$0xff] %vm414, %v477
      %511 = vst.msk [vmem:[%s502 + $0x61] sm:$0xff] %vm414, %v478
      %512 = vst.msk [vmem:[%s502 + $0x69] sm:$0xff] %vm414, %v479
      %513 = vst.msk [vmem:[%s502 + $0x79] sm:$0xff] %vm414, %v480
      %514 = vst.msk [vmem:[%s502 + $0x81] sm:$0xff] %vm414, %v481
      %515 = vst.msk [vmem:[%s502 + $0x91] sm:$0xff] %vm414, %v482
      %516 = vst.msk [vmem:[%s502 + $0x99] sm:$0xff] %vm414, %v483
      %517 = vst.msk [vmem:[%s502 + $0xa9] sm:$0xff] %vm414, %v484
      %518 = vst.msk [vmem:[%s502 + $0xb1] sm:$0xff] %vm414, %v485
      %519 = vst.msk [vmem:[%s502 + $0xc1] sm:$0xff] %vm414, %v486
      %520 = vst.msk [vmem:[%s502 + $0xc9] sm:$0xff] %vm414, %v487
      %521 = vst.msk [vmem:[%s502 + $0xd9] sm:$0xff] %vm414, %v488
      %522 = vst.msk [vmem:[%s502 + $0xe1] sm:$0xff] %vm414, %v489
      %523 = vst.msk [vmem:[%s502 + $0xf1] sm:$0xff] %vm414, %v490
      %524 = vst.msk [vmem:[%s502 + $0xf9] sm:$0xff] %vm414, %v491
      %525 = vst.msk [vmem:[%s502 + $0x109] sm:$0xff] %vm414, %v492
      %526 = vst.msk [vmem:[%s502 + $0x111] sm:$0xff] %vm414, %v493
      %527 = vst.msk [vmem:[%s502 + $0x121] sm:$0xff] %vm414, %v494
      %528 = vst.msk [vmem:[%s502 + $0x129] sm:$0xff] %vm414, %v495
      %529 = vst.msk [vmem:[%s502 + $0x139] sm:$0xff] %vm414, %v496
      %530 = vst.msk [vmem:[%s502 + $0x141] sm:$0xff] %vm414, %v497
      %531 = vst.msk [vmem:[%s502 + $0x151] sm:$0xff] %vm414, %v498
      %532 = vst.msk [vmem:[%s502 + $0x159] sm:$0xff] %vm414, %v499
      %533 = vst.msk [vmem:[%s502 + $0x169] sm:$0xff] %vm414, %v500
      %534 = vst.msk [vmem:[%s502 + $0x171] sm:$0xff] %vm414, %v501
      %v535 = vld [vmem:[#allocation2] sm:$0xff]
      %v536 = vld [vmem:[#allocation2 + $0x8] sm:$0xff]
      %v537 = vld [vmem:[#allocation2 + $0x10] sm:$0x3]
      %v538 = vld [vmem:[#allocation2 + $0x18] sm:$0xff]
      %v539 = vld [vmem:[#allocation2 + $0x20] sm:$0xff]
      %v540 = vld [vmem:[#allocation2 + $0x28] sm:$0x3]
      %v541 = vld [vmem:[#allocation2 + $0x30] sm:$0xff]
      %v542 = vld [vmem:[#allocation2 + $0x38] sm:$0xff]
      %v543 = vld [vmem:[#allocation2 + $0x40] sm:$0x3]
      %v544 = vld [vmem:[#allocation2 + $0x48] sm:$0xff]
      %v545 = vld [vmem:[#allocation2 + $0x50] sm:$0xff]
      %v546 = vld [vmem:[#allocation2 + $0x58] sm:$0x3]
      %v547 = vld [vmem:[#allocation2 + $0x60] sm:$0xff]
      %v548 = vld [vmem:[#allocation2 + $0x68] sm:$0xff]
      %v549 = vld [vmem:[#allocation2 + $0x70] sm:$0x3]
      %v550 = vld [vmem:[#allocation2 + $0x78] sm:$0xff]
      %v551 = vld [vmem:[#allocation2 + $0x80] sm:$0xff]
      %v552 = vld [vmem:[#allocation2 + $0x88] sm:$0x3]
      %v553 = vld [vmem:[#allocation2 + $0x90] sm:$0xff]
      %v554 = vld [vmem:[#allocation2 + $0x98] sm:$0xff]
      %v555 = vld [vmem:[#allocation2 + $0xa0] sm:$0x3]
      %v556 = vld [vmem:[#allocation2 + $0xa8] sm:$0xff]
      %v557 = vld [vmem:[#allocation2 + $0xb0] sm:$0xff]
      %v558 = vld [vmem:[#allocation2 + $0xb8] sm:$0x3]
      %v559 = vld [vmem:[#allocation2 + $0xc0] sm:$0xff]
      %v560 = vld [vmem:[#allocation2 + $0xc8] sm:$0xff]
      %v561 = vld [vmem:[#allocation2 + $0xd0] sm:$0x3]
      %v562 = vld [vmem:[#allocation2 + $0xd8] sm:$0xff]
      %v563 = vld [vmem:[#allocation2 + $0xe0] sm:$0xff]
      %v564 = vld [vmem:[#allocation2 + $0xe8] sm:$0x3]
      %v565 = vld [vmem:[#allocation2 + $0xf0] sm:$0xff]
      %v566 = vld [vmem:[#allocation2 + $0xf8] sm:$0xff]
      %v567 = vld [vmem:[#allocation2 + $0x100] sm:$0x3]
      %v568 = vld [vmem:[#allocation2 + $0x108] sm:$0xff]
      %v569 = vld [vmem:[#allocation2 + $0x110] sm:$0xff]
      %v570 = vld [vmem:[#allocation2 + $0x118] sm:$0x3]
      %v571 = vld [vmem:[#allocation2 + $0x120] sm:$0xff]
      %v572 = vld [vmem:[#allocation2 + $0x128] sm:$0xff]
      %v573 = vld [vmem:[#allocation2 + $0x130] sm:$0x3]
      %v574 = vld [vmem:[#allocation2 + $0x138] sm:$0xff]
      %v575 = vld [vmem:[#allocation2 + $0x140] sm:$0xff]
      %v576 = vld [vmem:[#allocation2 + $0x148] sm:$0x3]
      %v577 = vld [vmem:[#allocation2 + $0x150] sm:$0xff]
      %v578 = vld [vmem:[#allocation2 + $0x158] sm:$0xff]
      %v579 = vld [vmem:[#allocation2 + $0x160] sm:$0x3]
      %v580 = vld [vmem:[#allocation2 + $0x168] sm:$0xff]
      %v581 = vld [vmem:[#allocation2 + $0x170] sm:$0xff]
      %v582 = vld [vmem:[#allocation2 + $0x178] sm:$0x3]
      %v583 = vld [vmem:[#allocation2 + $0x180] sm:$0xff]
      %v584 = vld [vmem:[#allocation2 + $0x188] sm:$0xff]
      %v585 = vld [vmem:[#allocation2 + $0x190] sm:$0x3]
      %v586 = vld [vmem:[#allocation2 + $0x198] sm:$0xff]
      %v587 = vld [vmem:[#allocation2 + $0x1a0] sm:$0xff]
      %v588 = vld [vmem:[#allocation2 + $0x1a8] sm:$0x3]
      %v589 = vld [vmem:[%s1] sm:$0xff]
      %v590 = vld [vmem:[%s1 + $0x8] sm:$0x1]
      %v591 = vld [vmem:[%s2] sm:$0x1]
      %v593 = vlaneseq
      %v594 = vshrl.u32 %v593, 7
      %v595 = vsub.s32 0, %v594
      %v596 = vrot.slane %v591, %v595
      %v598 = vlaneseq
      %v599 = vshrl.u32 %v598, 7
      %v600 = vsub.s32 0, %v599
      %v601 = vrot.slane %v589, %v600
      %v602 = vmul.f32 %v535, %v601
      %v603 = vmul.f32 %v536, %v601
      %v604 = vmul.f32 %v538, %v601
      %v605 = vmul.f32 %v539, %v601
      %v606 = vmul.f32 %v541, %v601
      %v607 = vmul.f32 %v542, %v601
      %v608 = vmul.f32 %v544, %v601
      %v609 = vmul.f32 %v545, %v601
      %v610 = vmul.f32 %v547, %v601
      %v611 = vmul.f32 %v548, %v601
      %v612 = vmul.f32 %v550, %v601
      %v613 = vmul.f32 %v551, %v601
      %v614 = vmul.f32 %v553, %v601
      %v615 = vmul.f32 %v554, %v601
      %v616 = vmul.f32 %v556, %v601
      %v617 = vmul.f32 %v557, %v601
      %v618 = vmul.f32 %v559, %v601
      %v619 = vmul.f32 %v560, %v601
      %v620 = vmul.f32 %v562, %v601
      %v621 = vmul.f32 %v563, %v601
      %v622 = vmul.f32 %v565, %v601
      %v623 = vmul.f32 %v566, %v601
      %v624 = vmul.f32 %v568, %v601
      %v625 = vmul.f32 %v569, %v601
      %v626 = vmul.f32 %v571, %v601
      %v627 = vmul.f32 %v572, %v601
      %v628 = vmul.f32 %v574, %v601
      %v629 = vmul.f32 %v575, %v601
      %v630 = vmul.f32 %v577, %v601
      %v631 = vmul.f32 %v578, %v601
      %v632 = vmul.f32 %v580, %v601
      %v633 = vmul.f32 %v581, %v601
      %v634 = vadd.f32 %v596, %v602
      %v635 = vadd.f32 %v596, %v603
      %v636 = vadd.f32 %v596, %v604
      %v637 = vadd.f32 %v596, %v605
      %v638 = vadd.f32 %v596, %v606
      %v639 = vadd.f32 %v596, %v607
      %v640 = vadd.f32 %v596, %v608
      %v641 = vadd.f32 %v596, %v609
      %v642 = vadd.f32 %v596, %v610
      %v643 = vadd.f32 %v596, %v611
      %v644 = vadd.f32 %v596, %v612
      %v645 = vadd.f32 %v596, %v613
      %v646 = vadd.f32 %v596, %v614
      %v647 = vadd.f32 %v596, %v615
      %v648 = vadd.f32 %v596, %v616
      %v649 = vadd.f32 %v596, %v617
      %v650 = vadd.f32 %v596, %v618
      %v651 = vadd.f32 %v596, %v619
      %v652 = vadd.f32 %v596, %v620
      %v653 = vadd.f32 %v596, %v621
      %v654 = vadd.f32 %v596, %v622
      %v655 = vadd.f32 %v596, %v623
      %v656 = vadd.f32 %v596, %v624
      %v657 = vadd.f32 %v596, %v625
      %v658 = vadd.f32 %v596, %v626
      %v659 = vadd.f32 %v596, %v627
      %v660 = vadd.f32 %v596, %v628
      %v661 = vadd.f32 %v596, %v629
      %v662 = vadd.f32 %v596, %v630
      %v663 = vadd.f32 %v596, %v631
      %v664 = vadd.f32 %v596, %v632
      %v665 = vadd.f32 %v596, %v633
      %v666 = vlaneseq
      %v667 = vshrl.u32 %v666, 7
      %v668 = vsub.s32 1, %v667
      %v669 = vrot.slane %v589, %v668
      %v670 = vmul.f32 %v535, %v669
      %v671 = vmul.f32 %v536, %v669
      %v672 = vmul.f32 %v537, %v669
      %v673 = vmul.f32 %v538, %v669
      %v674 = vmul.f32 %v539, %v669
      %v675 = vmul.f32 %v540, %v669
      %v676 = vmul.f32 %v541, %v669
      %v677 = vmul.f32 %v542, %v669
      %v678 = vmul.f32 %v543, %v669
      %v679 = vmul.f32 %v544, %v669
      %v680 = vmul.f32 %v545, %v669
      %v681 = vmul.f32 %v546, %v669
      %v682 = vmul.f32 %v547, %v669
      %v683 = vmul.f32 %v548, %v669
      %v684 = vmul.f32 %v549, %v669
      %v685 = vmul.f32 %v550, %v669
      %v686 = vmul.f32 %v551, %v669
      %v687 = vmul.f32 %v552, %v669
      %v688 = vmul.f32 %v553, %v669
      %v689 = vmul.f32 %v554, %v669
      %v690 = vmul.f32 %v555, %v669
      %v691 = vmul.f32 %v556, %v669
      %v692 = vmul.f32 %v557, %v669
      %v693 = vmul.f32 %v558, %v669
      %v694 = vmul.f32 %v559, %v669
      %v695 = vmul.f32 %v560, %v669
      %v696 = vmul.f32 %v561, %v669
      %v697 = vmul.f32 %v562, %v669
      %v698 = vmul.f32 %v563, %v669
      %v699 = vmul.f32 %v564, %v669
      %v700 = vmul.f32 %v565, %v669
      %v701 = vmul.f32 %v566, %v669
      %v702 = vmul.f32 %v567, %v669
      %v703 = vmul.f32 %v568, %v669
      %v704 = vmul.f32 %v569, %v669
      %v705 = vmul.f32 %v570, %v669
      %v706 = vmul.f32 %v571, %v669
      %v707 = vmul.f32 %v572, %v669
      %v708 = vmul.f32 %v573, %v669
      %v709 = vmul.f32 %v574, %v669
      %v710 = vmul.f32 %v575, %v669
      %v711 = vmul.f32 %v576, %v669
      %v712 = vmul.f32 %v577, %v669
      %v713 = vmul.f32 %v578, %v669
      %v714 = vmul.f32 %v579, %v669
      %v715 = vmul.f32 %v580, %v669
      %v716 = vmul.f32 %v581, %v669
      %v717 = vmul.f32 %v582, %v669
      %vm766 = vcmask 1046528
      %v767 = vrot.slane %v670, 1
      %v768 = vrot.slane %v671, 1
      %v769 = vsel %vm766, %v767, %v768
      %v770 = vrot.slane %v672, 1
      %v771 = vsel %vm766, %v768, %v770
      %v772 = vrot.slane %v673, 1
      %v773 = vrot.slane %v674, 1
      %v774 = vsel %vm766, %v772, %v773
      %v775 = vrot.slane %v675, 1
      %v776 = vsel %vm766, %v773, %v775
      %v777 = vrot.slane %v676, 1
      %v778 = vrot.slane %v677, 1
      %v779 = vsel %vm766, %v777, %v778
      %v780 = vrot.slane %v678, 1
      %v781 = vsel %vm766, %v778, %v780
      %v782 = vrot.slane %v679, 1
      %v783 = vrot.slane %v680, 1
      %v784 = vsel %vm766, %v782, %v783
      %v785 = vrot.slane %v681, 1
      %v786 = vsel %vm766, %v783, %v785
      %v787 = vrot.slane %v682, 1
      %v788 = vrot.slane %v683, 1
      %v789 = vsel %vm766, %v787, %v788
      %v790 = vrot.slane %v684, 1
      %v791 = vsel %vm766, %v788, %v790
      %v792 = vrot.slane %v685, 1
      %v793 = vrot.slane %v686, 1
      %v794 = vsel %vm766, %v792, %v793
      %v795 = vrot.slane %v687, 1
      %v796 = vsel %vm766, %v793, %v795
      %v797 = vrot.slane %v688, 1
      %v798 = vrot.slane %v689, 1
      %v799 = vsel %vm766, %v797, %v798
      %v800 = vrot.slane %v690, 1
      %v801 = vsel %vm766, %v798, %v800
      %v802 = vrot.slane %v691, 1
      %v803 = vrot.slane %v692, 1
      %v804 = vsel %vm766, %v802, %v803
      %v805 = vrot.slane %v693, 1
      %v806 = vsel %vm766, %v803, %v805
      %v807 = vrot.slane %v694, 1
      %v808 = vrot.slane %v695, 1
      %v809 = vsel %vm766, %v807, %v808
      %v810 = vrot.slane %v696, 1
      %v811 = vsel %vm766, %v808, %v810
      %v812 = vrot.slane %v697, 1
      %v813 = vrot.slane %v698, 1
      %v814 = vsel %vm766, %v812, %v813
      %v815 = vrot.slane %v699, 1
      %v816 = vsel %vm766, %v813, %v815
      %v817 = vrot.slane %v700, 1
      %v818 = vrot.slane %v701, 1
      %v819 = vsel %vm766, %v817, %v818
      %v820 = vrot.slane %v702, 1
      %v821 = vsel %vm766, %v818, %v820
      %v822 = vrot.slane %v703, 1
      %v823 = vrot.slane %v704, 1
      %v824 = vsel %vm766, %v822, %v823
      %v825 = vrot.slane %v705, 1
      %v826 = vsel %vm766, %v823, %v825
      %v827 = vrot.slane %v706, 1
      %v828 = vrot.slane %v707, 1
      %v829 = vsel %vm766, %v827, %v828
      %v830 = vrot.slane %v708, 1
      %v831 = vsel %vm766, %v828, %v830
      %v832 = vrot.slane %v709, 1
      %v833 = vrot.slane %v710, 1
      %v834 = vsel %vm766, %v832, %v833
      %v835 = vrot.slane %v711, 1
      %v836 = vsel %vm766, %v833, %v835
      %v837 = vrot.slane %v712, 1
      %v838 = vrot.slane %v713, 1
      %v839 = vsel %vm766, %v837, %v838
      %v840 = vrot.slane %v714, 1
      %v841 = vsel %vm766, %v838, %v840
      %v842 = vrot.slane %v715, 1
      %v843 = vrot.slane %v716, 1
      %v844 = vsel %vm766, %v842, %v843
      %v845 = vrot.slane %v717, 1
      %v846 = vsel %vm766, %v843, %v845
      %v879 = vadd.f32 %v634, %v769
      %v880 = vadd.f32 %v635, %v771
      %v881 = vadd.f32 %v636, %v774
      %v882 = vadd.f32 %v637, %v776
      %v883 = vadd.f32 %v638, %v779
      %v884 = vadd.f32 %v639, %v781
      %v885 = vadd.f32 %v640, %v784
      %v886 = vadd.f32 %v641, %v786
      %v887 = vadd.f32 %v642, %v789
      %v888 = vadd.f32 %v643, %v791
      %v889 = vadd.f32 %v644, %v794
      %v890 = vadd.f32 %v645, %v796
      %v891 = vadd.f32 %v646, %v799
      %v892 = vadd.f32 %v647, %v801
      %v893 = vadd.f32 %v648, %v804
      %v894 = vadd.f32 %v649, %v806
      %v895 = vadd.f32 %v650, %v809
      %v896 = vadd.f32 %v651, %v811
      %v897 = vadd.f32 %v652, %v814
      %v898 = vadd.f32 %v653, %v816
      %v899 = vadd.f32 %v654, %v819
      %v900 = vadd.f32 %v655, %v821
      %v901 = vadd.f32 %v656, %v824
      %v902 = vadd.f32 %v657, %v826
      %v903 = vadd.f32 %v658, %v829
      %v904 = vadd.f32 %v659, %v831
      %v905 = vadd.f32 %v660, %v834
      %v906 = vadd.f32 %v661, %v836
      %v907 = vadd.f32 %v662, %v839
      %v908 = vadd.f32 %v663, %v841
      %v909 = vadd.f32 %v664, %v844
      %v910 = vadd.f32 %v665, %v846
      %v911 = vlaneseq
      %v912 = vshrl.u32 %v911, 7
      %v913 = vsub.s32 2, %v912
      %v914 = vrot.slane %v589, %v913
      %v915 = vmul.f32 %v535, %v914
      %v916 = vmul.f32 %v536, %v914
      %v917 = vmul.f32 %v537, %v914
      %v918 = vmul.f32 %v538, %v914
      %v919 = vmul.f32 %v539, %v914
      %v920 = vmul.f32 %v540, %v914
      %v921 = vmul.f32 %v541, %v914
      %v922 = vmul.f32 %v542, %v914
      %v923 = vmul.f32 %v543, %v914
      %v924 = vmul.f32 %v544, %v914
      %v925 = vmul.f32 %v545, %v914
      %v926 = vmul.f32 %v546, %v914
      %v927 = vmul.f32 %v547, %v914
      %v928 = vmul.f32 %v548, %v914
      %v929 = vmul.f32 %v549, %v914
      %v930 = vmul.f32 %v550, %v914
      %v931 = vmul.f32 %v551, %v914
      %v932 = vmul.f32 %v552, %v914
      %v933 = vmul.f32 %v553, %v914
      %v934 = vmul.f32 %v554, %v914
      %v935 = vmul.f32 %v555, %v914
      %v936 = vmul.f32 %v556, %v914
      %v937 = vmul.f32 %v557, %v914
      %v938 = vmul.f32 %v558, %v914
      %v939 = vmul.f32 %v559, %v914
      %v940 = vmul.f32 %v560, %v914
      %v941 = vmul.f32 %v561, %v914
      %v942 = vmul.f32 %v562, %v914
      %v943 = vmul.f32 %v563, %v914
      %v944 = vmul.f32 %v564, %v914
      %v945 = vmul.f32 %v565, %v914
      %v946 = vmul.f32 %v566, %v914
      %v947 = vmul.f32 %v567, %v914
      %v948 = vmul.f32 %v568, %v914
      %v949 = vmul.f32 %v569, %v914
      %v950 = vmul.f32 %v570, %v914
      %v951 = vmul.f32 %v571, %v914
      %v952 = vmul.f32 %v572, %v914
      %v953 = vmul.f32 %v573, %v914
      %v954 = vmul.f32 %v574, %v914
      %v955 = vmul.f32 %v575, %v914
      %v956 = vmul.f32 %v576, %v914
      %v957 = vmul.f32 %v577, %v914
      %v958 = vmul.f32 %v578, %v914
      %v959 = vmul.f32 %v579, %v914
      %v960 = vmul.f32 %v580, %v914
      %v961 = vmul.f32 %v581, %v914
      %v962 = vmul.f32 %v582, %v914
      %vm1011 = vcmask 1045504
      %v1012 = vrot.slane %v915, 2
      %v1013 = vrot.slane %v916, 2
      %v1014 = vsel %vm1011, %v1012, %v1013
      %v1015 = vrot.slane %v917, 2
      %v1016 = vsel %vm1011, %v1013, %v1015
      %v1017 = vrot.slane %v918, 2
      %v1018 = vrot.slane %v919, 2
      %v1019 = vsel %vm1011, %v1017, %v1018
      %v1020 = vrot.slane %v920, 2
      %v1021 = vsel %vm1011, %v1018, %v1020
      %v1022 = vrot.slane %v921, 2
      %v1023 = vrot.slane %v922, 2
      %v1024 = vsel %vm1011, %v1022, %v1023
      %v1025 = vrot.slane %v923, 2
      %v1026 = vsel %vm1011, %v1023, %v1025
      %v1027 = vrot.slane %v924, 2
      %v1028 = vrot.slane %v925, 2
      %v1029 = vsel %vm1011, %v1027, %v1028
      %v1030 = vrot.slane %v926, 2
      %v1031 = vsel %vm1011, %v1028, %v1030
      %v1032 = vrot.slane %v927, 2
      %v1033 = vrot.slane %v928, 2
      %v1034 = vsel %vm1011, %v1032, %v1033
      %v1035 = vrot.slane %v929, 2
      %v1036 = vsel %vm1011, %v1033, %v1035
      %v1037 = vrot.slane %v930, 2
      %v1038 = vrot.slane %v931, 2
      %v1039 = vsel %vm1011, %v1037, %v1038
      %v1040 = vrot.slane %v932, 2
      %v1041 = vsel %vm1011, %v1038, %v1040
      %v1042 = vrot.slane %v933, 2
      %v1043 = vrot.slane %v934, 2
      %v1044 = vsel %vm1011, %v1042, %v1043
      %v1045 = vrot.slane %v935, 2
      %v1046 = vsel %vm1011, %v1043, %v1045
      %v1047 = vrot.slane %v936, 2
      %v1048 = vrot.slane %v937, 2
      %v1049 = vsel %vm1011, %v1047, %v1048
      %v1050 = vrot.slane %v938, 2
      %v1051 = vsel %vm1011, %v1048, %v1050
      %v1052 = vrot.slane %v939, 2
      %v1053 = vrot.slane %v940, 2
      %v1054 = vsel %vm1011, %v1052, %v1053
      %v1055 = vrot.slane %v941, 2
      %v1056 = vsel %vm1011, %v1053, %v1055
      %v1057 = vrot.slane %v942, 2
      %v1058 = vrot.slane %v943, 2
      %v1059 = vsel %vm1011, %v1057, %v1058
      %v1060 = vrot.slane %v944, 2
      %v1061 = vsel %vm1011, %v1058, %v1060
      %v1062 = vrot.slane %v945, 2
      %v1063 = vrot.slane %v946, 2
      %v1064 = vsel %vm1011, %v1062, %v1063
      %v1065 = vrot.slane %v947, 2
      %v1066 = vsel %vm1011, %v1063, %v1065
      %v1067 = vrot.slane %v948, 2
      %v1068 = vrot.slane %v949, 2
      %v1069 = vsel %vm1011, %v1067, %v1068
      %v1070 = vrot.slane %v950, 2
      %v1071 = vsel %vm1011, %v1068, %v1070
      %v1072 = vrot.slane %v951, 2
      %v1073 = vrot.slane %v952, 2
      %v1074 = vsel %vm1011, %v1072, %v1073
      %v1075 = vrot.slane %v953, 2
      %v1076 = vsel %vm1011, %v1073, %v1075
      %v1077 = vrot.slane %v954, 2
      %v1078 = vrot.slane %v955, 2
      %v1079 = vsel %vm1011, %v1077, %v1078
      %v1080 = vrot.slane %v956, 2
      %v1081 = vsel %vm1011, %v1078, %v1080
      %v1082 = vrot.slane %v957, 2
      %v1083 = vrot.slane %v958, 2
      %v1084 = vsel %vm1011, %v1082, %v1083
      %v1085 = vrot.slane %v959, 2
      %v1086 = vsel %vm1011, %v1083, %v1085
      %v1087 = vrot.slane %v960, 2
      %v1088 = vrot.slane %v961, 2
      %v1089 = vsel %vm1011, %v1087, %v1088
      %v1090 = vrot.slane %v962, 2
      %v1091 = vsel %vm1011, %v1088, %v1090
      %v1124 = vadd.f32 %v879, %v1014
      %v1125 = vadd.f32 %v880, %v1016
      %v1126 = vadd.f32 %v881, %v1019
      %v1127 = vadd.f32 %v882, %v1021
      %v1128 = vadd.f32 %v883, %v1024
      %v1129 = vadd.f32 %v884, %v1026
      %v1130 = vadd.f32 %v885, %v1029
      %v1131 = vadd.f32 %v886, %v1031
      %v1132 = vadd.f32 %v887, %v1034
      %v1133 = vadd.f32 %v888, %v1036
      %v1134 = vadd.f32 %v889, %v1039
      %v1135 = vadd.f32 %v890, %v1041
      %v1136 = vadd.f32 %v891, %v1044
      %v1137 = vadd.f32 %v892, %v1046
      %v1138 = vadd.f32 %v893, %v1049
      %v1139 = vadd.f32 %v894, %v1051
      %v1140 = vadd.f32 %v895, %v1054
      %v1141 = vadd.f32 %v896, %v1056
      %v1142 = vadd.f32 %v897, %v1059
      %v1143 = vadd.f32 %v898, %v1061
      %v1144 = vadd.f32 %v899, %v1064
      %v1145 = vadd.f32 %v900, %v1066
      %v1146 = vadd.f32 %v901, %v1069
      %v1147 = vadd.f32 %v902, %v1071
      %v1148 = vadd.f32 %v903, %v1074
      %v1149 = vadd.f32 %v904, %v1076
      %v1150 = vadd.f32 %v905, %v1079
      %v1151 = vadd.f32 %v906, %v1081
      %v1152 = vadd.f32 %v907, %v1084
      %v1153 = vadd.f32 %v908, %v1086
      %v1154 = vadd.f32 %v909, %v1089
      %v1155 = vadd.f32 %v910, %v1091
      %v1156 = vlaneseq
      %v1157 = vshrl.u32 %v1156, 7
      %v1158 = vsub.s32 3, %v1157
      %v1159 = vrot.slane %v589, %v1158
      %v1160 = vmul.f32 %v538, %v1159
      %v1161 = vmul.f32 %v539, %v1159
      %v1162 = vmul.f32 %v541, %v1159
      %v1163 = vmul.f32 %v542, %v1159
      %v1164 = vmul.f32 %v544, %v1159
      %v1165 = vmul.f32 %v545, %v1159
      %v1166 = vmul.f32 %v547, %v1159
      %v1167 = vmul.f32 %v548, %v1159
      %v1168 = vmul.f32 %v550, %v1159
      %v1169 = vmul.f32 %v551, %v1159
      %v1170 = vmul.f32 %v553, %v1159
      %v1171 = vmul.f32 %v554, %v1159
      %v1172 = vmul.f32 %v556, %v1159
      %v1173 = vmul.f32 %v557, %v1159
      %v1174 = vmul.f32 %v559, %v1159
      %v1175 = vmul.f32 %v560, %v1159
      %v1176 = vmul.f32 %v562, %v1159
      %v1177 = vmul.f32 %v563, %v1159
      %v1178 = vmul.f32 %v565, %v1159
      %v1179 = vmul.f32 %v566, %v1159
      %v1180 = vmul.f32 %v568, %v1159
      %v1181 = vmul.f32 %v569, %v1159
      %v1182 = vmul.f32 %v571, %v1159
      %v1183 = vmul.f32 %v572, %v1159
      %v1184 = vmul.f32 %v574, %v1159
      %v1185 = vmul.f32 %v575, %v1159
      %v1186 = vmul.f32 %v577, %v1159
      %v1187 = vmul.f32 %v578, %v1159
      %v1188 = vmul.f32 %v580, %v1159
      %v1189 = vmul.f32 %v581, %v1159
      %v1190 = vmul.f32 %v583, %v1159
      %v1191 = vmul.f32 %v584, %v1159
      %v1192 = vadd.f32 %v1124, %v1160
      %v1193 = vadd.f32 %v1125, %v1161
      %v1194 = vadd.f32 %v1126, %v1162
      %v1195 = vadd.f32 %v1127, %v1163
      %v1196 = vadd.f32 %v1128, %v1164
      %v1197 = vadd.f32 %v1129, %v1165
      %v1198 = vadd.f32 %v1130, %v1166
      %v1199 = vadd.f32 %v1131, %v1167
      %v1200 = vadd.f32 %v1132, %v1168
      %v1201 = vadd.f32 %v1133, %v1169
      %v1202 = vadd.f32 %v1134, %v1170
      %v1203 = vadd.f32 %v1135, %v1171
      %v1204 = vadd.f32 %v1136, %v1172
      %v1205 = vadd.f32 %v1137, %v1173
      %v1206 = vadd.f32 %v1138, %v1174
      %v1207 = vadd.f32 %v1139, %v1175
      %v1208 = vadd.f32 %v1140, %v1176
      %v1209 = vadd.f32 %v1141, %v1177
      %v1210 = vadd.f32 %v1142, %v1178
      %v1211 = vadd.f32 %v1143, %v1179
      %v1212 = vadd.f32 %v1144, %v1180
      %v1213 = vadd.f32 %v1145, %v1181
      %v1214 = vadd.f32 %v1146, %v1182
      %v1215 = vadd.f32 %v1147, %v1183
      %v1216 = vadd.f32 %v1148, %v1184
      %v1217 = vadd.f32 %v1149, %v1185
      %v1218 = vadd.f32 %v1150, %v1186
      %v1219 = vadd.f32 %v1151, %v1187
      %v1220 = vadd.f32 %v1152, %v1188
      %v1221 = vadd.f32 %v1153, %v1189
      %v1222 = vadd.f32 %v1154, %v1190
      %v1223 = vadd.f32 %v1155, %v1191
      %v1224 = vlaneseq
      %v1225 = vshrl.u32 %v1224, 7
      %v1226 = vsub.s32 4, %v1225
      %v1227 = vrot.slane %v589, %v1226
      %v1228 = vmul.f32 %v538, %v1227
      %v1229 = vmul.f32 %v539, %v1227
      %v1230 = vmul.f32 %v540, %v1227
      %v1231 = vmul.f32 %v541, %v1227
      %v1232 = vmul.f32 %v542, %v1227
      %v1233 = vmul.f32 %v543, %v1227
      %v1234 = vmul.f32 %v544, %v1227
      %v1235 = vmul.f32 %v545, %v1227
      %v1236 = vmul.f32 %v546, %v1227
      %v1237 = vmul.f32 %v547, %v1227
      %v1238 = vmul.f32 %v548, %v1227
      %v1239 = vmul.f32 %v549, %v1227
      %v1240 = vmul.f32 %v550, %v1227
      %v1241 = vmul.f32 %v551, %v1227
      %v1242 = vmul.f32 %v552, %v1227
      %v1243 = vmul.f32 %v553, %v1227
      %v1244 = vmul.f32 %v554, %v1227
      %v1245 = vmul.f32 %v555, %v1227
      %v1246 = vmul.f32 %v556, %v1227
      %v1247 = vmul.f32 %v557, %v1227
      %v1248 = vmul.f32 %v558, %v1227
      %v1249 = vmul.f32 %v559, %v1227
      %v1250 = vmul.f32 %v560, %v1227
      %v1251 = vmul.f32 %v561, %v1227
      %v1252 = vmul.f32 %v562, %v1227
      %v1253 = vmul.f32 %v563, %v1227
      %v1254 = vmul.f32 %v564, %v1227
      %v1255 = vmul.f32 %v565, %v1227
      %v1256 = vmul.f32 %v566, %v1227
      %v1257 = vmul.f32 %v567, %v1227
      %v1258 = vmul.f32 %v568, %v1227
      %v1259 = vmul.f32 %v569, %v1227
      %v1260 = vmul.f32 %v570, %v1227
      %v1261 = vmul.f32 %v571, %v1227
      %v1262 = vmul.f32 %v572, %v1227
      %v1263 = vmul.f32 %v573, %v1227
      %v1264 = vmul.f32 %v574, %v1227
      %v1265 = vmul.f32 %v575, %v1227
      %v1266 = vmul.f32 %v576, %v1227
      %v1267 = vmul.f32 %v577, %v1227
      %v1268 = vmul.f32 %v578, %v1227
      %v1269 = vmul.f32 %v579, %v1227
      %v1270 = vmul.f32 %v580, %v1227
      %v1271 = vmul.f32 %v581, %v1227
      %v1272 = vmul.f32 %v582, %v1227
      %v1273 = vmul.f32 %v583, %v1227
      %v1274 = vmul.f32 %v584, %v1227
      %v1275 = vmul.f32 %v585, %v1227
      %v1324 = vrot.slane %v1228, 1
      %v1325 = vrot.slane %v1229, 1
      %v1326 = vsel %vm766, %v1324, %v1325
      %v1327 = vrot.slane %v1230, 1
      %v1328 = vsel %vm766, %v1325, %v1327
      %v1329 = vrot.slane %v1231, 1
      %v1330 = vrot.slane %v1232, 1
      %v1331 = vsel %vm766, %v1329, %v1330
      %v1332 = vrot.slane %v1233, 1
      %v1333 = vsel %vm766, %v1330, %v1332
      %v1334 = vrot.slane %v1234, 1
      %v1335 = vrot.slane %v1235, 1
      %v1336 = vsel %vm766, %v1334, %v1335
      %v1337 = vrot.slane %v1236, 1
      %v1338 = vsel %vm766, %v1335, %v1337
      %v1339 = vrot.slane %v1237, 1
      %v1340 = vrot.slane %v1238, 1
      %v1341 = vsel %vm766, %v1339, %v1340
      %v1342 = vrot.slane %v1239, 1
      %v1343 = vsel %vm766, %v1340, %v1342
      %v1344 = vrot.slane %v1240, 1
      %v1345 = vrot.slane %v1241, 1
      %v1346 = vsel %vm766, %v1344, %v1345
      %v1347 = vrot.slane %v1242, 1
      %v1348 = vsel %vm766, %v1345, %v1347
      %v1349 = vrot.slane %v1243, 1
      %v1350 = vrot.slane %v1244, 1
      %v1351 = vsel %vm766, %v1349, %v1350
      %v1352 = vrot.slane %v1245, 1
      %v1353 = vsel %vm766, %v1350, %v1352
      %v1354 = vrot.slane %v1246, 1
      %v1355 = vrot.slane %v1247, 1
      %v1356 = vsel %vm766, %v1354, %v1355
      %v1357 = vrot.slane %v1248, 1
      %v1358 = vsel %vm766, %v1355, %v1357
      %v1359 = vrot.slane %v1249, 1
      %v1360 = vrot.slane %v1250, 1
      %v1361 = vsel %vm766, %v1359, %v1360
      %v1362 = vrot.slane %v1251, 1
      %v1363 = vsel %vm766, %v1360, %v1362
      %v1364 = vrot.slane %v1252, 1
      %v1365 = vrot.slane %v1253, 1
      %v1366 = vsel %vm766, %v1364, %v1365
      %v1367 = vrot.slane %v1254, 1
      %v1368 = vsel %vm766, %v1365, %v1367
      %v1369 = vrot.slane %v1255, 1
      %v1370 = vrot.slane %v1256, 1
      %v1371 = vsel %vm766, %v1369, %v1370
      %v1372 = vrot.slane %v1257, 1
      %v1373 = vsel %vm766, %v1370, %v1372
      %v1374 = vrot.slane %v1258, 1
      %v1375 = vrot.slane %v1259, 1
      %v1376 = vsel %vm766, %v1374, %v1375
      %v1377 = vrot.slane %v1260, 1
      %v1378 = vsel %vm766, %v1375, %v1377
      %v1379 = vrot.slane %v1261, 1
      %v1380 = vrot.slane %v1262, 1
      %v1381 = vsel %vm766, %v1379, %v1380
      %v1382 = vrot.slane %v1263, 1
      %v1383 = vsel %vm766, %v1380, %v1382
      %v1384 = vrot.slane %v1264, 1
      %v1385 = vrot.slane %v1265, 1
      %v1386 = vsel %vm766, %v1384, %v1385
      %v1387 = vrot.slane %v1266, 1
      %v1388 = vsel %vm766, %v1385, %v1387
      %v1389 = vrot.slane %v1267, 1
      %v1390 = vrot.slane %v1268, 1
      %v1391 = vsel %vm766, %v1389, %v1390
      %v1392 = vrot.slane %v1269, 1
      %v1393 = vsel %vm766, %v1390, %v1392
      %v1394 = vrot.slane %v1270, 1
      %v1395 = vrot.slane %v1271, 1
      %v1396 = vsel %vm766, %v1394, %v1395
      %v1397 = vrot.slane %v1272, 1
      %v1398 = vsel %vm766, %v1395, %v1397
      %v1399 = vrot.slane %v1273, 1
      %v1400 = vrot.slane %v1274, 1
      %v1401 = vsel %vm766, %v1399, %v1400
      %v1402 = vrot.slane %v1275, 1
      %v1403 = vsel %vm766, %v1400, %v1402
      %v1436 = vadd.f32 %v1192, %v1326
      %v1437 = vadd.f32 %v1193, %v1328
      %v1438 = vadd.f32 %v1194, %v1331
      %v1439 = vadd.f32 %v1195, %v1333
      %v1440 = vadd.f32 %v1196, %v1336
      %v1441 = vadd.f32 %v1197, %v1338
      %v1442 = vadd.f32 %v1198, %v1341
      %v1443 = vadd.f32 %v1199, %v1343
      %v1444 = vadd.f32 %v1200, %v1346
      %v1445 = vadd.f32 %v1201, %v1348
      %v1446 = vadd.f32 %v1202, %v1351
      %v1447 = vadd.f32 %v1203, %v1353
      %v1448 = vadd.f32 %v1204, %v1356
      %v1449 = vadd.f32 %v1205, %v1358
      %v1450 = vadd.f32 %v1206, %v1361
      %v1451 = vadd.f32 %v1207, %v1363
      %v1452 = vadd.f32 %v1208, %v1366
      %v1453 = vadd.f32 %v1209, %v1368
      %v1454 = vadd.f32 %v1210, %v1371
      %v1455 = vadd.f32 %v1211, %v1373
      %v1456 = vadd.f32 %v1212, %v1376
      %v1457 = vadd.f32 %v1213, %v1378
      %v1458 = vadd.f32 %v1214, %v1381
      %v1459 = vadd.f32 %v1215, %v1383
      %v1460 = vadd.f32 %v1216, %v1386
      %v1461 = vadd.f32 %v1217, %v1388
      %v1462 = vadd.f32 %v1218, %v1391
      %v1463 = vadd.f32 %v1219, %v1393
      %v1464 = vadd.f32 %v1220, %v1396
      %v1465 = vadd.f32 %v1221, %v1398
      %v1466 = vadd.f32 %v1222, %v1401
      %v1467 = vadd.f32 %v1223, %v1403
      %v1468 = vlaneseq
      %v1469 = vshrl.u32 %v1468, 7
      %v1470 = vsub.s32 5, %v1469
      %v1471 = vrot.slane %v589, %v1470
      %v1472 = vmul.f32 %v538, %v1471
      %v1473 = vmul.f32 %v539, %v1471
      %v1474 = vmul.f32 %v540, %v1471
      %v1475 = vmul.f32 %v541, %v1471
      %v1476 = vmul.f32 %v542, %v1471
      %v1477 = vmul.f32 %v543, %v1471
      %v1478 = vmul.f32 %v544, %v1471
      %v1479 = vmul.f32 %v545, %v1471
      %v1480 = vmul.f32 %v546, %v1471
      %v1481 = vmul.f32 %v547, %v1471
      %v1482 = vmul.f32 %v548, %v1471
      %v1483 = vmul.f32 %v549, %v1471
      %v1484 = vmul.f32 %v550, %v1471
      %v1485 = vmul.f32 %v551, %v1471
      %v1486 = vmul.f32 %v552, %v1471
      %v1487 = vmul.f32 %v553, %v1471
      %v1488 = vmul.f32 %v554, %v1471
      %v1489 = vmul.f32 %v555, %v1471
      %v1490 = vmul.f32 %v556, %v1471
      %v1491 = vmul.f32 %v557, %v1471
      %v1492 = vmul.f32 %v558, %v1471
      %v1493 = vmul.f32 %v559, %v1471
      %v1494 = vmul.f32 %v560, %v1471
      %v1495 = vmul.f32 %v561, %v1471
      %v1496 = vmul.f32 %v562, %v1471
      %v1497 = vmul.f32 %v563, %v1471
      %v1498 = vmul.f32 %v564, %v1471
      %v1499 = vmul.f32 %v565, %v1471
      %v1500 = vmul.f32 %v566, %v1471
      %v1501 = vmul.f32 %v567, %v1471
      %v1502 = vmul.f32 %v568, %v1471
      %v1503 = vmul.f32 %v569, %v1471
      %v1504 = vmul.f32 %v570, %v1471
      %v1505 = vmul.f32 %v571, %v1471
      %v1506 = vmul.f32 %v572, %v1471
      %v1507 = vmul.f32 %v573, %v1471
      %v1508 = vmul.f32 %v574, %v1471
      %v1509 = vmul.f32 %v575, %v1471
      %v1510 = vmul.f32 %v576, %v1471
      %v1511 = vmul.f32 %v577, %v1471
      %v1512 = vmul.f32 %v578, %v1471
      %v1513 = vmul.f32 %v579, %v1471
      %v1514 = vmul.f32 %v580, %v1471
      %v1515 = vmul.f32 %v581, %v1471
      %v1516 = vmul.f32 %v582, %v1471
      %v1517 = vmul.f32 %v583, %v1471
      %v1518 = vmul.f32 %v584, %v1471
      %v1519 = vmul.f32 %v585, %v1471
      %v1568 = vrot.slane %v1472, 2
      %v1569 = vrot.slane %v1473, 2
      %v1570 = vsel %vm1011, %v1568, %v1569
      %v1571 = vrot.slane %v1474, 2
      %v1572 = vsel %vm1011, %v1569, %v1571
      %v1573 = vrot.slane %v1475, 2
      %v1574 = vrot.slane %v1476, 2
      %v1575 = vsel %vm1011, %v1573, %v1574
      %v1576 = vrot.slane %v1477, 2
      %v1577 = vsel %vm1011, %v1574, %v1576
      %v1578 = vrot.slane %v1478, 2
      %v1579 = vrot.slane %v1479, 2
      %v1580 = vsel %vm1011, %v1578, %v1579
      %v1581 = vrot.slane %v1480, 2
      %v1582 = vsel %vm1011, %v1579, %v1581
      %v1583 = vrot.slane %v1481, 2
      %v1584 = vrot.slane %v1482, 2
      %v1585 = vsel %vm1011, %v1583, %v1584
      %v1586 = vrot.slane %v1483, 2
      %v1587 = vsel %vm1011, %v1584, %v1586
      %v1588 = vrot.slane %v1484, 2
      %v1589 = vrot.slane %v1485, 2
      %v1590 = vsel %vm1011, %v1588, %v1589
      %v1591 = vrot.slane %v1486, 2
      %v1592 = vsel %vm1011, %v1589, %v1591
      %v1593 = vrot.slane %v1487, 2
      %v1594 = vrot.slane %v1488, 2
      %v1595 = vsel %vm1011, %v1593, %v1594
      %v1596 = vrot.slane %v1489, 2
      %v1597 = vsel %vm1011, %v1594, %v1596
      %v1598 = vrot.slane %v1490, 2
      %v1599 = vrot.slane %v1491, 2
      %v1600 = vsel %vm1011, %v1598, %v1599
      %v1601 = vrot.slane %v1492, 2
      %v1602 = vsel %vm1011, %v1599, %v1601
      %v1603 = vrot.slane %v1493, 2
      %v1604 = vrot.slane %v1494, 2
      %v1605 = vsel %vm1011, %v1603, %v1604
      %v1606 = vrot.slane %v1495, 2
      %v1607 = vsel %vm1011, %v1604, %v1606
      %v1608 = vrot.slane %v1496, 2
      %v1609 = vrot.slane %v1497, 2
      %v1610 = vsel %vm1011, %v1608, %v1609
      %v1611 = vrot.slane %v1498, 2
      %v1612 = vsel %vm1011, %v1609, %v1611
      %v1613 = vrot.slane %v1499, 2
      %v1614 = vrot.slane %v1500, 2
      %v1615 = vsel %vm1011, %v1613, %v1614
      %v1616 = vrot.slane %v1501, 2
      %v1617 = vsel %vm1011, %v1614, %v1616
      %v1618 = vrot.slane %v1502, 2
      %v1619 = vrot.slane %v1503, 2
      %v1620 = vsel %vm1011, %v1618, %v1619
      %v1621 = vrot.slane %v1504, 2
      %v1622 = vsel %vm1011, %v1619, %v1621
      %v1623 = vrot.slane %v1505, 2
      %v1624 = vrot.slane %v1506, 2
      %v1625 = vsel %vm1011, %v1623, %v1624
      %v1626 = vrot.slane %v1507, 2
      %v1627 = vsel %vm1011, %v1624, %v1626
      %v1628 = vrot.slane %v1508, 2
      %v1629 = vrot.slane %v1509, 2
      %v1630 = vsel %vm1011, %v1628, %v1629
      %v1631 = vrot.slane %v1510, 2
      %v1632 = vsel %vm1011, %v1629, %v1631
      %v1633 = vrot.slane %v1511, 2
      %v1634 = vrot.slane %v1512, 2
      %v1635 = vsel %vm1011, %v1633, %v1634
      %v1636 = vrot.slane %v1513, 2
      %v1637 = vsel %vm1011, %v1634, %v1636
      %v1638 = vrot.slane %v1514, 2
      %v1639 = vrot.slane %v1515, 2
      %v1640 = vsel %vm1011, %v1638, %v1639
      %v1641 = vrot.slane %v1516, 2
      %v1642 = vsel %vm1011, %v1639, %v1641
      %v1643 = vrot.slane %v1517, 2
      %v1644 = vrot.slane %v1518, 2
      %v1645 = vsel %vm1011, %v1643, %v1644
      %v1646 = vrot.slane %v1519, 2
      %v1647 = vsel %vm1011, %v1644, %v1646
      %v1680 = vadd.f32 %v1436, %v1570
      %v1681 = vadd.f32 %v1437, %v1572
      %v1682 = vadd.f32 %v1438, %v1575
      %v1683 = vadd.f32 %v1439, %v1577
      %v1684 = vadd.f32 %v1440, %v1580
      %v1685 = vadd.f32 %v1441, %v1582
      %v1686 = vadd.f32 %v1442, %v1585
      %v1687 = vadd.f32 %v1443, %v1587
      %v1688 = vadd.f32 %v1444, %v1590
      %v1689 = vadd.f32 %v1445, %v1592
      %v1690 = vadd.f32 %v1446, %v1595
      %v1691 = vadd.f32 %v1447, %v1597
      %v1692 = vadd.f32 %v1448, %v1600
      %v1693 = vadd.f32 %v1449, %v1602
      %v1694 = vadd.f32 %v1450, %v1605
      %v1695 = vadd.f32 %v1451, %v1607
      %v1696 = vadd.f32 %v1452, %v1610
      %v1697 = vadd.f32 %v1453, %v1612
      %v1698 = vadd.f32 %v1454, %v1615
      %v1699 = vadd.f32 %v1455, %v1617
      %v1700 = vadd.f32 %v1456, %v1620
      %v1701 = vadd.f32 %v1457, %v1622
      %v1702 = vadd.f32 %v1458, %v1625
      %v1703 = vadd.f32 %v1459, %v1627
      %v1704 = vadd.f32 %v1460, %v1630
      %v1705 = vadd.f32 %v1461, %v1632
      %v1706 = vadd.f32 %v1462, %v1635
      %v1707 = vadd.f32 %v1463, %v1637
      %v1708 = vadd.f32 %v1464, %v1640
      %v1709 = vadd.f32 %v1465, %v1642
      %v1710 = vadd.f32 %v1466, %v1645
      %v1711 = vadd.f32 %v1467, %v1647
      %v1712 = vlaneseq
      %v1713 = vshrl.u32 %v1712, 7
      %v1714 = vsub.s32 6, %v1713
      %v1715 = vrot.slane %v589, %v1714
      %v1716 = vmul.f32 %v541, %v1715
      %v1717 = vmul.f32 %v542, %v1715
      %v1718 = vmul.f32 %v544, %v1715
      %v1719 = vmul.f32 %v545, %v1715
      %v1720 = vmul.f32 %v547, %v1715
      %v1721 = vmul.f32 %v548, %v1715
      %v1722 = vmul.f32 %v550, %v1715
      %v1723 = vmul.f32 %v551, %v1715
      %v1724 = vmul.f32 %v553, %v1715
      %v1725 = vmul.f32 %v554, %v1715
      %v1726 = vmul.f32 %v556, %v1715
      %v1727 = vmul.f32 %v557, %v1715
      %v1728 = vmul.f32 %v559, %v1715
      %v1729 = vmul.f32 %v560, %v1715
      %v1730 = vmul.f32 %v562, %v1715
      %v1731 = vmul.f32 %v563, %v1715
      %v1732 = vmul.f32 %v565, %v1715
      %v1733 = vmul.f32 %v566, %v1715
      %v1734 = vmul.f32 %v568, %v1715
      %v1735 = vmul.f32 %v569, %v1715
      %v1736 = vmul.f32 %v571, %v1715
      %v1737 = vmul.f32 %v572, %v1715
      %v1738 = vmul.f32 %v574, %v1715
      %v1739 = vmul.f32 %v575, %v1715
      %v1740 = vmul.f32 %v577, %v1715
      %v1741 = vmul.f32 %v578, %v1715
      %v1742 = vmul.f32 %v580, %v1715
      %v1743 = vmul.f32 %v581, %v1715
      %v1744 = vmul.f32 %v583, %v1715
      %v1745 = vmul.f32 %v584, %v1715
      %v1746 = vmul.f32 %v586, %v1715
      %v1747 = vmul.f32 %v587, %v1715
      %v1748 = vadd.f32 %v1680, %v1716
      %v1749 = vadd.f32 %v1681, %v1717
      %v1750 = vadd.f32 %v1682, %v1718
      %v1751 = vadd.f32 %v1683, %v1719
      %v1752 = vadd.f32 %v1684, %v1720
      %v1753 = vadd.f32 %v1685, %v1721
      %v1754 = vadd.f32 %v1686, %v1722
      %v1755 = vadd.f32 %v1687, %v1723
      %v1756 = vadd.f32 %v1688, %v1724
      %v1757 = vadd.f32 %v1689, %v1725
      %v1758 = vadd.f32 %v1690, %v1726
      %v1759 = vadd.f32 %v1691, %v1727
      %v1760 = vadd.f32 %v1692, %v1728
      %v1761 = vadd.f32 %v1693, %v1729
      %v1762 = vadd.f32 %v1694, %v1730
      %v1763 = vadd.f32 %v1695, %v1731
      %v1764 = vadd.f32 %v1696, %v1732
      %v1765 = vadd.f32 %v1697, %v1733
      %v1766 = vadd.f32 %v1698, %v1734
      %v1767 = vadd.f32 %v1699, %v1735
      %v1768 = vadd.f32 %v1700, %v1736
      %v1769 = vadd.f32 %v1701, %v1737
      %v1770 = vadd.f32 %v1702, %v1738
      %v1771 = vadd.f32 %v1703, %v1739
      %v1772 = vadd.f32 %v1704, %v1740
      %v1773 = vadd.f32 %v1705, %v1741
      %v1774 = vadd.f32 %v1706, %v1742
      %v1775 = vadd.f32 %v1707, %v1743
      %v1776 = vadd.f32 %v1708, %v1744
      %v1777 = vadd.f32 %v1709, %v1745
      %v1778 = vadd.f32 %v1710, %v1746
      %v1779 = vadd.f32 %v1711, %v1747
      %v1780 = vlaneseq
      %v1781 = vshrl.u32 %v1780, 7
      %v1782 = vsub.s32 7, %v1781
      %v1783 = vrot.slane %v589, %v1782
      %v1784 = vmul.f32 %v541, %v1783
      %v1785 = vmul.f32 %v542, %v1783
      %v1786 = vmul.f32 %v543, %v1783
      %v1787 = vmul.f32 %v544, %v1783
      %v1788 = vmul.f32 %v545, %v1783
      %v1789 = vmul.f32 %v546, %v1783
      %v1790 = vmul.f32 %v547, %v1783
      %v1791 = vmul.f32 %v548, %v1783
      %v1792 = vmul.f32 %v549, %v1783
      %v1793 = vmul.f32 %v550, %v1783
      %v1794 = vmul.f32 %v551, %v1783
      %v1795 = vmul.f32 %v552, %v1783
      %v1796 = vmul.f32 %v553, %v1783
      %v1797 = vmul.f32 %v554, %v1783
      %v1798 = vmul.f32 %v555, %v1783
      %v1799 = vmul.f32 %v556, %v1783
      %v1800 = vmul.f32 %v557, %v1783
      %v1801 = vmul.f32 %v558, %v1783
      %v1802 = vmul.f32 %v559, %v1783
      %v1803 = vmul.f32 %v560, %v1783
      %v1804 = vmul.f32 %v561, %v1783
      %v1805 = vmul.f32 %v562, %v1783
      %v1806 = vmul.f32 %v563, %v1783
      %v1807 = vmul.f32 %v564, %v1783
      %v1808 = vmul.f32 %v565, %v1783
      %v1809 = vmul.f32 %v566, %v1783
      %v1810 = vmul.f32 %v567, %v1783
      %v1811 = vmul.f32 %v568, %v1783
      %v1812 = vmul.f32 %v569, %v1783
      %v1813 = vmul.f32 %v570, %v1783
      %v1814 = vmul.f32 %v571, %v1783
      %v1815 = vmul.f32 %v572, %v1783
      %v1816 = vmul.f32 %v573, %v1783
      %v1817 = vmul.f32 %v574, %v1783
      %v1818 = vmul.f32 %v575, %v1783
      %v1819 = vmul.f32 %v576, %v1783
      %v1820 = vmul.f32 %v577, %v1783
      %v1821 = vmul.f32 %v578, %v1783
      %v1822 = vmul.f32 %v579, %v1783
      %v1823 = vmul.f32 %v580, %v1783
      %v1824 = vmul.f32 %v581, %v1783
      %v1825 = vmul.f32 %v582, %v1783
      %v1826 = vmul.f32 %v583, %v1783
      %v1827 = vmul.f32 %v584, %v1783
      %v1828 = vmul.f32 %v585, %v1783
      %v1829 = vmul.f32 %v586, %v1783
      %v1830 = vmul.f32 %v587, %v1783
      %v1831 = vmul.f32 %v588, %v1783
      %v1880 = vrot.slane %v1784, 1
      %v1881 = vrot.slane %v1785, 1
      %v1882 = vsel %vm766, %v1880, %v1881
      %v1883 = vrot.slane %v1786, 1
      %v1884 = vsel %vm766, %v1881, %v1883
      %v1885 = vrot.slane %v1787, 1
      %v1886 = vrot.slane %v1788, 1
      %v1887 = vsel %vm766, %v1885, %v1886
      %v1888 = vrot.slane %v1789, 1
      %v1889 = vsel %vm766, %v1886, %v1888
      %v1890 = vrot.slane %v1790, 1
      %v1891 = vrot.slane %v1791, 1
      %v1892 = vsel %vm766, %v1890, %v1891
      %v1893 = vrot.slane %v1792, 1
      %v1894 = vsel %vm766, %v1891, %v1893
      %v1895 = vrot.slane %v1793, 1
      %v1896 = vrot.slane %v1794, 1
      %v1897 = vsel %vm766, %v1895, %v1896
      %v1898 = vrot.slane %v1795, 1
      %v1899 = vsel %vm766, %v1896, %v1898
      %v1900 = vrot.slane %v1796, 1
      %v1901 = vrot.slane %v1797, 1
      %v1902 = vsel %vm766, %v1900, %v1901
      %v1903 = vrot.slane %v1798, 1
      %v1904 = vsel %vm766, %v1901, %v1903
      %v1905 = vrot.slane %v1799, 1
      %v1906 = vrot.slane %v1800, 1
      %v1907 = vsel %vm766, %v1905, %v1906
      %v1908 = vrot.slane %v1801, 1
      %v1909 = vsel %vm766, %v1906, %v1908
      %v1910 = vrot.slane %v1802, 1
      %v1911 = vrot.slane %v1803, 1
      %v1912 = vsel %vm766, %v1910, %v1911
      %v1913 = vrot.slane %v1804, 1
      %v1914 = vsel %vm766, %v1911, %v1913
      %v1915 = vrot.slane %v1805, 1
      %v1916 = vrot.slane %v1806, 1
      %v1917 = vsel %vm766, %v1915, %v1916
      %v1918 = vrot.slane %v1807, 1
      %v1919 = vsel %vm766, %v1916, %v1918
      %v1920 = vrot.slane %v1808, 1
      %v1921 = vrot.slane %v1809, 1
      %v1922 = vsel %vm766, %v1920, %v1921
      %v1923 = vrot.slane %v1810, 1
      %v1924 = vsel %vm766, %v1921, %v1923
      %v1925 = vrot.slane %v1811, 1
      %v1926 = vrot.slane %v1812, 1
      %v1927 = vsel %vm766, %v1925, %v1926
      %v1928 = vrot.slane %v1813, 1
      %v1929 = vsel %vm766, %v1926, %v1928
      %v1930 = vrot.slane %v1814, 1
      %v1931 = vrot.slane %v1815, 1
      %v1932 = vsel %vm766, %v1930, %v1931
      %v1933 = vrot.slane %v1816, 1
      %v1934 = vsel %vm766, %v1931, %v1933
      %v1935 = vrot.slane %v1817, 1
      %v1936 = vrot.slane %v1818, 1
      %v1937 = vsel %vm766, %v1935, %v1936
      %v1938 = vrot.slane %v1819, 1
      %v1939 = vsel %vm766, %v1936, %v1938
      %v1940 = vrot.slane %v1820, 1
      %v1941 = vrot.slane %v1821, 1
      %v1942 = vsel %vm766, %v1940, %v1941
      %v1943 = vrot.slane %v1822, 1
      %v1944 = vsel %vm766, %v1941, %v1943
      %v1945 = vrot.slane %v1823, 1
      %v1946 = vrot.slane %v1824, 1
      %v1947 = vsel %vm766, %v1945, %v1946
      %v1948 = vrot.slane %v1825, 1
      %v1949 = vsel %vm766, %v1946, %v1948
      %v1950 = vrot.slane %v1826, 1
      %v1951 = vrot.slane %v1827, 1
      %v1952 = vsel %vm766, %v1950, %v1951
      %v1953 = vrot.slane %v1828, 1
      %v1954 = vsel %vm766, %v1951, %v1953
      %v1955 = vrot.slane %v1829, 1
      %v1956 = vrot.slane %v1830, 1
      %v1957 = vsel %vm766, %v1955, %v1956
      %v1958 = vrot.slane %v1831, 1
      %v1959 = vsel %vm766, %v1956, %v1958
      %v1992 = vadd.f32 %v1748, %v1882
      %v1993 = vadd.f32 %v1749, %v1884
      %v1994 = vadd.f32 %v1750, %v1887
      %v1995 = vadd.f32 %v1751, %v1889
      %v1996 = vadd.f32 %v1752, %v1892
      %v1997 = vadd.f32 %v1753, %v1894
      %v1998 = vadd.f32 %v1754, %v1897
      %v1999 = vadd.f32 %v1755, %v1899
      %v2000 = vadd.f32 %v1756, %v1902
      %v2001 = vadd.f32 %v1757, %v1904
      %v2002 = vadd.f32 %v1758, %v1907
      %v2003 = vadd.f32 %v1759, %v1909
      %v2004 = vadd.f32 %v1760, %v1912
      %v2005 = vadd.f32 %v1761, %v1914
      %v2006 = vadd.f32 %v1762, %v1917
      %v2007 = vadd.f32 %v1763, %v1919
      %v2008 = vadd.f32 %v1764, %v1922
      %v2009 = vadd.f32 %v1765, %v1924
      %v2010 = vadd.f32 %v1766, %v1927
      %v2011 = vadd.f32 %v1767, %v1929
      %v2012 = vadd.f32 %v1768, %v1932
      %v2013 = vadd.f32 %v1769, %v1934
      %v2014 = vadd.f32 %v1770, %v1937
      %v2015 = vadd.f32 %v1771, %v1939
      %v2016 = vadd.f32 %v1772, %v1942
      %v2017 = vadd.f32 %v1773, %v1944
      %v2018 = vadd.f32 %v1774, %v1947
      %v2019 = vadd.f32 %v1775, %v1949
      %v2020 = vadd.f32 %v1776, %v1952
      %v2021 = vadd.f32 %v1777, %v1954
      %v2022 = vadd.f32 %v1778, %v1957
      %v2023 = vadd.f32 %v1779, %v1959
      %v2024 = vlaneseq
      %v2025 = vshrl.u32 %v2024, 7
      %v2026 = vsub.s32 0, %v2025
      %v2027 = vrot.slane %v590, %v2026
      %v2028 = vmul.f32 %v541, %v2027
      %v2029 = vmul.f32 %v542, %v2027
      %v2030 = vmul.f32 %v543, %v2027
      %v2031 = vmul.f32 %v544, %v2027
      %v2032 = vmul.f32 %v545, %v2027
      %v2033 = vmul.f32 %v546, %v2027
      %v2034 = vmul.f32 %v547, %v2027
      %v2035 = vmul.f32 %v548, %v2027
      %v2036 = vmul.f32 %v549, %v2027
      %v2037 = vmul.f32 %v550, %v2027
      %v2038 = vmul.f32 %v551, %v2027
      %v2039 = vmul.f32 %v552, %v2027
      %v2040 = vmul.f32 %v553, %v2027
      %v2041 = vmul.f32 %v554, %v2027
      %v2042 = vmul.f32 %v555, %v2027
      %v2043 = vmul.f32 %v556, %v2027
      %v2044 = vmul.f32 %v557, %v2027
      %v2045 = vmul.f32 %v558, %v2027
      %v2046 = vmul.f32 %v559, %v2027
      %v2047 = vmul.f32 %v560, %v2027
      %v2048 = vmul.f32 %v561, %v2027
      %v2049 = vmul.f32 %v562, %v2027
      %v2050 = vmul.f32 %v563, %v2027
      %v2051 = vmul.f32 %v564, %v2027
      %v2052 = vmul.f32 %v565, %v2027
      %v2053 = vmul.f32 %v566, %v2027
      %v2054 = vmul.f32 %v567, %v2027
      %v2055 = vmul.f32 %v568, %v2027
      %v2056 = vmul.f32 %v569, %v2027
      %v2057 = vmul.f32 %v570, %v2027
      %v2058 = vmul.f32 %v571, %v2027
      %v2059 = vmul.f32 %v572, %v2027
      %v2060 = vmul.f32 %v573, %v2027
      %v2061 = vmul.f32 %v574, %v2027
      %v2062 = vmul.f32 %v575, %v2027
      %v2063 = vmul.f32 %v576, %v2027
      %v2064 = vmul.f32 %v577, %v2027
      %v2065 = vmul.f32 %v578, %v2027
      %v2066 = vmul.f32 %v579, %v2027
      %v2067 = vmul.f32 %v580, %v2027
      %v2068 = vmul.f32 %v581, %v2027
      %v2069 = vmul.f32 %v582, %v2027
      %v2070 = vmul.f32 %v583, %v2027
      %v2071 = vmul.f32 %v584, %v2027
      %v2072 = vmul.f32 %v585, %v2027
      %v2073 = vmul.f32 %v586, %v2027
      %v2074 = vmul.f32 %v587, %v2027
      %v2075 = vmul.f32 %v588, %v2027
      %v2124 = vrot.slane %v2028, 2
      %v2125 = vrot.slane %v2029, 2
      %v2126 = vsel %vm1011, %v2124, %v2125
      %v2127 = vrot.slane %v2030, 2
      %v2128 = vsel %vm1011, %v2125, %v2127
      %v2129 = vrot.slane %v2031, 2
      %v2130 = vrot.slane %v2032, 2
      %v2131 = vsel %vm1011, %v2129, %v2130
      %v2132 = vrot.slane %v2033, 2
      %v2133 = vsel %vm1011, %v2130, %v2132
      %v2134 = vrot.slane %v2034, 2
      %v2135 = vrot.slane %v2035, 2
      %v2136 = vsel %vm1011, %v2134, %v2135
      %v2137 = vrot.slane %v2036, 2
      %v2138 = vsel %vm1011, %v2135, %v2137
      %v2139 = vrot.slane %v2037, 2
      %v2140 = vrot.slane %v2038, 2
      %v2141 = vsel %vm1011, %v2139, %v2140
      %v2142 = vrot.slane %v2039, 2
      %v2143 = vsel %vm1011, %v2140, %v2142
      %v2144 = vrot.slane %v2040, 2
      %v2145 = vrot.slane %v2041, 2
      %v2146 = vsel %vm1011, %v2144, %v2145
      %v2147 = vrot.slane %v2042, 2
      %v2148 = vsel %vm1011, %v2145, %v2147
      %v2149 = vrot.slane %v2043, 2
      %v2150 = vrot.slane %v2044, 2
      %v2151 = vsel %vm1011, %v2149, %v2150
      %v2152 = vrot.slane %v2045, 2
      %v2153 = vsel %vm1011, %v2150, %v2152
      %v2154 = vrot.slane %v2046, 2
      %v2155 = vrot.slane %v2047, 2
      %v2156 = vsel %vm1011, %v2154, %v2155
      %v2157 = vrot.slane %v2048, 2
      %v2158 = vsel %vm1011, %v2155, %v2157
      %v2159 = vrot.slane %v2049, 2
      %v2160 = vrot.slane %v2050, 2
      %v2161 = vsel %vm1011, %v2159, %v2160
      %v2162 = vrot.slane %v2051, 2
      %v2163 = vsel %vm1011, %v2160, %v2162
      %v2164 = vrot.slane %v2052, 2
      %v2165 = vrot.slane %v2053, 2
      %v2166 = vsel %vm1011, %v2164, %v2165
      %v2167 = vrot.slane %v2054, 2
      %v2168 = vsel %vm1011, %v2165, %v2167
      %v2169 = vrot.slane %v2055, 2
      %v2170 = vrot.slane %v2056, 2
      %v2171 = vsel %vm1011, %v2169, %v2170
      %v2172 = vrot.slane %v2057, 2
      %v2173 = vsel %vm1011, %v2170, %v2172
      %v2174 = vrot.slane %v2058, 2
      %v2175 = vrot.slane %v2059, 2
      %v2176 = vsel %vm1011, %v2174, %v2175
      %v2177 = vrot.slane %v2060, 2
      %v2178 = vsel %vm1011, %v2175, %v2177
      %v2179 = vrot.slane %v2061, 2
      %v2180 = vrot.slane %v2062, 2
      %v2181 = vsel %vm1011, %v2179, %v2180
      %v2182 = vrot.slane %v2063, 2
      %v2183 = vsel %vm1011, %v2180, %v2182
      %v2184 = vrot.slane %v2064, 2
      %v2185 = vrot.slane %v2065, 2
      %v2186 = vsel %vm1011, %v2184, %v2185
      %v2187 = vrot.slane %v2066, 2
      %v2188 = vsel %vm1011, %v2185, %v2187
      %v2189 = vrot.slane %v2067, 2
      %v2190 = vrot.slane %v2068, 2
      %v2191 = vsel %vm1011, %v2189, %v2190
      %v2192 = vrot.slane %v2069, 2
      %v2193 = vsel %vm1011, %v2190, %v2192
      %v2194 = vrot.slane %v2070, 2
      %v2195 = vrot.slane %v2071, 2
      %v2196 = vsel %vm1011, %v2194, %v2195
      %v2197 = vrot.slane %v2072, 2
      %v2198 = vsel %vm1011, %v2195, %v2197
      %v2199 = vrot.slane %v2073, 2
      %v2200 = vrot.slane %v2074, 2
      %v2201 = vsel %vm1011, %v2199, %v2200
      %v2202 = vrot.slane %v2075, 2
      %v2203 = vsel %vm1011, %v2200, %v2202
      %v2236 = vadd.f32 %v1992, %v2126
      %v2237 = vadd.f32 %v1993, %v2128
      %v2238 = vadd.f32 %v1994, %v2131
      %v2239 = vadd.f32 %v1995, %v2133
      %v2240 = vadd.f32 %v1996, %v2136
      %v2241 = vadd.f32 %v1997, %v2138
      %v2242 = vadd.f32 %v1998, %v2141
      %v2243 = vadd.f32 %v1999, %v2143
      %v2244 = vadd.f32 %v2000, %v2146
      %v2245 = vadd.f32 %v2001, %v2148
      %v2246 = vadd.f32 %v2002, %v2151
      %v2247 = vadd.f32 %v2003, %v2153
      %v2248 = vadd.f32 %v2004, %v2156
      %v2249 = vadd.f32 %v2005, %v2158
      %v2250 = vadd.f32 %v2006, %v2161
      %v2251 = vadd.f32 %v2007, %v2163
      %v2252 = vadd.f32 %v2008, %v2166
      %v2253 = vadd.f32 %v2009, %v2168
      %v2254 = vadd.f32 %v2010, %v2171
      %v2255 = vadd.f32 %v2011, %v2173
      %v2256 = vadd.f32 %v2012, %v2176
      %v2257 = vadd.f32 %v2013, %v2178
      %v2258 = vadd.f32 %v2014, %v2181
      %v2259 = vadd.f32 %v2015, %v2183
      %v2260 = vadd.f32 %v2016, %v2186
      %v2261 = vadd.f32 %v2017, %v2188
      %v2262 = vadd.f32 %v2018, %v2191
      %v2263 = vadd.f32 %v2019, %v2193
      %v2264 = vadd.f32 %v2020, %v2196
      %v2265 = vadd.f32 %v2021, %v2198
      %v2266 = vadd.f32 %v2022, %v2201
      %v2267 = vadd.f32 %v2023, %v2203
      %v2268 = vmax.f32 %v2236, 0.0
      %v2269 = vmax.f32 %v2237, 0.0
      %v2270 = vmax.f32 %v2238, 0.0
      %v2271 = vmax.f32 %v2239, 0.0
      %v2272 = vmax.f32 %v2240, 0.0
      %v2273 = vmax.f32 %v2241, 0.0
      %v2274 = vmax.f32 %v2242, 0.0
      %v2275 = vmax.f32 %v2243, 0.0
      %v2276 = vmax.f32 %v2244, 0.0
      %v2277 = vmax.f32 %v2245, 0.0
      %v2278 = vmax.f32 %v2246, 0.0
      %v2279 = vmax.f32 %v2247, 0.0
      %v2280 = vmax.f32 %v2248, 0.0
      %v2281 = vmax.f32 %v2249, 0.0
      %v2282 = vmax.f32 %v2250, 0.0
      %v2283 = vmax.f32 %v2251, 0.0
      %v2284 = vmax.f32 %v2252, 0.0
      %v2285 = vmax.f32 %v2253, 0.0
      %v2286 = vmax.f32 %v2254, 0.0
      %v2287 = vmax.f32 %v2255, 0.0
      %v2288 = vmax.f32 %v2256, 0.0
      %v2289 = vmax.f32 %v2257, 0.0
      %v2290 = vmax.f32 %v2258, 0.0
      %v2291 = vmax.f32 %v2259, 0.0
      %v2292 = vmax.f32 %v2260, 0.0
      %v2293 = vmax.f32 %v2261, 0.0
      %v2294 = vmax.f32 %v2262, 0.0
      %v2295 = vmax.f32 %v2263, 0.0
      %v2296 = vmax.f32 %v2264, 0.0
      %v2297 = vmax.f32 %v2265, 0.0
      %v2298 = vmax.f32 %v2266, 0.0
      %v2299 = vmax.f32 %v2267, 0.0
      %v2300 = vld [vmem:[%s3] sm:$0xff]
      %v2301 = vld [vmem:[%s4] sm:$0x1]
      %v2303 = vlaneseq
      %v2304 = vshrl.u32 %v2303, 7
      %v2305 = vsub.s32 0, %v2304
      %v2306 = vrot.slane %v2301, %v2305
      %v2309 = vsel %vm414, %v2268, 0
      %v2312 = vsel %vm414, %v2269, 0
      %v2315 = vsel %vm414, %v2270, 0
      %v2318 = vsel %vm414, %v2271, 0
      %v2321 = vsel %vm414, %v2272, 0
      %v2324 = vsel %vm414, %v2273, 0
      %v2327 = vsel %vm414, %v2274, 0
      %v2330 = vsel %vm414, %v2275, 0
      %v2333 = vsel %vm414, %v2276, 0
      %v2336 = vsel %vm414, %v2277, 0
      %v2339 = vsel %vm414, %v2278, 0
      %v2342 = vsel %vm414, %v2279, 0
      %v2345 = vsel %vm414, %v2280, 0
      %v2348 = vsel %vm414, %v2281, 0
      %v2351 = vsel %vm414, %v2282, 0
      %v2354 = vsel %vm414, %v2283, 0
      %v2357 = vsel %vm414, %v2284, 0
      %v2360 = vsel %vm414, %v2285, 0
      %v2363 = vsel %vm414, %v2286, 0
      %v2366 = vsel %vm414, %v2287, 0
      %v2369 = vsel %vm414, %v2288, 0
      %v2372 = vsel %vm414, %v2289, 0
      %v2375 = vsel %vm414, %v2290, 0
      %v2378 = vsel %vm414, %v2291, 0
      %v2381 = vsel %vm414, %v2292, 0
      %v2384 = vsel %vm414, %v2293, 0
      %v2387 = vsel %vm414, %v2294, 0
      %v2390 = vsel %vm414, %v2295, 0
      %v2393 = vsel %vm414, %v2296, 0
      %v2396 = vsel %vm414, %v2297, 0
      %v2399 = vsel %vm414, %v2298, 0
      %v2402 = vsel %vm414, %v2299, 0
      %2404 = vmatprep.subr.mxu0 0.0
      %2405 = vmatpush1.msra.mxu0 %v2300
      %2406 = vmatprep.subr.mxu0 0.0
      %2407 = vmatpush1.msra.mxu0 0.0
      %2408 = vmatprep.subr.mxu0 0.0
      %2409 = vmatpush1.msra.mxu0 0.0
      %2410 = vmatprep.subr.mxu0 0.0
      %2411 = vmatpush1.msra.mxu0 0.0
      %2412 = vmatprep.subr.mxu0 0.0
      %2413 = vmatpush1.msra.mxu0 0.0
      %2414 = vmatprep.subr.mxu0 0.0
      %2415 = vmatpush1.msra.mxu0 0.0
      %2416 = vmatprep.subr.mxu0 0.0
      %2417 = vmatpush1.msra.mxu0 0.0
      %2418 = vmatprep.subr.mxu0 0.0
      %2419 = vmatpush1.msra.mxu0 0.0
      %2420 = vmatprep.subr.mxu0 0.0
      %2421 = vmatpush1.msra.mxu0 0.0
      %2422 = vmatprep.subr.mxu0 0.0
      %2423 = vmatpush1.msra.mxu0 0.0
      %2424 = vmatprep.subr.mxu0 0.0
      %2425 = vmatpush1.msra.mxu0 0.0
      %2426 = vmatprep.subr.mxu0 0.0
      %2427 = vmatpush1.msra.mxu0 0.0
      %2428 = vmatprep.subr.mxu0 0.0
      %2429 = vmatpush1.msra.mxu0 0.0
      %2430 = vmatprep.subr.mxu0 0.0
      %2431 = vmatpush1.msra.mxu0 0.0
      %2432 = vmatprep.subr.mxu0 0.0
      %2433 = vmatpush1.msra.mxu0 0.0
      %2434 = vmatprep.subr.mxu0 0.0
      %2435 = vmatpush1.msra.mxu0 0.0
      %2436 = vmatprep.subr.mxu0 0.0
      %2437 = vmatpush1.msra.mxu0 0.0
      %2438 = vmatprep.subr.mxu0 0.0
      %2439 = vmatpush1.msra.mxu0 0.0
      %2440 = vmatprep.subr.mxu0 0.0
      %2441 = vmatpush1.msra.mxu0 0.0
      %2442 = vmatprep.subr.mxu0 0.0
      %2443 = vmatpush1.msra.mxu0 0.0
      %2444 = vmatprep.subr.mxu0 0.0
      %2445 = vmatpush1.msra.mxu0 0.0
      %2446 = vmatprep.subr.mxu0 0.0
      %2447 = vmatpush1.msra.mxu0 0.0
      %2448 = vmatprep.subr.mxu0 0.0
      %2449 = vmatpush1.msra.mxu0 0.0
      %2450 = vmatprep.subr.mxu0 0.0
      %2451 = vmatpush1.msra.mxu0 0.0
      %2452 = vmatprep.subr.mxu0 0.0
      %2453 = vmatpush1.msra.mxu0 0.0
      %2454 = vmatprep.subr.mxu0 0.0
      %2455 = vmatpush1.msra.mxu0 0.0
      %2456 = vmatprep.subr.mxu0 0.0
      %2457 = vmatpush1.msra.mxu0 0.0
      %2458 = vmatprep.subr.mxu0 0.0
      %2459 = vmatpush1.msra.mxu0 0.0
      %2460 = vmatprep.subr.mxu0 0.0
      %2461 = vmatpush1.msra.mxu0 0.0
      %2462 = vmatprep.subr.mxu0 0.0
      %2463 = vmatpush1.msra.mxu0 0.0
      %2464 = vmatprep.subr.mxu0 0.0
      %2465 = vmatpush1.msra.mxu0 0.0
      %2466 = vmatprep.subr.mxu0 0.0
      %2467 = vmatpush1.msra.mxu0 0.0
      %2468 = vmatprep.mubr.f32.mxu0 0.0
      %2469 = vmatmul.mubr.f32.gmra.mrb[0].mxu0 %v2309
      %v2470 = vpop.f32.mrb[0].mxu0
      %v2471 = vadd.f32 %v2306, %v2470
      %v2472 = vpop.f32.mrb[0].mxu0
      %2473 = vmatprep.mubr.f32.mxu0 0.0
      %2474 = vmatmul.mubr.f32.gmra.mrb[0].mxu0 %v2312
      %v2475 = vpop.f32.mrb[0].mxu0
      %v2476 = vadd.f32 %v2306, %v2475
      %v2477 = vpop.f32.mrb[0].mxu0
      %2478 = vmatprep.mubr.f32.mxu0 0.0
      %2479 = vmatmul.mubr.f32.gmra.mrb[0].mxu0 %v2315
      %v2480 = vpop.f32.mrb[0].mxu0
      %v2481 = vadd.f32 %v2306, %v2480
      %v2482 = vpop.f32.mrb[0].mxu0
      %2483 = vmatprep.mubr.f32.mxu0 0.0
      %2484 = vmatmul.mubr.f32.gmra.mrb[0].mxu0 %v2318
      %v2485 = vpop.f32.mrb[0].mxu0
      %v2486 = vadd.f32 %v2306, %v2485
      %v2487 = vpop.f32.mrb[0].mxu0
      %2488 = vmatprep.mubr.f32.mxu0 0.0
      %2489 = vmatmul.mubr.f32.gmra.mrb[0].mxu0 %v2321
      %v2490 = vpop.f32.mrb[0].mxu0
      %v2491 = vadd.f32 %v2306, %v2490
      %v2492 = vpop.f32.mrb[0].mxu0
      %2493 = vmatprep.mubr.f32.mxu0 0.0
      %2494 = vmatmul.mubr.f32.gmra.mrb[0].mxu0 %v2324
      %v2495 = vpop.f32.mrb[0].mxu0
      %v2496 = vadd.f32 %v2306, %v2495
      %v2497 = vpop.f32.mrb[0].mxu0
      %2498 = vmatprep.mubr.f32.mxu0 0.0
      %2499 = vmatmul.mubr.f32.gmra.mrb[0].mxu0 %v2327
      %v2500 = vpop.f32.mrb[0].mxu0
      %v2501 = vadd.f32 %v2306, %v2500
      %v2502 = vpop.f32.mrb[0].mxu0
      %2503 = vmatprep.mubr.f32.mxu0 0.0
      %2504 = vmatmul.mubr.f32.gmra.mrb[0].mxu0 %v2330
      %v2505 = vpop.f32.mrb[0].mxu0
      %v2506 = vadd.f32 %v2306, %v2505
      %v2507 = vpop.f32.mrb[0].mxu0
      %2508 = vmatprep.mubr.f32.mxu0 0.0
      %2509 = vmatmul.mubr.f32.gmra.mrb[0].mxu0 %v2333
      %v2510 = vpop.f32.mrb[0].mxu0
      %v2511 = vadd.f32 %v2306, %v2510
      %v2512 = vpop.f32.mrb[0].mxu0
      %2513 = vmatprep.mubr.f32.mxu0 0.0
      %2514 = vmatmul.mubr.f32.gmra.mrb[0].mxu0 %v2336
      %v2515 = vpop.f32.mrb[0].mxu0
      %v2516 = vadd.f32 %v2306, %v2515
      %v2517 = vpop.f32.mrb[0].mxu0
      %2518 = vmatprep.mubr.f32.mxu0 0.0
      %2519 = vmatmul.mubr.f32.gmra.mrb[0].mxu0 %v2339
      %v2520 = vpop.f32.mrb[0].mxu0
      %v2521 = vadd.f32 %v2306, %v2520
      %v2522 = vpop.f32.mrb[0].mxu0
      %2523 = vmatprep.mubr.f32.mxu0 0.0
      %2524 = vmatmul.mubr.f32.gmra.mrb[0].mxu0 %v2342
      %v2525 = vpop.f32.mrb[0].mxu0
      %v2526 = vadd.f32 %v2306, %v2525
      %v2527 = vpop.f32.mrb[0].mxu0
      %2528 = vmatprep.mubr.f32.mxu0 0.0
      %2529 = vmatmul.mubr.f32.gmra.mrb[0].mxu0 %v2345
      %v2530 = vpop.f32.mrb[0].mxu0
      %v2531 = vadd.f32 %v2306, %v2530
      %v2532 = vpop.f32.mrb[0].mxu0
      %2533 = vmatprep.mubr.f32.mxu0 0.0
      %2534 = vmatmul.mubr.f32.gmra.mrb[0].mxu0 %v2348
      %v2535 = vpop.f32.mrb[0].mxu0
      %v2536 = vadd.f32 %v2306, %v2535
      %v2537 = vpop.f32.mrb[0].mxu0
      %2538 = vmatprep.mubr.f32.mxu0 0.0
      %2539 = vmatmul.mubr.f32.gmra.mrb[0].mxu0 %v2351
      %v2540 = vpop.f32.mrb[0].mxu0
      %v2541 = vadd.f32 %v2306, %v2540
      %v2542 = vpop.f32.mrb[0].mxu0
      %2543 = vmatprep.mubr.f32.mxu0 0.0
      %2544 = vmatmul.mubr.f32.gmra.mrb[0].mxu0 %v2354
      %v2545 = vpop.f32.mrb[0].mxu0
      %v2546 = vadd.f32 %v2306, %v2545
      %v2547 = vpop.f32.mrb[0].mxu0
      %2548 = vmatprep.mubr.f32.mxu0 0.0
      %2549 = vmatmul.mubr.f32.gmra.mrb[0].mxu0 %v2357
      %v2550 = vpop.f32.mrb[0].mxu0
      %v2551 = vadd.f32 %v2306, %v2550
      %v2552 = vpop.f32.mrb[0].mxu0
      %2553 = vmatprep.mubr.f32.mxu0 0.0
      %2554 = vmatmul.mubr.f32.gmra.mrb[0].mxu0 %v2360
      %v2555 = vpop.f32.mrb[0].mxu0
      %v2556 = vadd.f32 %v2306, %v2555
      %v2557 = vpop.f32.mrb[0].mxu0
      %2558 = vmatprep.mubr.f32.mxu0 0.0
      %2559 = vmatmul.mubr.f32.gmra.mrb[0].mxu0 %v2363
      %v2560 = vpop.f32.mrb[0].mxu0
      %v2561 = vadd.f32 %v2306, %v2560
      %v2562 = vpop.f32.mrb[0].mxu0
      %2563 = vmatprep.mubr.f32.mxu0 0.0
      %2564 = vmatmul.mubr.f32.gmra.mrb[0].mxu0 %v2366
      %v2565 = vpop.f32.mrb[0].mxu0
      %v2566 = vadd.f32 %v2306, %v2565
      %v2567 = vpop.f32.mrb[0].mxu0
      %2568 = vmatprep.mubr.f32.mxu0 0.0
      %2569 = vmatmul.mubr.f32.gmra.mrb[0].mxu0 %v2369
      %v2570 = vpop.f32.mrb[0].mxu0
      %v2571 = vadd.f32 %v2306, %v2570
      %v2572 = vpop.f32.mrb[0].mxu0
      %2573 = vmatprep.mubr.f32.mxu0 0.0
      %2574 = vmatmul.mubr.f32.gmra.mrb[0].mxu0 %v2372
      %v2575 = vpop.f32.mrb[0].mxu0
      %v2576 = vadd.f32 %v2306, %v2575
      %v2577 = vpop.f32.mrb[0].mxu0
      %2578 = vmatprep.mubr.f32.mxu0 0.0
      %2579 = vmatmul.mubr.f32.gmra.mrb[0].mxu0 %v2375
      %v2580 = vpop.f32.mrb[0].mxu0
      %v2581 = vadd.f32 %v2306, %v2580
      %v2582 = vpop.f32.mrb[0].mxu0
      %2583 = vmatprep.mubr.f32.mxu0 0.0
      %2584 = vmatmul.mubr.f32.gmra.mrb[0].mxu0 %v2378
      %v2585 = vpop.f32.mrb[0].mxu0
      %v2586 = vadd.f32 %v2306, %v2585
      %v2587 = vpop.f32.mrb[0].mxu0
      %2588 = vmatprep.mubr.f32.mxu0 0.0
      %2589 = vmatmul.mubr.f32.gmra.mrb[0].mxu0 %v2381
      %v2590 = vpop.f32.mrb[0].mxu0
      %v2591 = vadd.f32 %v2306, %v2590
      %v2592 = vpop.f32.mrb[0].mxu0
      %2593 = vmatprep.mubr.f32.mxu0 0.0
      %2594 = vmatmul.mubr.f32.gmra.mrb[0].mxu0 %v2384
      %v2595 = vpop.f32.mrb[0].mxu0
      %v2596 = vadd.f32 %v2306, %v2595
      %v2597 = vpop.f32.mrb[0].mxu0
      %2598 = vmatprep.mubr.f32.mxu0 0.0
      %2599 = vmatmul.mubr.f32.gmra.mrb[0].mxu0 %v2387
      %v2600 = vpop.f32.mrb[0].mxu0
      %v2601 = vadd.f32 %v2306, %v2600
      %v2602 = vpop.f32.mrb[0].mxu0
      %2603 = vmatprep.mubr.f32.mxu0 0.0
      %2604 = vmatmul.mubr.f32.gmra.mrb[0].mxu0 %v2390
      %v2605 = vpop.f32.mrb[0].mxu0
      %v2606 = vadd.f32 %v2306, %v2605
      %v2607 = vpop.f32.mrb[0].mxu0
      %2608 = vmatprep.mubr.f32.mxu0 0.0
      %2609 = vmatmul.mubr.f32.gmra.mrb[0].mxu0 %v2393
      %v2610 = vpop.f32.mrb[0].mxu0
      %v2611 = vadd.f32 %v2306, %v2610
      %v2612 = vpop.f32.mrb[0].mxu0
      %2613 = vmatprep.mubr.f32.mxu0 0.0
      %2614 = vmatmul.mubr.f32.gmra.mrb[0].mxu0 %v2396
      %v2615 = vpop.f32.mrb[0].mxu0
      %v2616 = vadd.f32 %v2306, %v2615
      %v2617 = vpop.f32.mrb[0].mxu0
      %2618 = vmatprep.mubr.f32.mxu0 0.0
      %2619 = vmatmul.mubr.f32.gmra.mrb[0].mxu0 %v2399
      %v2620 = vpop.f32.mrb[0].mxu0
      %v2621 = vadd.f32 %v2306, %v2620
      %v2622 = vpop.f32.mrb[0].mxu0
      %2623 = vmatprep.mubr.f32.mxu0 0.0
      %2624 = vmatmul.mubr.f32.gmra.mrb[0].mxu0 %v2402
      %v2625 = vpop.f32.mrb[0].mxu0
      %v2626 = vadd.f32 %v2306, %v2625
      %v2627 = vpop.f32.mrb[0].mxu0
      %2628 = vdwg.mxu0
      %v2629 = vmax.f32 %v2471, 0.0
      %v2630 = vmax.f32 %v2476, 0.0
      %v2631 = vmax.f32 %v2481, 0.0
      %v2632 = vmax.f32 %v2486, 0.0
      %v2633 = vmax.f32 %v2491, 0.0
      %v2634 = vmax.f32 %v2496, 0.0
      %v2635 = vmax.f32 %v2501, 0.0
      %v2636 = vmax.f32 %v2506, 0.0
      %v2637 = vmax.f32 %v2511, 0.0
      %v2638 = vmax.f32 %v2516, 0.0
      %v2639 = vmax.f32 %v2521, 0.0
      %v2640 = vmax.f32 %v2526, 0.0
      %v2641 = vmax.f32 %v2531, 0.0
      %v2642 = vmax.f32 %v2536, 0.0
      %v2643 = vmax.f32 %v2541, 0.0
      %v2644 = vmax.f32 %v2546, 0.0
      %v2645 = vmax.f32 %v2551, 0.0
      %v2646 = vmax.f32 %v2556, 0.0
      %v2647 = vmax.f32 %v2561, 0.0
      %v2648 = vmax.f32 %v2566, 0.0
      %v2649 = vmax.f32 %v2571, 0.0
      %v2650 = vmax.f32 %v2576, 0.0
      %v2651 = vmax.f32 %v2581, 0.0
      %v2652 = vmax.f32 %v2586, 0.0
      %v2653 = vmax.f32 %v2591, 0.0
      %v2654 = vmax.f32 %v2596, 0.0
      %v2655 = vmax.f32 %v2601, 0.0
      %v2656 = vmax.f32 %v2606, 0.0
      %v2657 = vmax.f32 %v2611, 0.0
      %v2658 = vmax.f32 %v2616, 0.0
      %v2659 = vmax.f32 %v2621, 0.0
      %v2660 = vmax.f32 %v2626, 0.0
      %vm2661 = vcmask 48128
      %2662 = vst.msk [vmem:[#allocation3] sm:$0xff] %vm2661, 0.0
      %2663 = vst.msk [vmem:[#allocation3 + $0x8] sm:$0xff] %vm2661, 0.0
      %vm2664 = vcmask 41984
      %2665 = vst.msk [vmem:[#allocation3 + $0x10] sm:$0x3] %vm2664, 0.0
      %2666 = vst.msk [vmem:[#allocation3 + $0x18] sm:$0xff] %vm2661, 0.0
      %2667 = vst.msk [vmem:[#allocation3 + $0x20] sm:$0xff] %vm2661, 0.0
      %2668 = vst.msk [vmem:[#allocation3 + $0x28] sm:$0x3] %vm2664, 0.0
      %2669 = vst.msk [vmem:[#allocation3 + $0x30] sm:$0xff] %vm2661, 0.0
      %2670 = vst.msk [vmem:[#allocation3 + $0x38] sm:$0xff] %vm2661, 0.0
      %2671 = vst.msk [vmem:[#allocation3 + $0x40] sm:$0x3] %vm2664, 0.0
      %2672 = vst.msk [vmem:[#allocation3 + $0x48] sm:$0xff] %vm2661, 0.0
      %2673 = vst.msk [vmem:[#allocation3 + $0x50] sm:$0xff] %vm2661, 0.0
      %2674 = vst.msk [vmem:[#allocation3 + $0x58] sm:$0x3] %vm2664, 0.0
      %2675 = vst.msk [vmem:[#allocation3 + $0x60] sm:$0xff] %vm2661, 0.0
      %2676 = vst.msk [vmem:[#allocation3 + $0x68] sm:$0xff] %vm2661, 0.0
      %2677 = vst.msk [vmem:[#allocation3 + $0x70] sm:$0x3] %vm2664, 0.0
      %2678 = vst.msk [vmem:[#allocation3 + $0x78] sm:$0xff] %vm2661, 0.0
      %2679 = vst.msk [vmem:[#allocation3 + $0x80] sm:$0xff] %vm2661, 0.0
      %2680 = vst.msk [vmem:[#allocation3 + $0x88] sm:$0x3] %vm2664, 0.0
      %2681 = vst.msk [vmem:[#allocation3 + $0x90] sm:$0xff] %vm2661, 0.0
      %2682 = vst.msk [vmem:[#allocation3 + $0x98] sm:$0xff] %vm2661, 0.0
      %2683 = vst.msk [vmem:[#allocation3 + $0xa0] sm:$0x3] %vm2664, 0.0
      %2684 = vst.msk [vmem:[#allocation3 + $0xa8] sm:$0xff] %vm2661, 0.0
      %2685 = vst.msk [vmem:[#allocation3 + $0xb0] sm:$0xff] %vm2661, 0.0
      %2686 = vst.msk [vmem:[#allocation3 + $0xb8] sm:$0x3] %vm2664, 0.0
      %2687 = vst.msk [vmem:[#allocation3 + $0xc0] sm:$0xff] %vm2661, 0.0
      %2688 = vst.msk [vmem:[#allocation3 + $0xc8] sm:$0xff] %vm2661, 0.0
      %2689 = vst.msk [vmem:[#allocation3 + $0xd0] sm:$0x3] %vm2664, 0.0
      %2690 = vst.msk [vmem:[#allocation3 + $0xd8] sm:$0xff] %vm2661, 0.0
      %2691 = vst.msk [vmem:[#allocation3 + $0xe0] sm:$0xff] %vm2661, 0.0
      %2692 = vst.msk [vmem:[#allocation3 + $0xe8] sm:$0x3] %vm2664, 0.0
      %2693 = vst.msk [vmem:[#allocation3 + $0xf0] sm:$0xff] %vm2661, 0.0
      %2694 = vst.msk [vmem:[#allocation3 + $0xf8] sm:$0xff] %vm2661, 0.0
      %2695 = vst.msk [vmem:[#allocation3 + $0x100] sm:$0x3] %vm2664, 0.0
      %2696 = vst.msk [vmem:[#allocation3 + $0x108] sm:$0xff] %vm2661, 0.0
      %2697 = vst.msk [vmem:[#allocation3 + $0x110] sm:$0xff] %vm2661, 0.0
      %2698 = vst.msk [vmem:[#allocation3 + $0x118] sm:$0x3] %vm2664, 0.0
      %2699 = vst.msk [vmem:[#allocation3 + $0x120] sm:$0xff] %vm2661, 0.0
      %2700 = vst.msk [vmem:[#allocation3 + $0x128] sm:$0xff] %vm2661, 0.0
      %2701 = vst.msk [vmem:[#allocation3 + $0x130] sm:$0x3] %vm2664, 0.0
      %2702 = vst.msk [vmem:[#allocation3 + $0x138] sm:$0xff] %vm2661, 0.0
      %2703 = vst.msk [vmem:[#allocation3 + $0x140] sm:$0xff] %vm2661, 0.0
      %2704 = vst.msk [vmem:[#allocation3 + $0x148] sm:$0x3] %vm2664, 0.0
      %2705 = vst.msk [vmem:[#allocation3 + $0x150] sm:$0xff] %vm2661, 0.0
      %2706 = vst.msk [vmem:[#allocation3 + $0x158] sm:$0xff] %vm2661, 0.0
      %2707 = vst.msk [vmem:[#allocation3 + $0x160] sm:$0x3] %vm2664, 0.0
      %2708 = vst.msk [vmem:[#allocation3 + $0x168] sm:$0xff] %vm2661, 0.0
      %2709 = vst.msk [vmem:[#allocation3 + $0x170] sm:$0xff] %vm2661, 0.0
      %2710 = vst.msk [vmem:[#allocation3 + $0x178] sm:$0x3] %vm2664, 0.0
      %2711 = vst.msk [vmem:[#allocation3 + $0x180] sm:$0xff] %vm2661, 0.0
      %2712 = vst.msk [vmem:[#allocation3 + $0x188] sm:$0xff] %vm2661, 0.0
      %2713 = vst.msk [vmem:[#allocation3 + $0x190] sm:$0x3] %vm2664, 0.0
      %2714 = vst.msk [vmem:[#allocation3 + $0x198] sm:$0xff] %vm2661, 0.0
      %2715 = vst.msk [vmem:[#allocation3 + $0x1a0] sm:$0xff] %vm2661, 0.0
      %2716 = vst.msk [vmem:[#allocation3 + $0x1a8] sm:$0x3] %vm2664, 0.0
      %s2717 = scalar_lea.vmem [#allocation3], 24
      %2718 = vst.msk [vmem:[%s2717 + $0x1] sm:$0xff] %vm2661, %v2629
      %2719 = vst.msk [vmem:[%s2717 + $0x9] sm:$0xff] %vm2661, %v2630
      %2720 = vst.msk [vmem:[%s2717 + $0x19] sm:$0xff] %vm2661, %v2631
      %2721 = vst.msk [vmem:[%s2717 + $0x21] sm:$0xff] %vm2661, %v2632
      %2722 = vst.msk [vmem:[%s2717 + $0x31] sm:$0xff] %vm2661, %v2633
      %2723 = vst.msk [vmem:[%s2717 + $0x39] sm:$0xff] %vm2661, %v2634
      %2724 = vst.msk [vmem:[%s2717 + $0x49] sm:$0xff] %vm2661, %v2635
      %2725 = vst.msk [vmem:[%s2717 + $0x51] sm:$0xff] %vm2661, %v2636
      %2726 = vst.msk [vmem:[%s2717 + $0x61] sm:$0xff] %vm2661, %v2637
      %2727 = vst.msk [vmem:[%s2717 + $0x69] sm:$0xff] %vm2661, %v2638
      %2728 = vst.msk [vmem:[%s2717 + $0x79] sm:$0xff] %vm2661, %v2639
      %2729 = vst.msk [vmem:[%s2717 + $0x81] sm:$0xff] %vm2661, %v2640
      %2730 = vst.msk [vmem:[%s2717 + $0x91] sm:$0xff] %vm2661, %v2641
      %2731 = vst.msk [vmem:[%s2717 + $0x99] sm:$0xff] %vm2661, %v2642
      %2732 = vst.msk [vmem:[%s2717 + $0xa9] sm:$0xff] %vm2661, %v2643
      %2733 = vst.msk [vmem:[%s2717 + $0xb1] sm:$0xff] %vm2661, %v2644
      %2734 = vst.msk [vmem:[%s2717 + $0xc1] sm:$0xff] %vm2661, %v2645
      %2735 = vst.msk [vmem:[%s2717 + $0xc9] sm:$0xff] %vm2661, %v2646
      %2736 = vst.msk [vmem:[%s2717 + $0xd9] sm:$0xff] %vm2661, %v2647
      %2737 = vst.msk [vmem:[%s2717 + $0xe1] sm:$0xff] %vm2661, %v2648
      %2738 = vst.msk [vmem:[%s2717 + $0xf1] sm:$0xff] %vm2661, %v2649
      %2739 = vst.msk [vmem:[%s2717 + $0xf9] sm:$0xff] %vm2661, %v2650
      %2740 = vst.msk [vmem:[%s2717 + $0x109] sm:$0xff] %vm2661, %v2651
      %2741 = vst.msk [vmem:[%s2717 + $0x111] sm:$0xff] %vm2661, %v2652
      %2742 = vst.msk [vmem:[%s2717 + $0x121] sm:$0xff] %vm2661, %v2653
      %2743 = vst.msk [vmem:[%s2717 + $0x129] sm:$0xff] %vm2661, %v2654
      %2744 = vst.msk [vmem:[%s2717 + $0x139] sm:$0xff] %vm2661, %v2655
      %2745 = vst.msk [vmem:[%s2717 + $0x141] sm:$0xff] %vm2661, %v2656
      %2746 = vst.msk [vmem:[%s2717 + $0x151] sm:$0xff] %vm2661, %v2657
      %2747 = vst.msk [vmem:[%s2717 + $0x159] sm:$0xff] %vm2661, %v2658
      %2748 = vst.msk [vmem:[%s2717 + $0x169] sm:$0xff] %vm2661, %v2659
      %2749 = vst.msk [vmem:[%s2717 + $0x171] sm:$0xff] %vm2661, %v2660
      %v2750 = vld [vmem:[#allocation3] sm:$0xff]
      %v2751 = vld [vmem:[#allocation3 + $0x8] sm:$0xff]
      %v2752 = vld [vmem:[#allocation3 + $0x10] sm:$0x3]
      %v2753 = vld [vmem:[#allocation3 + $0x18] sm:$0xff]
      %v2754 = vld [vmem:[#allocation3 + $0x20] sm:$0xff]
      %v2755 = vld [vmem:[#allocation3 + $0x28] sm:$0x3]
      %v2756 = vld [vmem:[#allocation3 + $0x30] sm:$0xff]
      %v2757 = vld [vmem:[#allocation3 + $0x38] sm:$0xff]
      %v2758 = vld [vmem:[#allocation3 + $0x40] sm:$0x3]
      %v2759 = vld [vmem:[#allocation3 + $0x48] sm:$0xff]
      %v2760 = vld [vmem:[#allocation3 + $0x50] sm:$0xff]
      %v2761 = vld [vmem:[#allocation3 + $0x58] sm:$0x3]
      %v2762 = vld [vmem:[#allocation3 + $0x60] sm:$0xff]
      %v2763 = vld [vmem:[#allocation3 + $0x68] sm:$0xff]
      %v2764 = vld [vmem:[#allocation3 + $0x70] sm:$0x3]
      %v2765 = vld [vmem:[#allocation3 + $0x78] sm:$0xff]
      %v2766 = vld [vmem:[#allocation3 + $0x80] sm:$0xff]
      %v2767 = vld [vmem:[#allocation3 + $0x88] sm:$0x3]
      %v2768 = vld [vmem:[#allocation3 + $0x90] sm:$0xff]
      %v2769 = vld [vmem:[#allocation3 + $0x98] sm:$0xff]
      %v2770 = vld [vmem:[#allocation3 + $0xa0] sm:$0x3]
      %v2771 = vld [vmem:[#allocation3 + $0xa8] sm:$0xff]
      %v2772 = vld [vmem:[#allocation3 + $0xb0] sm:$0xff]
      %v2773 = vld [vmem:[#allocation3 + $0xb8] sm:$0x3]
      %v2774 = vld [vmem:[#allocation3 + $0xc0] sm:$0xff]
      %v2775 = vld [vmem:[#allocation3 + $0xc8] sm:$0xff]
      %v2776 = vld [vmem:[#allocation3 + $0xd0] sm:$0x3]
      %v2777 = vld [vmem:[#allocation3 + $0xd8] sm:$0xff]
      %v2778 = vld [vmem:[#allocation3 + $0xe0] sm:$0xff]
      %v2779 = vld [vmem:[#allocation3 + $0xe8] sm:$0x3]
      %v2780 = vld [vmem:[#allocation3 + $0xf0] sm:$0xff]
      %v2781 = vld [vmem:[#allocation3 + $0xf8] sm:$0xff]
      %v2782 = vld [vmem:[#allocation3 + $0x100] sm:$0x3]
      %v2783 = vld [vmem:[#allocation3 + $0x108] sm:$0xff]
      %v2784 = vld [vmem:[#allocation3 + $0x110] sm:$0xff]
      %v2785 = vld [vmem:[#allocation3 + $0x118] sm:$0x3]
      %v2786 = vld [vmem:[#allocation3 + $0x120] sm:$0xff]
      %v2787 = vld [vmem:[#allocation3 + $0x128] sm:$0xff]
      %v2788 = vld [vmem:[#allocation3 + $0x130] sm:$0x3]
      %v2789 = vld [vmem:[#allocation3 + $0x138] sm:$0xff]
      %v2790 = vld [vmem:[#allocation3 + $0x140] sm:$0xff]
      %v2791 = vld [vmem:[#allocation3 + $0x148] sm:$0x3]
      %v2792 = vld [vmem:[#allocation3 + $0x150] sm:$0xff]
      %v2793 = vld [vmem:[#allocation3 + $0x158] sm:$0xff]
      %v2794 = vld [vmem:[#allocation3 + $0x160] sm:$0x3]
      %v2795 = vld [vmem:[#allocation3 + $0x168] sm:$0xff]
      %v2796 = vld [vmem:[#allocation3 + $0x170] sm:$0xff]
      %v2797 = vld [vmem:[#allocation3 + $0x178] sm:$0x3]
      %v2798 = vld [vmem:[#allocation3 + $0x180] sm:$0xff]
      %v2799 = vld [vmem:[#allocation3 + $0x188] sm:$0xff]
      %v2800 = vld [vmem:[#allocation3 + $0x190] sm:$0x3]
      %v2801 = vld [vmem:[#allocation3 + $0x198] sm:$0xff]
      %v2802 = vld [vmem:[#allocation3 + $0x1a0] sm:$0xff]
      %v2803 = vld [vmem:[#allocation3 + $0x1a8] sm:$0x3]
      %v2804 = vld [vmem:[%s5] sm:$0xff]
      %v2805 = vld [vmem:[%s5 + $0x8] sm:$0x1]
      %v2806 = vld [vmem:[%s6] sm:$0x1]
      %v2808 = vlaneseq
      %v2809 = vshrl.u32 %v2808, 7
      %v2810 = vsub.s32 0, %v2809
      %v2811 = vrot.slane %v2806, %v2810
      %v2813 = vlaneseq
      %v2814 = vshrl.u32 %v2813, 7
      %v2815 = vsub.s32 0, %v2814
      %v2816 = vrot.slane %v2804, %v2815
      %v2817 = vmul.f32 %v535, %v2816
      %v2818 = vmul.f32 %v536, %v2816
      %v2819 = vmul.f32 %v538, %v2816
      %v2820 = vmul.f32 %v539, %v2816
      %v2821 = vmul.f32 %v541, %v2816
      %v2822 = vmul.f32 %v542, %v2816
      %v2823 = vmul.f32 %v544, %v2816
      %v2824 = vmul.f32 %v545, %v2816
      %v2825 = vmul.f32 %v547, %v2816
      %v2826 = vmul.f32 %v548, %v2816
      %v2827 = vmul.f32 %v550, %v2816
      %v2828 = vmul.f32 %v551, %v2816
      %v2829 = vmul.f32 %v553, %v2816
      %v2830 = vmul.f32 %v554, %v2816
      %v2831 = vmul.f32 %v556, %v2816
      %v2832 = vmul.f32 %v557, %v2816
      %v2833 = vmul.f32 %v559, %v2816
      %v2834 = vmul.f32 %v560, %v2816
      %v2835 = vmul.f32 %v562, %v2816
      %v2836 = vmul.f32 %v563, %v2816
      %v2837 = vmul.f32 %v565, %v2816
      %v2838 = vmul.f32 %v566, %v2816
      %v2839 = vmul.f32 %v568, %v2816
      %v2840 = vmul.f32 %v569, %v2816
      %v2841 = vmul.f32 %v571, %v2816
      %v2842 = vmul.f32 %v572, %v2816
      %v2843 = vmul.f32 %v574, %v2816
      %v2844 = vmul.f32 %v575, %v2816
      %v2845 = vmul.f32 %v577, %v2816
      %v2846 = vmul.f32 %v578, %v2816
      %v2847 = vmul.f32 %v580, %v2816
      %v2848 = vmul.f32 %v581, %v2816
      %v2849 = vadd.f32 %v2811, %v2817
      %v2850 = vadd.f32 %v2811, %v2818
      %v2851 = vadd.f32 %v2811, %v2819
      %v2852 = vadd.f32 %v2811, %v2820
      %v2853 = vadd.f32 %v2811, %v2821
      %v2854 = vadd.f32 %v2811, %v2822
      %v2855 = vadd.f32 %v2811, %v2823
      %v2856 = vadd.f32 %v2811, %v2824
      %v2857 = vadd.f32 %v2811, %v2825
      %v2858 = vadd.f32 %v2811, %v2826
      %v2859 = vadd.f32 %v2811, %v2827
      %v2860 = vadd.f32 %v2811, %v2828
      %v2861 = vadd.f32 %v2811, %v2829
      %v2862 = vadd.f32 %v2811, %v2830
      %v2863 = vadd.f32 %v2811, %v2831
      %v2864 = vadd.f32 %v2811, %v2832
      %v2865 = vadd.f32 %v2811, %v2833
      %v2866 = vadd.f32 %v2811, %v2834
      %v2867 = vadd.f32 %v2811, %v2835
      %v2868 = vadd.f32 %v2811, %v2836
      %v2869 = vadd.f32 %v2811, %v2837
      %v2870 = vadd.f32 %v2811, %v2838
      %v2871 = vadd.f32 %v2811, %v2839
      %v2872 = vadd.f32 %v2811, %v2840
      %v2873 = vadd.f32 %v2811, %v2841
      %v2874 = vadd.f32 %v2811, %v2842
      %v2875 = vadd.f32 %v2811, %v2843
      %v2876 = vadd.f32 %v2811, %v2844
      %v2877 = vadd.f32 %v2811, %v2845
      %v2878 = vadd.f32 %v2811, %v2846
      %v2879 = vadd.f32 %v2811, %v2847
      %v2880 = vadd.f32 %v2811, %v2848
      %v2881 = vlaneseq
      %v2882 = vshrl.u32 %v2881, 7
      %v2883 = vsub.s32 1, %v2882
      %v2884 = vrot.slane %v2804, %v2883
      %v2885 = vmul.f32 %v535, %v2884
      %v2886 = vmul.f32 %v536, %v2884
      %v2887 = vmul.f32 %v537, %v2884
      %v2888 = vmul.f32 %v538, %v2884
      %v2889 = vmul.f32 %v539, %v2884
      %v2890 = vmul.f32 %v540, %v2884
      %v2891 = vmul.f32 %v541, %v2884
      %v2892 = vmul.f32 %v542, %v2884
      %v2893 = vmul.f32 %v543, %v2884
      %v2894 = vmul.f32 %v544, %v2884
      %v2895 = vmul.f32 %v545, %v2884
      %v2896 = vmul.f32 %v546, %v2884
      %v2897 = vmul.f32 %v547, %v2884
      %v2898 = vmul.f32 %v548, %v2884
      %v2899 = vmul.f32 %v549, %v2884
      %v2900 = vmul.f32 %v550, %v2884
      %v2901 = vmul.f32 %v551, %v2884
      %v2902 = vmul.f32 %v552, %v2884
      %v2903 = vmul.f32 %v553, %v2884
      %v2904 = vmul.f32 %v554, %v2884
      %v2905 = vmul.f32 %v555, %v2884
      %v2906 = vmul.f32 %v556, %v2884
      %v2907 = vmul.f32 %v557, %v2884
      %v2908 = vmul.f32 %v558, %v2884
      %v2909 = vmul.f32 %v559, %v2884
      %v2910 = vmul.f32 %v560, %v2884
      %v2911 = vmul.f32 %v561, %v2884
      %v2912 = vmul.f32 %v562, %v2884
      %v2913 = vmul.f32 %v563, %v2884
      %v2914 = vmul.f32 %v564, %v2884
      %v2915 = vmul.f32 %v565, %v2884
      %v2916 = vmul.f32 %v566, %v2884
      %v2917 = vmul.f32 %v567, %v2884
      %v2918 = vmul.f32 %v568, %v2884
      %v2919 = vmul.f32 %v569, %v2884
      %v2920 = vmul.f32 %v570, %v2884
      %v2921 = vmul.f32 %v571, %v2884
      %v2922 = vmul.f32 %v572, %v2884
      %v2923 = vmul.f32 %v573, %v2884
      %v2924 = vmul.f32 %v574, %v2884
      %v2925 = vmul.f32 %v575, %v2884
      %v2926 = vmul.f32 %v576, %v2884
      %v2927 = vmul.f32 %v577, %v2884
      %v2928 = vmul.f32 %v578, %v2884
      %v2929 = vmul.f32 %v579, %v2884
      %v2930 = vmul.f32 %v580, %v2884
      %v2931 = vmul.f32 %v581, %v2884
      %v2932 = vmul.f32 %v582, %v2884
      %v2981 = vrot.slane %v2885, 1
      %v2982 = vrot.slane %v2886, 1
      %v2983 = vsel %vm766, %v2981, %v2982
      %v2984 = vrot.slane %v2887, 1
      %v2985 = vsel %vm766, %v2982, %v2984
      %v2986 = vrot.slane %v2888, 1
      %v2987 = vrot.slane %v2889, 1
      %v2988 = vsel %vm766, %v2986, %v2987
      %v2989 = vrot.slane %v2890, 1
      %v2990 = vsel %vm766, %v2987, %v2989
      %v2991 = vrot.slane %v2891, 1
      %v2992 = vrot.slane %v2892, 1
      %v2993 = vsel %vm766, %v2991, %v2992
      %v2994 = vrot.slane %v2893, 1
      %v2995 = vsel %vm766, %v2992, %v2994
      %v2996 = vrot.slane %v2894, 1
      %v2997 = vrot.slane %v2895, 1
      %v2998 = vsel %vm766, %v2996, %v2997
      %v2999 = vrot.slane %v2896, 1
      %v3000 = vsel %vm766, %v2997, %v2999
      %v3001 = vrot.slane %v2897, 1
      %v3002 = vrot.slane %v2898, 1
      %v3003 = vsel %vm766, %v3001, %v3002
      %v3004 = vrot.slane %v2899, 1
      %v3005 = vsel %vm766, %v3002, %v3004
      %v3006 = vrot.slane %v2900, 1
      %v3007 = vrot.slane %v2901, 1
      %v3008 = vsel %vm766, %v3006, %v3007
      %v3009 = vrot.slane %v2902, 1
      %v3010 = vsel %vm766, %v3007, %v3009
      %v3011 = vrot.slane %v2903, 1
      %v3012 = vrot.slane %v2904, 1
      %v3013 = vsel %vm766, %v3011, %v3012
      %v3014 = vrot.slane %v2905, 1
      %v3015 = vsel %vm766, %v3012, %v3014
      %v3016 = vrot.slane %v2906, 1
      %v3017 = vrot.slane %v2907, 1
      %v3018 = vsel %vm766, %v3016, %v3017
      %v3019 = vrot.slane %v2908, 1
      %v3020 = vsel %vm766, %v3017, %v3019
      %v3021 = vrot.slane %v2909, 1
      %v3022 = vrot.slane %v2910, 1
      %v3023 = vsel %vm766, %v3021, %v3022
      %v3024 = vrot.slane %v2911, 1
      %v3025 = vsel %vm766, %v3022, %v3024
      %v3026 = vrot.slane %v2912, 1
      %v3027 = vrot.slane %v2913, 1
      %v3028 = vsel %vm766, %v3026, %v3027
      %v3029 = vrot.slane %v2914, 1
      %v3030 = vsel %vm766, %v3027, %v3029
      %v3031 = vrot.slane %v2915, 1
      %v3032 = vrot.slane %v2916, 1
      %v3033 = vsel %vm766, %v3031, %v3032
      %v3034 = vrot.slane %v2917, 1
      %v3035 = vsel %vm766, %v3032, %v3034
      %v3036 = vrot.slane %v2918, 1
      %v3037 = vrot.slane %v2919, 1
      %v3038 = vsel %vm766, %v3036, %v3037
      %v3039 = vrot.slane %v2920, 1
      %v3040 = vsel %vm766, %v3037, %v3039
      %v3041 = vrot.slane %v2921, 1
      %v3042 = vrot.slane %v2922, 1
      %v3043 = vsel %vm766, %v3041, %v3042
      %v3044 = vrot.slane %v2923, 1
      %v3045 = vsel %vm766, %v3042, %v3044
      %v3046 = vrot.slane %v2924, 1
      %v3047 = vrot.slane %v2925, 1
      %v3048 = vsel %vm766, %v3046, %v3047
      %v3049 = vrot.slane %v2926, 1
      %v3050 = vsel %vm766, %v3047, %v3049
      %v3051 = vrot.slane %v2927, 1
      %v3052 = vrot.slane %v2928, 1
      %v3053 = vsel %vm766, %v3051, %v3052
      %v3054 = vrot.slane %v2929, 1
      %v3055 = vsel %vm766, %v3052, %v3054
      %v3056 = vrot.slane %v2930, 1
      %v3057 = vrot.slane %v2931, 1
      %v3058 = vsel %vm766, %v3056, %v3057
      %v3059 = vrot.slane %v2932, 1
      %v3060 = vsel %vm766, %v3057, %v3059
      %v3093 = vadd.f32 %v2849, %v2983
      %v3094 = vadd.f32 %v2850, %v2985
      %v3095 = vadd.f32 %v2851, %v2988
      %v3096 = vadd.f32 %v2852, %v2990
      %v3097 = vadd.f32 %v2853, %v2993
      %v3098 = vadd.f32 %v2854, %v2995
      %v3099 = vadd.f32 %v2855, %v2998
      %v3100 = vadd.f32 %v2856, %v3000
      %v3101 = vadd.f32 %v2857, %v3003
      %v3102 = vadd.f32 %v2858, %v3005
      %v3103 = vadd.f32 %v2859, %v3008
      %v3104 = vadd.f32 %v2860, %v3010
      %v3105 = vadd.f32 %v2861, %v3013
      %v3106 = vadd.f32 %v2862, %v3015
      %v3107 = vadd.f32 %v2863, %v3018
      %v3108 = vadd.f32 %v2864, %v3020
      %v3109 = vadd.f32 %v2865, %v3023
      %v3110 = vadd.f32 %v2866, %v3025
      %v3111 = vadd.f32 %v2867, %v3028
      %v3112 = vadd.f32 %v2868, %v3030
      %v3113 = vadd.f32 %v2869, %v3033
      %v3114 = vadd.f32 %v2870, %v3035
      %v3115 = vadd.f32 %v2871, %v3038
      %v3116 = vadd.f32 %v2872, %v3040
      %v3117 = vadd.f32 %v2873, %v3043
      %v3118 = vadd.f32 %v2874, %v3045
      %v3119 = vadd.f32 %v2875, %v3048
      %v3120 = vadd.f32 %v2876, %v3050
      %v3121 = vadd.f32 %v2877, %v3053
      %v3122 = vadd.f32 %v2878, %v3055
      %v3123 = vadd.f32 %v2879, %v3058
      %v3124 = vadd.f32 %v2880, %v3060
      %v3125 = vlaneseq
      %v3126 = vshrl.u32 %v3125, 7
      %v3127 = vsub.s32 2, %v3126
      %v3128 = vrot.slane %v2804, %v3127
      %v3129 = vmul.f32 %v535, %v3128
      %v3130 = vmul.f32 %v536, %v3128
      %v3131 = vmul.f32 %v537, %v3128
      %v3132 = vmul.f32 %v538, %v3128
      %v3133 = vmul.f32 %v539, %v3128
      %v3134 = vmul.f32 %v540, %v3128
      %v3135 = vmul.f32 %v541, %v3128
      %v3136 = vmul.f32 %v542, %v3128
      %v3137 = vmul.f32 %v543, %v3128
      %v3138 = vmul.f32 %v544, %v3128
      %v3139 = vmul.f32 %v545, %v3128
      %v3140 = vmul.f32 %v546, %v3128
      %v3141 = vmul.f32 %v547, %v3128
      %v3142 = vmul.f32 %v548, %v3128
      %v3143 = vmul.f32 %v549, %v3128
      %v3144 = vmul.f32 %v550, %v3128
      %v3145 = vmul.f32 %v551, %v3128
      %v3146 = vmul.f32 %v552, %v3128
      %v3147 = vmul.f32 %v553, %v3128
      %v3148 = vmul.f32 %v554, %v3128
      %v3149 = vmul.f32 %v555, %v3128
      %v3150 = vmul.f32 %v556, %v3128
      %v3151 = vmul.f32 %v557, %v3128
      %v3152 = vmul.f32 %v558, %v3128
      %v3153 = vmul.f32 %v559, %v3128
      %v3154 = vmul.f32 %v560, %v3128
      %v3155 = vmul.f32 %v561, %v3128
      %v3156 = vmul.f32 %v562, %v3128
      %v3157 = vmul.f32 %v563, %v3128
      %v3158 = vmul.f32 %v564, %v3128
      %v3159 = vmul.f32 %v565, %v3128
      %v3160 = vmul.f32 %v566, %v3128
      %v3161 = vmul.f32 %v567, %v3128
      %v3162 = vmul.f32 %v568, %v3128
      %v3163 = vmul.f32 %v569, %v3128
      %v3164 = vmul.f32 %v570, %v3128
      %v3165 = vmul.f32 %v571, %v3128
      %v3166 = vmul.f32 %v572, %v3128
      %v3167 = vmul.f32 %v573, %v3128
      %v3168 = vmul.f32 %v574, %v3128
      %v3169 = vmul.f32 %v575, %v3128
      %v3170 = vmul.f32 %v576, %v3128
      %v3171 = vmul.f32 %v577, %v3128
      %v3172 = vmul.f32 %v578, %v3128
      %v3173 = vmul.f32 %v579, %v3128
      %v3174 = vmul.f32 %v580, %v3128
      %v3175 = vmul.f32 %v581, %v3128
      %v3176 = vmul.f32 %v582, %v3128
      %v3225 = vrot.slane %v3129, 2
      %v3226 = vrot.slane %v3130, 2
      %v3227 = vsel %vm1011, %v3225, %v3226
      %v3228 = vrot.slane %v3131, 2
      %v3229 = vsel %vm1011, %v3226, %v3228
      %v3230 = vrot.slane %v3132, 2
      %v3231 = vrot.slane %v3133, 2
      %v3232 = vsel %vm1011, %v3230, %v3231
      %v3233 = vrot.slane %v3134, 2
      %v3234 = vsel %vm1011, %v3231, %v3233
      %v3235 = vrot.slane %v3135, 2
      %v3236 = vrot.slane %v3136, 2
      %v3237 = vsel %vm1011, %v3235, %v3236
      %v3238 = vrot.slane %v3137, 2
      %v3239 = vsel %vm1011, %v3236, %v3238
      %v3240 = vrot.slane %v3138, 2
      %v3241 = vrot.slane %v3139, 2
      %v3242 = vsel %vm1011, %v3240, %v3241
      %v3243 = vrot.slane %v3140, 2
      %v3244 = vsel %vm1011, %v3241, %v3243
      %v3245 = vrot.slane %v3141, 2
      %v3246 = vrot.slane %v3142, 2
      %v3247 = vsel %vm1011, %v3245, %v3246
      %v3248 = vrot.slane %v3143, 2
      %v3249 = vsel %vm1011, %v3246, %v3248
      %v3250 = vrot.slane %v3144, 2
      %v3251 = vrot.slane %v3145, 2
      %v3252 = vsel %vm1011, %v3250, %v3251
      %v3253 = vrot.slane %v3146, 2
      %v3254 = vsel %vm1011, %v3251, %v3253
      %v3255 = vrot.slane %v3147, 2
      %v3256 = vrot.slane %v3148, 2
      %v3257 = vsel %vm1011, %v3255, %v3256
      %v3258 = vrot.slane %v3149, 2
      %v3259 = vsel %vm1011, %v3256, %v3258
      %v3260 = vrot.slane %v3150, 2
      %v3261 = vrot.slane %v3151, 2
      %v3262 = vsel %vm1011, %v3260, %v3261
      %v3263 = vrot.slane %v3152, 2
      %v3264 = vsel %vm1011, %v3261, %v3263
      %v3265 = vrot.slane %v3153, 2
      %v3266 = vrot.slane %v3154, 2
      %v3267 = vsel %vm1011, %v3265, %v3266
      %v3268 = vrot.slane %v3155, 2
      %v3269 = vsel %vm1011, %v3266, %v3268
      %v3270 = vrot.slane %v3156, 2
      %v3271 = vrot.slane %v3157, 2
      %v3272 = vsel %vm1011, %v3270, %v3271
      %v3273 = vrot.slane %v3158, 2
      %v3274 = vsel %vm1011, %v3271, %v3273
      %v3275 = vrot.slane %v3159, 2
      %v3276 = vrot.slane %v3160, 2
      %v3277 = vsel %vm1011, %v3275, %v3276
      %v3278 = vrot.slane %v3161, 2
      %v3279 = vsel %vm1011, %v3276, %v3278
      %v3280 = vrot.slane %v3162, 2
      %v3281 = vrot.slane %v3163, 2
      %v3282 = vsel %vm1011, %v3280, %v3281
      %v3283 = vrot.slane %v3164, 2
      %v3284 = vsel %vm1011, %v3281, %v3283
      %v3285 = vrot.slane %v3165, 2
      %v3286 = vrot.slane %v3166, 2
      %v3287 = vsel %vm1011, %v3285, %v3286
      %v3288 = vrot.slane %v3167, 2
      %v3289 = vsel %vm1011, %v3286, %v3288
      %v3290 = vrot.slane %v3168, 2
      %v3291 = vrot.slane %v3169, 2
      %v3292 = vsel %vm1011, %v3290, %v3291
      %v3293 = vrot.slane %v3170, 2
      %v3294 = vsel %vm1011, %v3291, %v3293
      %v3295 = vrot.slane %v3171, 2
      %v3296 = vrot.slane %v3172, 2
      %v3297 = vsel %vm1011, %v3295, %v3296
      %v3298 = vrot.slane %v3173, 2
      %v3299 = vsel %vm1011, %v3296, %v3298
      %v3300 = vrot.slane %v3174, 2
      %v3301 = vrot.slane %v3175, 2
      %v3302 = vsel %vm1011, %v3300, %v3301
      %v3303 = vrot.slane %v3176, 2
      %v3304 = vsel %vm1011, %v3301, %v3303
      %v3337 = vadd.f32 %v3093, %v3227
      %v3338 = vadd.f32 %v3094, %v3229
      %v3339 = vadd.f32 %v3095, %v3232
      %v3340 = vadd.f32 %v3096, %v3234
      %v3341 = vadd.f32 %v3097, %v3237
      %v3342 = vadd.f32 %v3098, %v3239
      %v3343 = vadd.f32 %v3099, %v3242
      %v3344 = vadd.f32 %v3100, %v3244
      %v3345 = vadd.f32 %v3101, %v3247
      %v3346 = vadd.f32 %v3102, %v3249
      %v3347 = vadd.f32 %v3103, %v3252
      %v3348 = vadd.f32 %v3104, %v3254
      %v3349 = vadd.f32 %v3105, %v3257
      %v3350 = vadd.f32 %v3106, %v3259
      %v3351 = vadd.f32 %v3107, %v3262
      %v3352 = vadd.f32 %v3108, %v3264
      %v3353 = vadd.f32 %v3109, %v3267
      %v3354 = vadd.f32 %v3110, %v3269
      %v3355 = vadd.f32 %v3111, %v3272
      %v3356 = vadd.f32 %v3112, %v3274
      %v3357 = vadd.f32 %v3113, %v3277
      %v3358 = vadd.f32 %v3114, %v3279
      %v3359 = vadd.f32 %v3115, %v3282
      %v3360 = vadd.f32 %v3116, %v3284
      %v3361 = vadd.f32 %v3117, %v3287
      %v3362 = vadd.f32 %v3118, %v3289
      %v3363 = vadd.f32 %v3119, %v3292
      %v3364 = vadd.f32 %v3120, %v3294
      %v3365 = vadd.f32 %v3121, %v3297
      %v3366 = vadd.f32 %v3122, %v3299
      %v3367 = vadd.f32 %v3123, %v3302
      %v3368 = vadd.f32 %v3124, %v3304
      %v3369 = vlaneseq
      %v3370 = vshrl.u32 %v3369, 7
      %v3371 = vsub.s32 3, %v3370
      %v3372 = vrot.slane %v2804, %v3371
      %v3373 = vmul.f32 %v538, %v3372
      %v3374 = vmul.f32 %v539, %v3372
      %v3375 = vmul.f32 %v541, %v3372
      %v3376 = vmul.f32 %v542, %v3372
      %v3377 = vmul.f32 %v544, %v3372
      %v3378 = vmul.f32 %v545, %v3372
      %v3379 = vmul.f32 %v547, %v3372
      %v3380 = vmul.f32 %v548, %v3372
      %v3381 = vmul.f32 %v550, %v3372
      %v3382 = vmul.f32 %v551, %v3372
      %v3383 = vmul.f32 %v553, %v3372
      %v3384 = vmul.f32 %v554, %v3372
      %v3385 = vmul.f32 %v556, %v3372
      %v3386 = vmul.f32 %v557, %v3372
      %v3387 = vmul.f32 %v559, %v3372
      %v3388 = vmul.f32 %v560, %v3372
      %v3389 = vmul.f32 %v562, %v3372
      %v3390 = vmul.f32 %v563, %v3372
      %v3391 = vmul.f32 %v565, %v3372
      %v3392 = vmul.f32 %v566, %v3372
      %v3393 = vmul.f32 %v568, %v3372
      %v3394 = vmul.f32 %v569, %v3372
      %v3395 = vmul.f32 %v571, %v3372
      %v3396 = vmul.f32 %v572, %v3372
      %v3397 = vmul.f32 %v574, %v3372
      %v3398 = vmul.f32 %v575, %v3372
      %v3399 = vmul.f32 %v577, %v3372
      %v3400 = vmul.f32 %v578, %v3372
      %v3401 = vmul.f32 %v580, %v3372
      %v3402 = vmul.f32 %v581, %v3372
      %v3403 = vmul.f32 %v583, %v3372
      %v3404 = vmul.f32 %v584, %v3372
      %v3405 = vadd.f32 %v3337, %v3373
      %v3406 = vadd.f32 %v3338, %v3374
      %v3407 = vadd.f32 %v3339, %v3375
      %v3408 = vadd.f32 %v3340, %v3376
      %v3409 = vadd.f32 %v3341, %v3377
      %v3410 = vadd.f32 %v3342, %v3378
      %v3411 = vadd.f32 %v3343, %v3379
      %v3412 = vadd.f32 %v3344, %v3380
      %v3413 = vadd.f32 %v3345, %v3381
      %v3414 = vadd.f32 %v3346, %v3382
      %v3415 = vadd.f32 %v3347, %v3383
      %v3416 = vadd.f32 %v3348, %v3384
      %v3417 = vadd.f32 %v3349, %v3385
      %v3418 = vadd.f32 %v3350, %v3386
      %v3419 = vadd.f32 %v3351, %v3387
      %v3420 = vadd.f32 %v3352, %v3388
      %v3421 = vadd.f32 %v3353, %v3389
      %v3422 = vadd.f32 %v3354, %v3390
      %v3423 = vadd.f32 %v3355, %v3391
      %v3424 = vadd.f32 %v3356, %v3392
      %v3425 = vadd.f32 %v3357, %v3393
      %v3426 = vadd.f32 %v3358, %v3394
      %v3427 = vadd.f32 %v3359, %v3395
      %v3428 = vadd.f32 %v3360, %v3396
      %v3429 = vadd.f32 %v3361, %v3397
      %v3430 = vadd.f32 %v3362, %v3398
      %v3431 = vadd.f32 %v3363, %v3399
      %v3432 = vadd.f32 %v3364, %v3400
      %v3433 = vadd.f32 %v3365, %v3401
      %v3434 = vadd.f32 %v3366, %v3402
      %v3435 = vadd.f32 %v3367, %v3403
      %v3436 = vadd.f32 %v3368, %v3404
      %v3437 = vlaneseq
      %v3438 = vshrl.u32 %v3437, 7
      %v3439 = vsub.s32 4, %v3438
      %v3440 = vrot.slane %v2804, %v3439
      %v3441 = vmul.f32 %v538, %v3440
      %v3442 = vmul.f32 %v539, %v3440
      %v3443 = vmul.f32 %v540, %v3440
      %v3444 = vmul.f32 %v541, %v3440
      %v3445 = vmul.f32 %v542, %v3440
      %v3446 = vmul.f32 %v543, %v3440
      %v3447 = vmul.f32 %v544, %v3440
      %v3448 = vmul.f32 %v545, %v3440
      %v3449 = vmul.f32 %v546, %v3440
      %v3450 = vmul.f32 %v547, %v3440
      %v3451 = vmul.f32 %v548, %v3440
      %v3452 = vmul.f32 %v549, %v3440
      %v3453 = vmul.f32 %v550, %v3440
      %v3454 = vmul.f32 %v551, %v3440
      %v3455 = vmul.f32 %v552, %v3440
      %v3456 = vmul.f32 %v553, %v3440
      %v3457 = vmul.f32 %v554, %v3440
      %v3458 = vmul.f32 %v555, %v3440
      %v3459 = vmul.f32 %v556, %v3440
      %v3460 = vmul.f32 %v557, %v3440
      %v3461 = vmul.f32 %v558, %v3440
      %v3462 = vmul.f32 %v559, %v3440
      %v3463 = vmul.f32 %v560, %v3440
      %v3464 = vmul.f32 %v561, %v3440
      %v3465 = vmul.f32 %v562, %v3440
      %v3466 = vmul.f32 %v563, %v3440
      %v3467 = vmul.f32 %v564, %v3440
      %v3468 = vmul.f32 %v565, %v3440
      %v3469 = vmul.f32 %v566, %v3440
      %v3470 = vmul.f32 %v567, %v3440
      %v3471 = vmul.f32 %v568, %v3440
      %v3472 = vmul.f32 %v569, %v3440
      %v3473 = vmul.f32 %v570, %v3440
      %v3474 = vmul.f32 %v571, %v3440
      %v3475 = vmul.f32 %v572, %v3440
      %v3476 = vmul.f32 %v573, %v3440
      %v3477 = vmul.f32 %v574, %v3440
      %v3478 = vmul.f32 %v575, %v3440
      %v3479 = vmul.f32 %v576, %v3440
      %v3480 = vmul.f32 %v577, %v3440
      %v3481 = vmul.f32 %v578, %v3440
      %v3482 = vmul.f32 %v579, %v3440
      %v3483 = vmul.f32 %v580, %v3440
      %v3484 = vmul.f32 %v581, %v3440
      %v3485 = vmul.f32 %v582, %v3440
      %v3486 = vmul.f32 %v583, %v3440
      %v3487 = vmul.f32 %v584, %v3440
      %v3488 = vmul.f32 %v585, %v3440
      %v3537 = vrot.slane %v3441, 1
      %v3538 = vrot.slane %v3442, 1
      %v3539 = vsel %vm766, %v3537, %v3538
      %v3540 = vrot.slane %v3443, 1
      %v3541 = vsel %vm766, %v3538, %v3540
      %v3542 = vrot.slane %v3444, 1
      %v3543 = vrot.slane %v3445, 1
      %v3544 = vsel %vm766, %v3542, %v3543
      %v3545 = vrot.slane %v3446, 1
      %v3546 = vsel %vm766, %v3543, %v3545
      %v3547 = vrot.slane %v3447, 1
      %v3548 = vrot.slane %v3448, 1
      %v3549 = vsel %vm766, %v3547, %v3548
      %v3550 = vrot.slane %v3449, 1
      %v3551 = vsel %vm766, %v3548, %v3550
      %v3552 = vrot.slane %v3450, 1
      %v3553 = vrot.slane %v3451, 1
      %v3554 = vsel %vm766, %v3552, %v3553
      %v3555 = vrot.slane %v3452, 1
      %v3556 = vsel %vm766, %v3553, %v3555
      %v3557 = vrot.slane %v3453, 1
      %v3558 = vrot.slane %v3454, 1
      %v3559 = vsel %vm766, %v3557, %v3558
      %v3560 = vrot.slane %v3455, 1
      %v3561 = vsel %vm766, %v3558, %v3560
      %v3562 = vrot.slane %v3456, 1
      %v3563 = vrot.slane %v3457, 1
      %v3564 = vsel %vm766, %v3562, %v3563
      %v3565 = vrot.slane %v3458, 1
      %v3566 = vsel %vm766, %v3563, %v3565
      %v3567 = vrot.slane %v3459, 1
      %v3568 = vrot.slane %v3460, 1
      %v3569 = vsel %vm766, %v3567, %v3568
      %v3570 = vrot.slane %v3461, 1
      %v3571 = vsel %vm766, %v3568, %v3570
      %v3572 = vrot.slane %v3462, 1
      %v3573 = vrot.slane %v3463, 1
      %v3574 = vsel %vm766, %v3572, %v3573
      %v3575 = vrot.slane %v3464, 1
      %v3576 = vsel %vm766, %v3573, %v3575
      %v3577 = vrot.slane %v3465, 1
      %v3578 = vrot.slane %v3466, 1
      %v3579 = vsel %vm766, %v3577, %v3578
      %v3580 = vrot.slane %v3467, 1
      %v3581 = vsel %vm766, %v3578, %v3580
      %v3582 = vrot.slane %v3468, 1
      %v3583 = vrot.slane %v3469, 1
      %v3584 = vsel %vm766, %v3582, %v3583
      %v3585 = vrot.slane %v3470, 1
      %v3586 = vsel %vm766, %v3583, %v3585
      %v3587 = vrot.slane %v3471, 1
      %v3588 = vrot.slane %v3472, 1
      %v3589 = vsel %vm766, %v3587, %v3588
      %v3590 = vrot.slane %v3473, 1
      %v3591 = vsel %vm766, %v3588, %v3590
      %v3592 = vrot.slane %v3474, 1
      %v3593 = vrot.slane %v3475, 1
      %v3594 = vsel %vm766, %v3592, %v3593
      %v3595 = vrot.slane %v3476, 1
      %v3596 = vsel %vm766, %v3593, %v3595
      %v3597 = vrot.slane %v3477, 1
      %v3598 = vrot.slane %v3478, 1
      %v3599 = vsel %vm766, %v3597, %v3598
      %v3600 = vrot.slane %v3479, 1
      %v3601 = vsel %vm766, %v3598, %v3600
      %v3602 = vrot.slane %v3480, 1
      %v3603 = vrot.slane %v3481, 1
      %v3604 = vsel %vm766, %v3602, %v3603
      %v3605 = vrot.slane %v3482, 1
      %v3606 = vsel %vm766, %v3603, %v3605
      %v3607 = vrot.slane %v3483, 1
      %v3608 = vrot.slane %v3484, 1
      %v3609 = vsel %vm766, %v3607, %v3608
      %v3610 = vrot.slane %v3485, 1
      %v3611 = vsel %vm766, %v3608, %v3610
      %v3612 = vrot.slane %v3486, 1
      %v3613 = vrot.slane %v3487, 1
      %v3614 = vsel %vm766, %v3612, %v3613
      %v3615 = vrot.slane %v3488, 1
      %v3616 = vsel %vm766, %v3613, %v3615
      %v3649 = vadd.f32 %v3405, %v3539
      %v3650 = vadd.f32 %v3406, %v3541
      %v3651 = vadd.f32 %v3407, %v3544
      %v3652 = vadd.f32 %v3408, %v3546
      %v3653 = vadd.f32 %v3409, %v3549
      %v3654 = vadd.f32 %v3410, %v3551
      %v3655 = vadd.f32 %v3411, %v3554
      %v3656 = vadd.f32 %v3412, %v3556
      %v3657 = vadd.f32 %v3413, %v3559
      %v3658 = vadd.f32 %v3414, %v3561
      %v3659 = vadd.f32 %v3415, %v3564
      %v3660 = vadd.f32 %v3416, %v3566
      %v3661 = vadd.f32 %v3417, %v3569
      %v3662 = vadd.f32 %v3418, %v3571
      %v3663 = vadd.f32 %v3419, %v3574
      %v3664 = vadd.f32 %v3420, %v3576
      %v3665 = vadd.f32 %v3421, %v3579
      %v3666 = vadd.f32 %v3422, %v3581
      %v3667 = vadd.f32 %v3423, %v3584
      %v3668 = vadd.f32 %v3424, %v3586
      %v3669 = vadd.f32 %v3425, %v3589
      %v3670 = vadd.f32 %v3426, %v3591
      %v3671 = vadd.f32 %v3427, %v3594
      %v3672 = vadd.f32 %v3428, %v3596
      %v3673 = vadd.f32 %v3429, %v3599
      %v3674 = vadd.f32 %v3430, %v3601
      %v3675 = vadd.f32 %v3431, %v3604
      %v3676 = vadd.f32 %v3432, %v3606
      %v3677 = vadd.f32 %v3433, %v3609
      %v3678 = vadd.f32 %v3434, %v3611
      %v3679 = vadd.f32 %v3435, %v3614
      %v3680 = vadd.f32 %v3436, %v3616
      %v3681 = vlaneseq
      %v3682 = vshrl.u32 %v3681, 7
      %v3683 = vsub.s32 5, %v3682
      %v3684 = vrot.slane %v2804, %v3683
      %v3685 = vmul.f32 %v538, %v3684
      %v3686 = vmul.f32 %v539, %v3684
      %v3687 = vmul.f32 %v540, %v3684
      %v3688 = vmul.f32 %v541, %v3684
      %v3689 = vmul.f32 %v542, %v3684
      %v3690 = vmul.f32 %v543, %v3684
      %v3691 = vmul.f32 %v544, %v3684
      %v3692 = vmul.f32 %v545, %v3684
      %v3693 = vmul.f32 %v546, %v3684
      %v3694 = vmul.f32 %v547, %v3684
      %v3695 = vmul.f32 %v548, %v3684
      %v3696 = vmul.f32 %v549, %v3684
      %v3697 = vmul.f32 %v550, %v3684
      %v3698 = vmul.f32 %v551, %v3684
      %v3699 = vmul.f32 %v552, %v3684
      %v3700 = vmul.f32 %v553, %v3684
      %v3701 = vmul.f32 %v554, %v3684
      %v3702 = vmul.f32 %v555, %v3684
      %v3703 = vmul.f32 %v556, %v3684
      %v3704 = vmul.f32 %v557, %v3684
      %v3705 = vmul.f32 %v558, %v3684
      %v3706 = vmul.f32 %v559, %v3684
      %v3707 = vmul.f32 %v560, %v3684
      %v3708 = vmul.f32 %v561, %v3684
      %v3709 = vmul.f32 %v562, %v3684
      %v3710 = vmul.f32 %v563, %v3684
      %v3711 = vmul.f32 %v564, %v3684
      %v3712 = vmul.f32 %v565, %v3684
      %v3713 = vmul.f32 %v566, %v3684
      %v3714 = vmul.f32 %v567, %v3684
      %v3715 = vmul.f32 %v568, %v3684
      %v3716 = vmul.f32 %v569, %v3684
      %v3717 = vmul.f32 %v570, %v3684
      %v3718 = vmul.f32 %v571, %v3684
      %v3719 = vmul.f32 %v572, %v3684
      %v3720 = vmul.f32 %v573, %v3684
      %v3721 = vmul.f32 %v574, %v3684
      %v3722 = vmul.f32 %v575, %v3684
      %v3723 = vmul.f32 %v576, %v3684
      %v3724 = vmul.f32 %v577, %v3684
      %v3725 = vmul.f32 %v578, %v3684
      %v3726 = vmul.f32 %v579, %v3684
      %v3727 = vmul.f32 %v580, %v3684
      %v3728 = vmul.f32 %v581, %v3684
      %v3729 = vmul.f32 %v582, %v3684
      %v3730 = vmul.f32 %v583, %v3684
      %v3731 = vmul.f32 %v584, %v3684
      %v3732 = vmul.f32 %v585, %v3684
      %v3781 = vrot.slane %v3685, 2
      %v3782 = vrot.slane %v3686, 2
      %v3783 = vsel %vm1011, %v3781, %v3782
      %v3784 = vrot.slane %v3687, 2
      %v3785 = vsel %vm1011, %v3782, %v3784
      %v3786 = vrot.slane %v3688, 2
      %v3787 = vrot.slane %v3689, 2
      %v3788 = vsel %vm1011, %v3786, %v3787
      %v3789 = vrot.slane %v3690, 2
      %v3790 = vsel %vm1011, %v3787, %v3789
      %v3791 = vrot.slane %v3691, 2
      %v3792 = vrot.slane %v3692, 2
      %v3793 = vsel %vm1011, %v3791, %v3792
      %v3794 = vrot.slane %v3693, 2
      %v3795 = vsel %vm1011, %v3792, %v3794
      %v3796 = vrot.slane %v3694, 2
      %v3797 = vrot.slane %v3695, 2
      %v3798 = vsel %vm1011, %v3796, %v3797
      %v3799 = vrot.slane %v3696, 2
      %v3800 = vsel %vm1011, %v3797, %v3799
      %v3801 = vrot.slane %v3697, 2
      %v3802 = vrot.slane %v3698, 2
      %v3803 = vsel %vm1011, %v3801, %v3802
      %v3804 = vrot.slane %v3699, 2
      %v3805 = vsel %vm1011, %v3802, %v3804
      %v3806 = vrot.slane %v3700, 2
      %v3807 = vrot.slane %v3701, 2
      %v3808 = vsel %vm1011, %v3806, %v3807
      %v3809 = vrot.slane %v3702, 2
      %v3810 = vsel %vm1011, %v3807, %v3809
      %v3811 = vrot.slane %v3703, 2
      %v3812 = vrot.slane %v3704, 2
      %v3813 = vsel %vm1011, %v3811, %v3812
      %v3814 = vrot.slane %v3705, 2
      %v3815 = vsel %vm1011, %v3812, %v3814
      %v3816 = vrot.slane %v3706, 2
      %v3817 = vrot.slane %v3707, 2
      %v3818 = vsel %vm1011, %v3816, %v3817
      %v3819 = vrot.slane %v3708, 2
      %v3820 = vsel %vm1011, %v3817, %v3819
      %v3821 = vrot.slane %v3709, 2
      %v3822 = vrot.slane %v3710, 2
      %v3823 = vsel %vm1011, %v3821, %v3822
      %v3824 = vrot.slane %v3711, 2
      %v3825 = vsel %vm1011, %v3822, %v3824
      %v3826 = vrot.slane %v3712, 2
      %v3827 = vrot.slane %v3713, 2
      %v3828 = vsel %vm1011, %v3826, %v3827
      %v3829 = vrot.slane %v3714, 2
      %v3830 = vsel %vm1011, %v3827, %v3829
      %v3831 = vrot.slane %v3715, 2
      %v3832 = vrot.slane %v3716, 2
      %v3833 = vsel %vm1011, %v3831, %v3832
      %v3834 = vrot.slane %v3717, 2
      %v3835 = vsel %vm1011, %v3832, %v3834
      %v3836 = vrot.slane %v3718, 2
      %v3837 = vrot.slane %v3719, 2
      %v3838 = vsel %vm1011, %v3836, %v3837
      %v3839 = vrot.slane %v3720, 2
      %v3840 = vsel %vm1011, %v3837, %v3839
      %v3841 = vrot.slane %v3721, 2
      %v3842 = vrot.slane %v3722, 2
      %v3843 = vsel %vm1011, %v3841, %v3842
      %v3844 = vrot.slane %v3723, 2
      %v3845 = vsel %vm1011, %v3842, %v3844
      %v3846 = vrot.slane %v3724, 2
      %v3847 = vrot.slane %v3725, 2
      %v3848 = vsel %vm1011, %v3846, %v3847
      %v3849 = vrot.slane %v3726, 2
      %v3850 = vsel %vm1011, %v3847, %v3849
      %v3851 = vrot.slane %v3727, 2
      %v3852 = vrot.slane %v3728, 2
      %v3853 = vsel %vm1011, %v3851, %v3852
      %v3854 = vrot.slane %v3729, 2
      %v3855 = vsel %vm1011, %v3852, %v3854
      %v3856 = vrot.slane %v3730, 2
      %v3857 = vrot.slane %v3731, 2
      %v3858 = vsel %vm1011, %v3856, %v3857
      %v3859 = vrot.slane %v3732, 2
      %v3860 = vsel %vm1011, %v3857, %v3859
      %v3893 = vadd.f32 %v3649, %v3783
      %v3894 = vadd.f32 %v3650, %v3785
      %v3895 = vadd.f32 %v3651, %v3788
      %v3896 = vadd.f32 %v3652, %v3790
      %v3897 = vadd.f32 %v3653, %v3793
      %v3898 = vadd.f32 %v3654, %v3795
      %v3899 = vadd.f32 %v3655, %v3798
      %v3900 = vadd.f32 %v3656, %v3800
      %v3901 = vadd.f32 %v3657, %v3803
      %v3902 = vadd.f32 %v3658, %v3805
      %v3903 = vadd.f32 %v3659, %v3808
      %v3904 = vadd.f32 %v3660, %v3810
      %v3905 = vadd.f32 %v3661, %v3813
      %v3906 = vadd.f32 %v3662, %v3815
      %v3907 = vadd.f32 %v3663, %v3818
      %v3908 = vadd.f32 %v3664, %v3820
      %v3909 = vadd.f32 %v3665, %v3823
      %v3910 = vadd.f32 %v3666, %v3825
      %v3911 = vadd.f32 %v3667, %v3828
      %v3912 = vadd.f32 %v3668, %v3830
      %v3913 = vadd.f32 %v3669, %v3833
      %v3914 = vadd.f32 %v3670, %v3835
      %v3915 = vadd.f32 %v3671, %v3838
      %v3916 = vadd.f32 %v3672, %v3840
      %v3917 = vadd.f32 %v3673, %v3843
      %v3918 = vadd.f32 %v3674, %v3845
      %v3919 = vadd.f32 %v3675, %v3848
      %v3920 = vadd.f32 %v3676, %v3850
      %v3921 = vadd.f32 %v3677, %v3853
      %v3922 = vadd.f32 %v3678, %v3855
      %v3923 = vadd.f32 %v3679, %v3858
      %v3924 = vadd.f32 %v3680, %v3860
      %v3925 = vlaneseq
      %v3926 = vshrl.u32 %v3925, 7
      %v3927 = vsub.s32 6, %v3926
      %v3928 = vrot.slane %v2804, %v3927
      %v3929 = vmul.f32 %v541, %v3928
      %v3930 = vmul.f32 %v542, %v3928
      %v3931 = vmul.f32 %v544, %v3928
      %v3932 = vmul.f32 %v545, %v3928
      %v3933 = vmul.f32 %v547, %v3928
      %v3934 = vmul.f32 %v548, %v3928
      %v3935 = vmul.f32 %v550, %v3928
      %v3936 = vmul.f32 %v551, %v3928
      %v3937 = vmul.f32 %v553, %v3928
      %v3938 = vmul.f32 %v554, %v3928
      %v3939 = vmul.f32 %v556, %v3928
      %v3940 = vmul.f32 %v557, %v3928
      %v3941 = vmul.f32 %v559, %v3928
      %v3942 = vmul.f32 %v560, %v3928
      %v3943 = vmul.f32 %v562, %v3928
      %v3944 = vmul.f32 %v563, %v3928
      %v3945 = vmul.f32 %v565, %v3928
      %v3946 = vmul.f32 %v566, %v3928
      %v3947 = vmul.f32 %v568, %v3928
      %v3948 = vmul.f32 %v569, %v3928
      %v3949 = vmul.f32 %v571, %v3928
      %v3950 = vmul.f32 %v572, %v3928
      %v3951 = vmul.f32 %v574, %v3928
      %v3952 = vmul.f32 %v575, %v3928
      %v3953 = vmul.f32 %v577, %v3928
      %v3954 = vmul.f32 %v578, %v3928
      %v3955 = vmul.f32 %v580, %v3928
      %v3956 = vmul.f32 %v581, %v3928
      %v3957 = vmul.f32 %v583, %v3928
      %v3958 = vmul.f32 %v584, %v3928
      %v3959 = vmul.f32 %v586, %v3928
      %v3960 = vmul.f32 %v587, %v3928
      %v3961 = vadd.f32 %v3893, %v3929
      %v3962 = vadd.f32 %v3894, %v3930
      %v3963 = vadd.f32 %v3895, %v3931
      %v3964 = vadd.f32 %v3896, %v3932
      %v3965 = vadd.f32 %v3897, %v3933
      %v3966 = vadd.f32 %v3898, %v3934
      %v3967 = vadd.f32 %v3899, %v3935
      %v3968 = vadd.f32 %v3900, %v3936
      %v3969 = vadd.f32 %v3901, %v3937
      %v3970 = vadd.f32 %v3902, %v3938
      %v3971 = vadd.f32 %v3903, %v3939
      %v3972 = vadd.f32 %v3904, %v3940
      %v3973 = vadd.f32 %v3905, %v3941
      %v3974 = vadd.f32 %v3906, %v3942
      %v3975 = vadd.f32 %v3907, %v3943
      %v3976 = vadd.f32 %v3908, %v3944
      %v3977 = vadd.f32 %v3909, %v3945
      %v3978 = vadd.f32 %v3910, %v3946
      %v3979 = vadd.f32 %v3911, %v3947
      %v3980 = vadd.f32 %v3912, %v3948
      %v3981 = vadd.f32 %v3913, %v3949
      %v3982 = vadd.f32 %v3914, %v3950
      %v3983 = vadd.f32 %v3915, %v3951
      %v3984 = vadd.f32 %v3916, %v3952
      %v3985 = vadd.f32 %v3917, %v3953
      %v3986 = vadd.f32 %v3918, %v3954
      %v3987 = vadd.f32 %v3919, %v3955
      %v3988 = vadd.f32 %v3920, %v3956
      %v3989 = vadd.f32 %v3921, %v3957
      %v3990 = vadd.f32 %v3922, %v3958
      %v3991 = vadd.f32 %v3923, %v3959
      %v3992 = vadd.f32 %v3924, %v3960
      %v3993 = vlaneseq
      %v3994 = vshrl.u32 %v3993, 7
      %v3995 = vsub.s32 7, %v3994
      %v3996 = vrot.slane %v2804, %v3995
      %v3997 = vmul.f32 %v541, %v3996
      %v3998 = vmul.f32 %v542, %v3996
      %v3999 = vmul.f32 %v543, %v3996
      %v4000 = vmul.f32 %v544, %v3996
      %v4001 = vmul.f32 %v545, %v3996
      %v4002 = vmul.f32 %v546, %v3996
      %v4003 = vmul.f32 %v547, %v3996
      %v4004 = vmul.f32 %v548, %v3996
      %v4005 = vmul.f32 %v549, %v3996
      %v4006 = vmul.f32 %v550, %v3996
      %v4007 = vmul.f32 %v551, %v3996
      %v4008 = vmul.f32 %v552, %v3996
      %v4009 = vmul.f32 %v553, %v3996
      %v4010 = vmul.f32 %v554, %v3996
      %v4011 = vmul.f32 %v555, %v3996
      %v4012 = vmul.f32 %v556, %v3996
      %v4013 = vmul.f32 %v557, %v3996
      %v4014 = vmul.f32 %v558, %v3996
      %v4015 = vmul.f32 %v559, %v3996
      %v4016 = vmul.f32 %v560, %v3996
      %v4017 = vmul.f32 %v561, %v3996
      %v4018 = vmul.f32 %v562, %v3996
      %v4019 = vmul.f32 %v563, %v3996
      %v4020 = vmul.f32 %v564, %v3996
      %v4021 = vmul.f32 %v565, %v3996
      %v4022 = vmul.f32 %v566, %v3996
      %v4023 = vmul.f32 %v567, %v3996
      %v4024 = vmul.f32 %v568, %v3996
      %v4025 = vmul.f32 %v569, %v3996
      %v4026 = vmul.f32 %v570, %v3996
      %v4027 = vmul.f32 %v571, %v3996
      %v4028 = vmul.f32 %v572, %v3996
      %v4029 = vmul.f32 %v573, %v3996
      %v4030 = vmul.f32 %v574, %v3996
      %v4031 = vmul.f32 %v575, %v3996
      %v4032 = vmul.f32 %v576, %v3996
      %v4033 = vmul.f32 %v577, %v3996
      %v4034 = vmul.f32 %v578, %v3996
      %v4035 = vmul.f32 %v579, %v3996
      %v4036 = vmul.f32 %v580, %v3996
      %v4037 = vmul.f32 %v581, %v3996
      %v4038 = vmul.f32 %v582, %v3996
      %v4039 = vmul.f32 %v583, %v3996
      %v4040 = vmul.f32 %v584, %v3996
      %v4041 = vmul.f32 %v585, %v3996
      %v4042 = vmul.f32 %v586, %v3996
      %v4043 = vmul.f32 %v587, %v3996
      %v4044 = vmul.f32 %v588, %v3996
      %v4093 = vrot.slane %v3997, 1
      %v4094 = vrot.slane %v3998, 1
      %v4095 = vsel %vm766, %v4093, %v4094
      %v4096 = vrot.slane %v3999, 1
      %v4097 = vsel %vm766, %v4094, %v4096
      %v4098 = vrot.slane %v4000, 1
      %v4099 = vrot.slane %v4001, 1
      %v4100 = vsel %vm766, %v4098, %v4099
      %v4101 = vrot.slane %v4002, 1
      %v4102 = vsel %vm766, %v4099, %v4101
      %v4103 = vrot.slane %v4003, 1
      %v4104 = vrot.slane %v4004, 1
      %v4105 = vsel %vm766, %v4103, %v4104
      %v4106 = vrot.slane %v4005, 1
      %v4107 = vsel %vm766, %v4104, %v4106
      %v4108 = vrot.slane %v4006, 1
      %v4109 = vrot.slane %v4007, 1
      %v4110 = vsel %vm766, %v4108, %v4109
      %v4111 = vrot.slane %v4008, 1
      %v4112 = vsel %vm766, %v4109, %v4111
      %v4113 = vrot.slane %v4009, 1
      %v4114 = vrot.slane %v4010, 1
      %v4115 = vsel %vm766, %v4113, %v4114
      %v4116 = vrot.slane %v4011, 1
      %v4117 = vsel %vm766, %v4114, %v4116
      %v4118 = vrot.slane %v4012, 1
      %v4119 = vrot.slane %v4013, 1
      %v4120 = vsel %vm766, %v4118, %v4119
      %v4121 = vrot.slane %v4014, 1
      %v4122 = vsel %vm766, %v4119, %v4121
      %v4123 = vrot.slane %v4015, 1
      %v4124 = vrot.slane %v4016, 1
      %v4125 = vsel %vm766, %v4123, %v4124
      %v4126 = vrot.slane %v4017, 1
      %v4127 = vsel %vm766, %v4124, %v4126
      %v4128 = vrot.slane %v4018, 1
      %v4129 = vrot.slane %v4019, 1
      %v4130 = vsel %vm766, %v4128, %v4129
      %v4131 = vrot.slane %v4020, 1
      %v4132 = vsel %vm766, %v4129, %v4131
      %v4133 = vrot.slane %v4021, 1
      %v4134 = vrot.slane %v4022, 1
      %v4135 = vsel %vm766, %v4133, %v4134
      %v4136 = vrot.slane %v4023, 1
      %v4137 = vsel %vm766, %v4134, %v4136
      %v4138 = vrot.slane %v4024, 1
      %v4139 = vrot.slane %v4025, 1
      %v4140 = vsel %vm766, %v4138, %v4139
      %v4141 = vrot.slane %v4026, 1
      %v4142 = vsel %vm766, %v4139, %v4141
      %v4143 = vrot.slane %v4027, 1
      %v4144 = vrot.slane %v4028, 1
      %v4145 = vsel %vm766, %v4143, %v4144
      %v4146 = vrot.slane %v4029, 1
      %v4147 = vsel %vm766, %v4144, %v4146
      %v4148 = vrot.slane %v4030, 1
      %v4149 = vrot.slane %v4031, 1
      %v4150 = vsel %vm766, %v4148, %v4149
      %v4151 = vrot.slane %v4032, 1
      %v4152 = vsel %vm766, %v4149, %v4151
      %v4153 = vrot.slane %v4033, 1
      %v4154 = vrot.slane %v4034, 1
      %v4155 = vsel %vm766, %v4153, %v4154
      %v4156 = vrot.slane %v4035, 1
      %v4157 = vsel %vm766, %v4154, %v4156
      %v4158 = vrot.slane %v4036, 1
      %v4159 = vrot.slane %v4037, 1
      %v4160 = vsel %vm766, %v4158, %v4159
      %v4161 = vrot.slane %v4038, 1
      %v4162 = vsel %vm766, %v4159, %v4161
      %v4163 = vrot.slane %v4039, 1
      %v4164 = vrot.slane %v4040, 1
      %v4165 = vsel %vm766, %v4163, %v4164
      %v4166 = vrot.slane %v4041, 1
      %v4167 = vsel %vm766, %v4164, %v4166
      %v4168 = vrot.slane %v4042, 1
      %v4169 = vrot.slane %v4043, 1
      %v4170 = vsel %vm766, %v4168, %v4169
      %v4171 = vrot.slane %v4044, 1
      %v4172 = vsel %vm766, %v4169, %v4171
      %v4205 = vadd.f32 %v3961, %v4095
      %v4206 = vadd.f32 %v3962, %v4097
      %v4207 = vadd.f32 %v3963, %v4100
      %v4208 = vadd.f32 %v3964, %v4102
      %v4209 = vadd.f32 %v3965, %v4105
      %v4210 = vadd.f32 %v3966, %v4107
      %v4211 = vadd.f32 %v3967, %v4110
      %v4212 = vadd.f32 %v3968, %v4112
      %v4213 = vadd.f32 %v3969, %v4115
      %v4214 = vadd.f32 %v3970, %v4117
      %v4215 = vadd.f32 %v3971, %v4120
      %v4216 = vadd.f32 %v3972, %v4122
      %v4217 = vadd.f32 %v3973, %v4125
      %v4218 = vadd.f32 %v3974, %v4127
      %v4219 = vadd.f32 %v3975, %v4130
      %v4220 = vadd.f32 %v3976, %v4132
      %v4221 = vadd.f32 %v3977, %v4135
      %v4222 = vadd.f32 %v3978, %v4137
      %v4223 = vadd.f32 %v3979, %v4140
      %v4224 = vadd.f32 %v3980, %v4142
      %v4225 = vadd.f32 %v3981, %v4145
      %v4226 = vadd.f32 %v3982, %v4147
      %v4227 = vadd.f32 %v3983, %v4150
      %v4228 = vadd.f32 %v3984, %v4152
      %v4229 = vadd.f32 %v3985, %v4155
      %v4230 = vadd.f32 %v3986, %v4157
      %v4231 = vadd.f32 %v3987, %v4160
      %v4232 = vadd.f32 %v3988, %v4162
      %v4233 = vadd.f32 %v3989, %v4165
      %v4234 = vadd.f32 %v3990, %v4167
      %v4235 = vadd.f32 %v3991, %v4170
      %v4236 = vadd.f32 %v3992, %v4172
      %v4237 = vlaneseq
      %v4238 = vshrl.u32 %v4237, 7
      %v4239 = vsub.s32 0, %v4238
      %v4240 = vrot.slane %v2805, %v4239
      %v4241 = vmul.f32 %v541, %v4240
      %v4242 = vmul.f32 %v542, %v4240
      %v4243 = vmul.f32 %v543, %v4240
      %v4244 = vmul.f32 %v544, %v4240
      %v4245 = vmul.f32 %v545, %v4240
      %v4246 = vmul.f32 %v546, %v4240
      %v4247 = vmul.f32 %v547, %v4240
      %v4248 = vmul.f32 %v548, %v4240
      %v4249 = vmul.f32 %v549, %v4240
      %v4250 = vmul.f32 %v550, %v4240
      %v4251 = vmul.f32 %v551, %v4240
      %v4252 = vmul.f32 %v552, %v4240
      %v4253 = vmul.f32 %v553, %v4240
      %v4254 = vmul.f32 %v554, %v4240
      %v4255 = vmul.f32 %v555, %v4240
      %v4256 = vmul.f32 %v556, %v4240
      %v4257 = vmul.f32 %v557, %v4240
      %v4258 = vmul.f32 %v558, %v4240
      %v4259 = vmul.f32 %v559, %v4240
      %v4260 = vmul.f32 %v560, %v4240
      %v4261 = vmul.f32 %v561, %v4240
      %v4262 = vmul.f32 %v562, %v4240
      %v4263 = vmul.f32 %v563, %v4240
      %v4264 = vmul.f32 %v564, %v4240
      %v4265 = vmul.f32 %v565, %v4240
      %v4266 = vmul.f32 %v566, %v4240
      %v4267 = vmul.f32 %v567, %v4240
      %v4268 = vmul.f32 %v568, %v4240
      %v4269 = vmul.f32 %v569, %v4240
      %v4270 = vmul.f32 %v570, %v4240
      %v4271 = vmul.f32 %v571, %v4240
      %v4272 = vmul.f32 %v572, %v4240
      %v4273 = vmul.f32 %v573, %v4240
      %v4274 = vmul.f32 %v574, %v4240
      %v4275 = vmul.f32 %v575, %v4240
      %v4276 = vmul.f32 %v576, %v4240
      %v4277 = vmul.f32 %v577, %v4240
      %v4278 = vmul.f32 %v578, %v4240
      %v4279 = vmul.f32 %v579, %v4240
      %v4280 = vmul.f32 %v580, %v4240
      %v4281 = vmul.f32 %v581, %v4240
      %v4282 = vmul.f32 %v582, %v4240
      %v4283 = vmul.f32 %v583, %v4240
      %v4284 = vmul.f32 %v584, %v4240
      %v4285 = vmul.f32 %v585, %v4240
      %v4286 = vmul.f32 %v586, %v4240
      %v4287 = vmul.f32 %v587, %v4240
      %v4288 = vmul.f32 %v588, %v4240
      %v4337 = vrot.slane %v4241, 2
      %v4338 = vrot.slane %v4242, 2
      %v4339 = vsel %vm1011, %v4337, %v4338
      %v4340 = vrot.slane %v4243, 2
      %v4341 = vsel %vm1011, %v4338, %v4340
      %v4342 = vrot.slane %v4244, 2
      %v4343 = vrot.slane %v4245, 2
      %v4344 = vsel %vm1011, %v4342, %v4343
      %v4345 = vrot.slane %v4246, 2
      %v4346 = vsel %vm1011, %v4343, %v4345
      %v4347 = vrot.slane %v4247, 2
      %v4348 = vrot.slane %v4248, 2
      %v4349 = vsel %vm1011, %v4347, %v4348
      %v4350 = vrot.slane %v4249, 2
      %v4351 = vsel %vm1011, %v4348, %v4350
      %v4352 = vrot.slane %v4250, 2
      %v4353 = vrot.slane %v4251, 2
      %v4354 = vsel %vm1011, %v4352, %v4353
      %v4355 = vrot.slane %v4252, 2
      %v4356 = vsel %vm1011, %v4353, %v4355
      %v4357 = vrot.slane %v4253, 2
      %v4358 = vrot.slane %v4254, 2
      %v4359 = vsel %vm1011, %v4357, %v4358
      %v4360 = vrot.slane %v4255, 2
      %v4361 = vsel %vm1011, %v4358, %v4360
      %v4362 = vrot.slane %v4256, 2
      %v4363 = vrot.slane %v4257, 2
      %v4364 = vsel %vm1011, %v4362, %v4363
      %v4365 = vrot.slane %v4258, 2
      %v4366 = vsel %vm1011, %v4363, %v4365
      %v4367 = vrot.slane %v4259, 2
      %v4368 = vrot.slane %v4260, 2
      %v4369 = vsel %vm1011, %v4367, %v4368
      %v4370 = vrot.slane %v4261, 2
      %v4371 = vsel %vm1011, %v4368, %v4370
      %v4372 = vrot.slane %v4262, 2
      %v4373 = vrot.slane %v4263, 2
      %v4374 = vsel %vm1011, %v4372, %v4373
      %v4375 = vrot.slane %v4264, 2
      %v4376 = vsel %vm1011, %v4373, %v4375
      %v4377 = vrot.slane %v4265, 2
      %v4378 = vrot.slane %v4266, 2
      %v4379 = vsel %vm1011, %v4377, %v4378
      %v4380 = vrot.slane %v4267, 2
      %v4381 = vsel %vm1011, %v4378, %v4380
      %v4382 = vrot.slane %v4268, 2
      %v4383 = vrot.slane %v4269, 2
      %v4384 = vsel %vm1011, %v4382, %v4383
      %v4385 = vrot.slane %v4270, 2
      %v4386 = vsel %vm1011, %v4383, %v4385
      %v4387 = vrot.slane %v4271, 2
      %v4388 = vrot.slane %v4272, 2
      %v4389 = vsel %vm1011, %v4387, %v4388
      %v4390 = vrot.slane %v4273, 2
      %v4391 = vsel %vm1011, %v4388, %v4390
      %v4392 = vrot.slane %v4274, 2
      %v4393 = vrot.slane %v4275, 2
      %v4394 = vsel %vm1011, %v4392, %v4393
      %v4395 = vrot.slane %v4276, 2
      %v4396 = vsel %vm1011, %v4393, %v4395
      %v4397 = vrot.slane %v4277, 2
      %v4398 = vrot.slane %v4278, 2
      %v4399 = vsel %vm1011, %v4397, %v4398
      %v4400 = vrot.slane %v4279, 2
      %v4401 = vsel %vm1011, %v4398, %v4400
      %v4402 = vrot.slane %v4280, 2
      %v4403 = vrot.slane %v4281, 2
      %v4404 = vsel %vm1011, %v4402, %v4403
      %v4405 = vrot.slane %v4282, 2
      %v4406 = vsel %vm1011, %v4403, %v4405
      %v4407 = vrot.slane %v4283, 2
      %v4408 = vrot.slane %v4284, 2
      %v4409 = vsel %vm1011, %v4407, %v4408
      %v4410 = vrot.slane %v4285, 2
      %v4411 = vsel %vm1011, %v4408, %v4410
      %v4412 = vrot.slane %v4286, 2
      %v4413 = vrot.slane %v4287, 2
      %v4414 = vsel %vm1011, %v4412, %v4413
      %v4415 = vrot.slane %v4288, 2
      %v4416 = vsel %vm1011, %v4413, %v4415
      %v4449 = vadd.f32 %v4205, %v4339
      %v4450 = vadd.f32 %v4206, %v4341
      %v4451 = vadd.f32 %v4207, %v4344
      %v4452 = vadd.f32 %v4208, %v4346
      %v4453 = vadd.f32 %v4209, %v4349
      %v4454 = vadd.f32 %v4210, %v4351
      %v4455 = vadd.f32 %v4211, %v4354
      %v4456 = vadd.f32 %v4212, %v4356
      %v4457 = vadd.f32 %v4213, %v4359
      %v4458 = vadd.f32 %v4214, %v4361
      %v4459 = vadd.f32 %v4215, %v4364
      %v4460 = vadd.f32 %v4216, %v4366
      %v4461 = vadd.f32 %v4217, %v4369
      %v4462 = vadd.f32 %v4218, %v4371
      %v4463 = vadd.f32 %v4219, %v4374
      %v4464 = vadd.f32 %v4220, %v4376
      %v4465 = vadd.f32 %v4221, %v4379
      %v4466 = vadd.f32 %v4222, %v4381
      %v4467 = vadd.f32 %v4223, %v4384
      %v4468 = vadd.f32 %v4224, %v4386
      %v4469 = vadd.f32 %v4225, %v4389
      %v4470 = vadd.f32 %v4226, %v4391
      %v4471 = vadd.f32 %v4227, %v4394
      %v4472 = vadd.f32 %v4228, %v4396
      %v4473 = vadd.f32 %v4229, %v4399
      %v4474 = vadd.f32 %v4230, %v4401
      %v4475 = vadd.f32 %v4231, %v4404
      %v4476 = vadd.f32 %v4232, %v4406
      %v4477 = vadd.f32 %v4233, %v4409
      %v4478 = vadd.f32 %v4234, %v4411
      %v4479 = vadd.f32 %v4235, %v4414
      %v4480 = vadd.f32 %v4236, %v4416
      %v4481 = vmax.f32 %v4449, 0.0
      %v4482 = vmax.f32 %v4450, 0.0
      %v4483 = vmax.f32 %v4451, 0.0
      %v4484 = vmax.f32 %v4452, 0.0
      %v4485 = vmax.f32 %v4453, 0.0
      %v4486 = vmax.f32 %v4454, 0.0
      %v4487 = vmax.f32 %v4455, 0.0
      %v4488 = vmax.f32 %v4456, 0.0
      %v4489 = vmax.f32 %v4457, 0.0
      %v4490 = vmax.f32 %v4458, 0.0
      %v4491 = vmax.f32 %v4459, 0.0
      %v4492 = vmax.f32 %v4460, 0.0
      %v4493 = vmax.f32 %v4461, 0.0
      %v4494 = vmax.f32 %v4462, 0.0
      %v4495 = vmax.f32 %v4463, 0.0
      %v4496 = vmax.f32 %v4464, 0.0
      %v4497 = vmax.f32 %v4465, 0.0
      %v4498 = vmax.f32 %v4466, 0.0
      %v4499 = vmax.f32 %v4467, 0.0
      %v4500 = vmax.f32 %v4468, 0.0
      %v4501 = vmax.f32 %v4469, 0.0
      %v4502 = vmax.f32 %v4470, 0.0
      %v4503 = vmax.f32 %v4471, 0.0
      %v4504 = vmax.f32 %v4472, 0.0
      %v4505 = vmax.f32 %v4473, 0.0
      %v4506 = vmax.f32 %v4474, 0.0
      %v4507 = vmax.f32 %v4475, 0.0
      %v4508 = vmax.f32 %v4476, 0.0
      %v4509 = vmax.f32 %v4477, 0.0
      %v4510 = vmax.f32 %v4478, 0.0
      %v4511 = vmax.f32 %v4479, 0.0
      %v4512 = vmax.f32 %v4480, 0.0
      %v4513 = vld [vmem:[%s7] sm:$0xff]
      %v4514 = vld [vmem:[%s7 + $0x8] sm:$0x1]
      %v4515 = vld [vmem:[%s8] sm:$0x1]
      %v4517 = vlaneseq
      %v4518 = vshrl.u32 %v4517, 7
      %v4519 = vsub.s32 0, %v4518
      %v4520 = vrot.slane %v4515, %v4519
      %v4522 = vlaneseq
      %v4523 = vshrl.u32 %v4522, 7
      %v4524 = vsub.s32 0, %v4523
      %v4525 = vrot.slane %v4513, %v4524
      %v4526 = vmul.f32 %v2750, %v4525
      %v4527 = vmul.f32 %v2751, %v4525
      %v4528 = vmul.f32 %v2753, %v4525
      %v4529 = vmul.f32 %v2754, %v4525
      %v4530 = vmul.f32 %v2756, %v4525
      %v4531 = vmul.f32 %v2757, %v4525
      %v4532 = vmul.f32 %v2759, %v4525
      %v4533 = vmul.f32 %v2760, %v4525
      %v4534 = vmul.f32 %v2762, %v4525
      %v4535 = vmul.f32 %v2763, %v4525
      %v4536 = vmul.f32 %v2765, %v4525
      %v4537 = vmul.f32 %v2766, %v4525
      %v4538 = vmul.f32 %v2768, %v4525
      %v4539 = vmul.f32 %v2769, %v4525
      %v4540 = vmul.f32 %v2771, %v4525
      %v4541 = vmul.f32 %v2772, %v4525
      %v4542 = vmul.f32 %v2774, %v4525
      %v4543 = vmul.f32 %v2775, %v4525
      %v4544 = vmul.f32 %v2777, %v4525
      %v4545 = vmul.f32 %v2778, %v4525
      %v4546 = vmul.f32 %v2780, %v4525
      %v4547 = vmul.f32 %v2781, %v4525
      %v4548 = vmul.f32 %v2783, %v4525
      %v4549 = vmul.f32 %v2784, %v4525
      %v4550 = vmul.f32 %v2786, %v4525
      %v4551 = vmul.f32 %v2787, %v4525
      %v4552 = vmul.f32 %v2789, %v4525
      %v4553 = vmul.f32 %v2790, %v4525
      %v4554 = vmul.f32 %v2792, %v4525
      %v4555 = vmul.f32 %v2793, %v4525
      %v4556 = vmul.f32 %v2795, %v4525
      %v4557 = vmul.f32 %v2796, %v4525
      %v4558 = vadd.f32 %v4520, %v4526
      %v4559 = vadd.f32 %v4520, %v4527
      %v4560 = vadd.f32 %v4520, %v4528
      %v4561 = vadd.f32 %v4520, %v4529
      %v4562 = vadd.f32 %v4520, %v4530
      %v4563 = vadd.f32 %v4520, %v4531
      %v4564 = vadd.f32 %v4520, %v4532
      %v4565 = vadd.f32 %v4520, %v4533
      %v4566 = vadd.f32 %v4520, %v4534
      %v4567 = vadd.f32 %v4520, %v4535
      %v4568 = vadd.f32 %v4520, %v4536
      %v4569 = vadd.f32 %v4520, %v4537
      %v4570 = vadd.f32 %v4520, %v4538
      %v4571 = vadd.f32 %v4520, %v4539
      %v4572 = vadd.f32 %v4520, %v4540
      %v4573 = vadd.f32 %v4520, %v4541
      %v4574 = vadd.f32 %v4520, %v4542
      %v4575 = vadd.f32 %v4520, %v4543
      %v4576 = vadd.f32 %v4520, %v4544
      %v4577 = vadd.f32 %v4520, %v4545
      %v4578 = vadd.f32 %v4520, %v4546
      %v4579 = vadd.f32 %v4520, %v4547
      %v4580 = vadd.f32 %v4520, %v4548
      %v4581 = vadd.f32 %v4520, %v4549
      %v4582 = vadd.f32 %v4520, %v4550
      %v4583 = vadd.f32 %v4520, %v4551
      %v4584 = vadd.f32 %v4520, %v4552
      %v4585 = vadd.f32 %v4520, %v4553
      %v4586 = vadd.f32 %v4520, %v4554
      %v4587 = vadd.f32 %v4520, %v4555
      %v4588 = vadd.f32 %v4520, %v4556
      %v4589 = vadd.f32 %v4520, %v4557
      %v4590 = vlaneseq
      %v4591 = vshrl.u32 %v4590, 7
      %v4592 = vsub.s32 1, %v4591
      %v4593 = vrot.slane %v4513, %v4592
      %v4594 = vmul.f32 %v2750, %v4593
      %v4595 = vmul.f32 %v2751, %v4593
      %v4596 = vmul.f32 %v2752, %v4593
      %v4597 = vmul.f32 %v2753, %v4593
      %v4598 = vmul.f32 %v2754, %v4593
      %v4599 = vmul.f32 %v2755, %v4593
      %v4600 = vmul.f32 %v2756, %v4593
      %v4601 = vmul.f32 %v2757, %v4593
      %v4602 = vmul.f32 %v2758, %v4593
      %v4603 = vmul.f32 %v2759, %v4593
      %v4604 = vmul.f32 %v2760, %v4593
      %v4605 = vmul.f32 %v2761, %v4593
      %v4606 = vmul.f32 %v2762, %v4593
      %v4607 = vmul.f32 %v2763, %v4593
      %v4608 = vmul.f32 %v2764, %v4593
      %v4609 = vmul.f32 %v2765, %v4593
      %v4610 = vmul.f32 %v2766, %v4593
      %v4611 = vmul.f32 %v2767, %v4593
      %v4612 = vmul.f32 %v2768, %v4593
      %v4613 = vmul.f32 %v2769, %v4593
      %v4614 = vmul.f32 %v2770, %v4593
      %v4615 = vmul.f32 %v2771, %v4593
      %v4616 = vmul.f32 %v2772, %v4593
      %v4617 = vmul.f32 %v2773, %v4593
      %v4618 = vmul.f32 %v2774, %v4593
      %v4619 = vmul.f32 %v2775, %v4593
      %v4620 = vmul.f32 %v2776, %v4593
      %v4621 = vmul.f32 %v2777, %v4593
      %v4622 = vmul.f32 %v2778, %v4593
      %v4623 = vmul.f32 %v2779, %v4593
      %v4624 = vmul.f32 %v2780, %v4593
      %v4625 = vmul.f32 %v2781, %v4593
      %v4626 = vmul.f32 %v2782, %v4593
      %v4627 = vmul.f32 %v2783, %v4593
      %v4628 = vmul.f32 %v2784, %v4593
      %v4629 = vmul.f32 %v2785, %v4593
      %v4630 = vmul.f32 %v2786, %v4593
      %v4631 = vmul.f32 %v2787, %v4593
      %v4632 = vmul.f32 %v2788, %v4593
      %v4633 = vmul.f32 %v2789, %v4593
      %v4634 = vmul.f32 %v2790, %v4593
      %v4635 = vmul.f32 %v2791, %v4593
      %v4636 = vmul.f32 %v2792, %v4593
      %v4637 = vmul.f32 %v2793, %v4593
      %v4638 = vmul.f32 %v2794, %v4593
      %v4639 = vmul.f32 %v2795, %v4593
      %v4640 = vmul.f32 %v2796, %v4593
      %v4641 = vmul.f32 %v2797, %v4593
      %v4690 = vrot.slane %v4594, 1
      %v4691 = vrot.slane %v4595, 1
      %v4692 = vsel %vm766, %v4690, %v4691
      %v4693 = vrot.slane %v4596, 1
      %v4694 = vsel %vm766, %v4691, %v4693
      %v4695 = vrot.slane %v4597, 1
      %v4696 = vrot.slane %v4598, 1
      %v4697 = vsel %vm766, %v4695, %v4696
      %v4698 = vrot.slane %v4599, 1
      %v4699 = vsel %vm766, %v4696, %v4698
      %v4700 = vrot.slane %v4600, 1
      %v4701 = vrot.slane %v4601, 1
      %v4702 = vsel %vm766, %v4700, %v4701
      %v4703 = vrot.slane %v4602, 1
      %v4704 = vsel %vm766, %v4701, %v4703
      %v4705 = vrot.slane %v4603, 1
      %v4706 = vrot.slane %v4604, 1
      %v4707 = vsel %vm766, %v4705, %v4706
      %v4708 = vrot.slane %v4605, 1
      %v4709 = vsel %vm766, %v4706, %v4708
      %v4710 = vrot.slane %v4606, 1
      %v4711 = vrot.slane %v4607, 1
      %v4712 = vsel %vm766, %v4710, %v4711
      %v4713 = vrot.slane %v4608, 1
      %v4714 = vsel %vm766, %v4711, %v4713
      %v4715 = vrot.slane %v4609, 1
      %v4716 = vrot.slane %v4610, 1
      %v4717 = vsel %vm766, %v4715, %v4716
      %v4718 = vrot.slane %v4611, 1
      %v4719 = vsel %vm766, %v4716, %v4718
      %v4720 = vrot.slane %v4612, 1
      %v4721 = vrot.slane %v4613, 1
      %v4722 = vsel %vm766, %v4720, %v4721
      %v4723 = vrot.slane %v4614, 1
      %v4724 = vsel %vm766, %v4721, %v4723
      %v4725 = vrot.slane %v4615, 1
      %v4726 = vrot.slane %v4616, 1
      %v4727 = vsel %vm766, %v4725, %v4726
      %v4728 = vrot.slane %v4617, 1
      %v4729 = vsel %vm766, %v4726, %v4728
      %v4730 = vrot.slane %v4618, 1
      %v4731 = vrot.slane %v4619, 1
      %v4732 = vsel %vm766, %v4730, %v4731
      %v4733 = vrot.slane %v4620, 1
      %v4734 = vsel %vm766, %v4731, %v4733
      %v4735 = vrot.slane %v4621, 1
      %v4736 = vrot.slane %v4622, 1
      %v4737 = vsel %vm766, %v4735, %v4736
      %v4738 = vrot.slane %v4623, 1
      %v4739 = vsel %vm766, %v4736, %v4738
      %v4740 = vrot.slane %v4624, 1
      %v4741 = vrot.slane %v4625, 1
      %v4742 = vsel %vm766, %v4740, %v4741
      %v4743 = vrot.slane %v4626, 1
      %v4744 = vsel %vm766, %v4741, %v4743
      %v4745 = vrot.slane %v4627, 1
      %v4746 = vrot.slane %v4628, 1
      %v4747 = vsel %vm766, %v4745, %v4746
      %v4748 = vrot.slane %v4629, 1
      %v4749 = vsel %vm766, %v4746, %v4748
      %v4750 = vrot.slane %v4630, 1
      %v4751 = vrot.slane %v4631, 1
      %v4752 = vsel %vm766, %v4750, %v4751
      %v4753 = vrot.slane %v4632, 1
      %v4754 = vsel %vm766, %v4751, %v4753
      %v4755 = vrot.slane %v4633, 1
      %v4756 = vrot.slane %v4634, 1
      %v4757 = vsel %vm766, %v4755, %v4756
      %v4758 = vrot.slane %v4635, 1
      %v4759 = vsel %vm766, %v4756, %v4758
      %v4760 = vrot.slane %v4636, 1
      %v4761 = vrot.slane %v4637, 1
      %v4762 = vsel %vm766, %v4760, %v4761
      %v4763 = vrot.slane %v4638, 1
      %v4764 = vsel %vm766, %v4761, %v4763
      %v4765 = vrot.slane %v4639, 1
      %v4766 = vrot.slane %v4640, 1
      %v4767 = vsel %vm766, %v4765, %v4766
      %v4768 = vrot.slane %v4641, 1
      %v4769 = vsel %vm766, %v4766, %v4768
      %v4802 = vadd.f32 %v4558, %v4692
      %v4803 = vadd.f32 %v4559, %v4694
      %v4804 = vadd.f32 %v4560, %v4697
      %v4805 = vadd.f32 %v4561, %v4699
      %v4806 = vadd.f32 %v4562, %v4702
      %v4807 = vadd.f32 %v4563, %v4704
      %v4808 = vadd.f32 %v4564, %v4707
      %v4809 = vadd.f32 %v4565, %v4709
      %v4810 = vadd.f32 %v4566, %v4712
      %v4811 = vadd.f32 %v4567, %v4714
      %v4812 = vadd.f32 %v4568, %v4717
      %v4813 = vadd.f32 %v4569, %v4719
      %v4814 = vadd.f32 %v4570, %v4722
      %v4815 = vadd.f32 %v4571, %v4724
      %v4816 = vadd.f32 %v4572, %v4727
      %v4817 = vadd.f32 %v4573, %v4729
      %v4818 = vadd.f32 %v4574, %v4732
      %v4819 = vadd.f32 %v4575, %v4734
      %v4820 = vadd.f32 %v4576, %v4737
      %v4821 = vadd.f32 %v4577, %v4739
      %v4822 = vadd.f32 %v4578, %v4742
      %v4823 = vadd.f32 %v4579, %v4744
      %v4824 = vadd.f32 %v4580, %v4747
      %v4825 = vadd.f32 %v4581, %v4749
      %v4826 = vadd.f32 %v4582, %v4752
      %v4827 = vadd.f32 %v4583, %v4754
      %v4828 = vadd.f32 %v4584, %v4757
      %v4829 = vadd.f32 %v4585, %v4759
      %v4830 = vadd.f32 %v4586, %v4762
      %v4831 = vadd.f32 %v4587, %v4764
      %v4832 = vadd.f32 %v4588, %v4767
      %v4833 = vadd.f32 %v4589, %v4769
      %v4834 = vlaneseq
      %v4835 = vshrl.u32 %v4834, 7
      %v4836 = vsub.s32 2, %v4835
      %v4837 = vrot.slane %v4513, %v4836
      %v4838 = vmul.f32 %v2750, %v4837
      %v4839 = vmul.f32 %v2751, %v4837
      %v4840 = vmul.f32 %v2752, %v4837
      %v4841 = vmul.f32 %v2753, %v4837
      %v4842 = vmul.f32 %v2754, %v4837
      %v4843 = vmul.f32 %v2755, %v4837
      %v4844 = vmul.f32 %v2756, %v4837
      %v4845 = vmul.f32 %v2757, %v4837
      %v4846 = vmul.f32 %v2758, %v4837
      %v4847 = vmul.f32 %v2759, %v4837
      %v4848 = vmul.f32 %v2760, %v4837
      %v4849 = vmul.f32 %v2761, %v4837
      %v4850 = vmul.f32 %v2762, %v4837
      %v4851 = vmul.f32 %v2763, %v4837
      %v4852 = vmul.f32 %v2764, %v4837
      %v4853 = vmul.f32 %v2765, %v4837
      %v4854 = vmul.f32 %v2766, %v4837
      %v4855 = vmul.f32 %v2767, %v4837
      %v4856 = vmul.f32 %v2768, %v4837
      %v4857 = vmul.f32 %v2769, %v4837
      %v4858 = vmul.f32 %v2770, %v4837
      %v4859 = vmul.f32 %v2771, %v4837
      %v4860 = vmul.f32 %v2772, %v4837
      %v4861 = vmul.f32 %v2773, %v4837
      %v4862 = vmul.f32 %v2774, %v4837
      %v4863 = vmul.f32 %v2775, %v4837
      %v4864 = vmul.f32 %v2776, %v4837
      %v4865 = vmul.f32 %v2777, %v4837
      %v4866 = vmul.f32 %v2778, %v4837
      %v4867 = vmul.f32 %v2779, %v4837
      %v4868 = vmul.f32 %v2780, %v4837
      %v4869 = vmul.f32 %v2781, %v4837
      %v4870 = vmul.f32 %v2782, %v4837
      %v4871 = vmul.f32 %v2783, %v4837
      %v4872 = vmul.f32 %v2784, %v4837
      %v4873 = vmul.f32 %v2785, %v4837
      %v4874 = vmul.f32 %v2786, %v4837
      %v4875 = vmul.f32 %v2787, %v4837
      %v4876 = vmul.f32 %v2788, %v4837
      %v4877 = vmul.f32 %v2789, %v4837
      %v4878 = vmul.f32 %v2790, %v4837
      %v4879 = vmul.f32 %v2791, %v4837
      %v4880 = vmul.f32 %v2792, %v4837
      %v4881 = vmul.f32 %v2793, %v4837
      %v4882 = vmul.f32 %v2794, %v4837
      %v4883 = vmul.f32 %v2795, %v4837
      %v4884 = vmul.f32 %v2796, %v4837
      %v4885 = vmul.f32 %v2797, %v4837
      %v4934 = vrot.slane %v4838, 2
      %v4935 = vrot.slane %v4839, 2
      %v4936 = vsel %vm1011, %v4934, %v4935
      %v4937 = vrot.slane %v4840, 2
      %v4938 = vsel %vm1011, %v4935, %v4937
      %v4939 = vrot.slane %v4841, 2
      %v4940 = vrot.slane %v4842, 2
      %v4941 = vsel %vm1011, %v4939, %v4940
      %v4942 = vrot.slane %v4843, 2
      %v4943 = vsel %vm1011, %v4940, %v4942
      %v4944 = vrot.slane %v4844, 2
      %v4945 = vrot.slane %v4845, 2
      %v4946 = vsel %vm1011, %v4944, %v4945
      %v4947 = vrot.slane %v4846, 2
      %v4948 = vsel %vm1011, %v4945, %v4947
      %v4949 = vrot.slane %v4847, 2
      %v4950 = vrot.slane %v4848, 2
      %v4951 = vsel %vm1011, %v4949, %v4950
      %v4952 = vrot.slane %v4849, 2
      %v4953 = vsel %vm1011, %v4950, %v4952
      %v4954 = vrot.slane %v4850, 2
      %v4955 = vrot.slane %v4851, 2
      %v4956 = vsel %vm1011, %v4954, %v4955
      %v4957 = vrot.slane %v4852, 2
      %v4958 = vsel %vm1011, %v4955, %v4957
      %v4959 = vrot.slane %v4853, 2
      %v4960 = vrot.slane %v4854, 2
      %v4961 = vsel %vm1011, %v4959, %v4960
      %v4962 = vrot.slane %v4855, 2
      %v4963 = vsel %vm1011, %v4960, %v4962
      %v4964 = vrot.slane %v4856, 2
      %v4965 = vrot.slane %v4857, 2
      %v4966 = vsel %vm1011, %v4964, %v4965
      %v4967 = vrot.slane %v4858, 2
      %v4968 = vsel %vm1011, %v4965, %v4967
      %v4969 = vrot.slane %v4859, 2
      %v4970 = vrot.slane %v4860, 2
      %v4971 = vsel %vm1011, %v4969, %v4970
      %v4972 = vrot.slane %v4861, 2
      %v4973 = vsel %vm1011, %v4970, %v4972
      %v4974 = vrot.slane %v4862, 2
      %v4975 = vrot.slane %v4863, 2
      %v4976 = vsel %vm1011, %v4974, %v4975
      %v4977 = vrot.slane %v4864, 2
      %v4978 = vsel %vm1011, %v4975, %v4977
      %v4979 = vrot.slane %v4865, 2
      %v4980 = vrot.slane %v4866, 2
      %v4981 = vsel %vm1011, %v4979, %v4980
      %v4982 = vrot.slane %v4867, 2
      %v4983 = vsel %vm1011, %v4980, %v4982
      %v4984 = vrot.slane %v4868, 2
      %v4985 = vrot.slane %v4869, 2
      %v4986 = vsel %vm1011, %v4984, %v4985
      %v4987 = vrot.slane %v4870, 2
      %v4988 = vsel %vm1011, %v4985, %v4987
      %v4989 = vrot.slane %v4871, 2
      %v4990 = vrot.slane %v4872, 2
      %v4991 = vsel %vm1011, %v4989, %v4990
      %v4992 = vrot.slane %v4873, 2
      %v4993 = vsel %vm1011, %v4990, %v4992
      %v4994 = vrot.slane %v4874, 2
      %v4995 = vrot.slane %v4875, 2
      %v4996 = vsel %vm1011, %v4994, %v4995
      %v4997 = vrot.slane %v4876, 2
      %v4998 = vsel %vm1011, %v4995, %v4997
      %v4999 = vrot.slane %v4877, 2
      %v5000 = vrot.slane %v4878, 2
      %v5001 = vsel %vm1011, %v4999, %v5000
      %v5002 = vrot.slane %v4879, 2
      %v5003 = vsel %vm1011, %v5000, %v5002
      %v5004 = vrot.slane %v4880, 2
      %v5005 = vrot.slane %v4881, 2
      %v5006 = vsel %vm1011, %v5004, %v5005
      %v5007 = vrot.slane %v4882, 2
      %v5008 = vsel %vm1011, %v5005, %v5007
      %v5009 = vrot.slane %v4883, 2
      %v5010 = vrot.slane %v4884, 2
      %v5011 = vsel %vm1011, %v5009, %v5010
      %v5012 = vrot.slane %v4885, 2
      %v5013 = vsel %vm1011, %v5010, %v5012
      %v5046 = vadd.f32 %v4802, %v4936
      %v5047 = vadd.f32 %v4803, %v4938
      %v5048 = vadd.f32 %v4804, %v4941
      %v5049 = vadd.f32 %v4805, %v4943
      %v5050 = vadd.f32 %v4806, %v4946
      %v5051 = vadd.f32 %v4807, %v4948
      %v5052 = vadd.f32 %v4808, %v4951
      %v5053 = vadd.f32 %v4809, %v4953
      %v5054 = vadd.f32 %v4810, %v4956
      %v5055 = vadd.f32 %v4811, %v4958
      %v5056 = vadd.f32 %v4812, %v4961
      %v5057 = vadd.f32 %v4813, %v4963
      %v5058 = vadd.f32 %v4814, %v4966
      %v5059 = vadd.f32 %v4815, %v4968
      %v5060 = vadd.f32 %v4816, %v4971
      %v5061 = vadd.f32 %v4817, %v4973
      %v5062 = vadd.f32 %v4818, %v4976
      %v5063 = vadd.f32 %v4819, %v4978
      %v5064 = vadd.f32 %v4820, %v4981
      %v5065 = vadd.f32 %v4821, %v4983
      %v5066 = vadd.f32 %v4822, %v4986
      %v5067 = vadd.f32 %v4823, %v4988
      %v5068 = vadd.f32 %v4824, %v4991
      %v5069 = vadd.f32 %v4825, %v4993
      %v5070 = vadd.f32 %v4826, %v4996
      %v5071 = vadd.f32 %v4827, %v4998
      %v5072 = vadd.f32 %v4828, %v5001
      %v5073 = vadd.f32 %v4829, %v5003
      %v5074 = vadd.f32 %v4830, %v5006
      %v5075 = vadd.f32 %v4831, %v5008
      %v5076 = vadd.f32 %v4832, %v5011
      %v5077 = vadd.f32 %v4833, %v5013
      %v5078 = vlaneseq
      %v5079 = vshrl.u32 %v5078, 7
      %v5080 = vsub.s32 3, %v5079
      %v5081 = vrot.slane %v4513, %v5080
      %v5082 = vmul.f32 %v2753, %v5081
      %v5083 = vmul.f32 %v2754, %v5081
      %v5084 = vmul.f32 %v2756, %v5081
      %v5085 = vmul.f32 %v2757, %v5081
      %v5086 = vmul.f32 %v2759, %v5081
      %v5087 = vmul.f32 %v2760, %v5081
      %v5088 = vmul.f32 %v2762, %v5081
      %v5089 = vmul.f32 %v2763, %v5081
      %v5090 = vmul.f32 %v2765, %v5081
      %v5091 = vmul.f32 %v2766, %v5081
      %v5092 = vmul.f32 %v2768, %v5081
      %v5093 = vmul.f32 %v2769, %v5081
      %v5094 = vmul.f32 %v2771, %v5081
      %v5095 = vmul.f32 %v2772, %v5081
      %v5096 = vmul.f32 %v2774, %v5081
      %v5097 = vmul.f32 %v2775, %v5081
      %v5098 = vmul.f32 %v2777, %v5081
      %v5099 = vmul.f32 %v2778, %v5081
      %v5100 = vmul.f32 %v2780, %v5081
      %v5101 = vmul.f32 %v2781, %v5081
      %v5102 = vmul.f32 %v2783, %v5081
      %v5103 = vmul.f32 %v2784, %v5081
      %v5104 = vmul.f32 %v2786, %v5081
      %v5105 = vmul.f32 %v2787, %v5081
      %v5106 = vmul.f32 %v2789, %v5081
      %v5107 = vmul.f32 %v2790, %v5081
      %v5108 = vmul.f32 %v2792, %v5081
      %v5109 = vmul.f32 %v2793, %v5081
      %v5110 = vmul.f32 %v2795, %v5081
      %v5111 = vmul.f32 %v2796, %v5081
      %v5112 = vmul.f32 %v2798, %v5081
      %v5113 = vmul.f32 %v2799, %v5081
      %v5114 = vadd.f32 %v5046, %v5082
      %v5115 = vadd.f32 %v5047, %v5083
      %v5116 = vadd.f32 %v5048, %v5084
      %v5117 = vadd.f32 %v5049, %v5085
      %v5118 = vadd.f32 %v5050, %v5086
      %v5119 = vadd.f32 %v5051, %v5087
      %v5120 = vadd.f32 %v5052, %v5088
      %v5121 = vadd.f32 %v5053, %v5089
      %v5122 = vadd.f32 %v5054, %v5090
      %v5123 = vadd.f32 %v5055, %v5091
      %v5124 = vadd.f32 %v5056, %v5092
      %v5125 = vadd.f32 %v5057, %v5093
      %v5126 = vadd.f32 %v5058, %v5094
      %v5127 = vadd.f32 %v5059, %v5095
      %v5128 = vadd.f32 %v5060, %v5096
      %v5129 = vadd.f32 %v5061, %v5097
      %v5130 = vadd.f32 %v5062, %v5098
      %v5131 = vadd.f32 %v5063, %v5099
      %v5132 = vadd.f32 %v5064, %v5100
      %v5133 = vadd.f32 %v5065, %v5101
      %v5134 = vadd.f32 %v5066, %v5102
      %v5135 = vadd.f32 %v5067, %v5103
      %v5136 = vadd.f32 %v5068, %v5104
      %v5137 = vadd.f32 %v5069, %v5105
      %v5138 = vadd.f32 %v5070, %v5106
      %v5139 = vadd.f32 %v5071, %v5107
      %v5140 = vadd.f32 %v5072, %v5108
      %v5141 = vadd.f32 %v5073, %v5109
      %v5142 = vadd.f32 %v5074, %v5110
      %v5143 = vadd.f32 %v5075, %v5111
      %v5144 = vadd.f32 %v5076, %v5112
      %v5145 = vadd.f32 %v5077, %v5113
      %v5146 = vlaneseq
      %v5147 = vshrl.u32 %v5146, 7
      %v5148 = vsub.s32 4, %v5147
      %v5149 = vrot.slane %v4513, %v5148
      %v5150 = vmul.f32 %v2753, %v5149
      %v5151 = vmul.f32 %v2754, %v5149
      %v5152 = vmul.f32 %v2755, %v5149
      %v5153 = vmul.f32 %v2756, %v5149
      %v5154 = vmul.f32 %v2757, %v5149
      %v5155 = vmul.f32 %v2758, %v5149
      %v5156 = vmul.f32 %v2759, %v5149
      %v5157 = vmul.f32 %v2760, %v5149
      %v5158 = vmul.f32 %v2761, %v5149
      %v5159 = vmul.f32 %v2762, %v5149
      %v5160 = vmul.f32 %v2763, %v5149
      %v5161 = vmul.f32 %v2764, %v5149
      %v5162 = vmul.f32 %v2765, %v5149
      %v5163 = vmul.f32 %v2766, %v5149
      %v5164 = vmul.f32 %v2767, %v5149
      %v5165 = vmul.f32 %v2768, %v5149
      %v5166 = vmul.f32 %v2769, %v5149
      %v5167 = vmul.f32 %v2770, %v5149
      %v5168 = vmul.f32 %v2771, %v5149
      %v5169 = vmul.f32 %v2772, %v5149
      %v5170 = vmul.f32 %v2773, %v5149
      %v5171 = vmul.f32 %v2774, %v5149
      %v5172 = vmul.f32 %v2775, %v5149
      %v5173 = vmul.f32 %v2776, %v5149
      %v5174 = vmul.f32 %v2777, %v5149
      %v5175 = vmul.f32 %v2778, %v5149
      %v5176 = vmul.f32 %v2779, %v5149
      %v5177 = vmul.f32 %v2780, %v5149
      %v5178 = vmul.f32 %v2781, %v5149
      %v5179 = vmul.f32 %v2782, %v5149
      %v5180 = vmul.f32 %v2783, %v5149
      %v5181 = vmul.f32 %v2784, %v5149
      %v5182 = vmul.f32 %v2785, %v5149
      %v5183 = vmul.f32 %v2786, %v5149
      %v5184 = vmul.f32 %v2787, %v5149
      %v5185 = vmul.f32 %v2788, %v5149
      %v5186 = vmul.f32 %v2789, %v5149
      %v5187 = vmul.f32 %v2790, %v5149
      %v5188 = vmul.f32 %v2791, %v5149
      %v5189 = vmul.f32 %v2792, %v5149
      %v5190 = vmul.f32 %v2793, %v5149
      %v5191 = vmul.f32 %v2794, %v5149
      %v5192 = vmul.f32 %v2795, %v5149
      %v5193 = vmul.f32 %v2796, %v5149
      %v5194 = vmul.f32 %v2797, %v5149
      %v5195 = vmul.f32 %v2798, %v5149
      %v5196 = vmul.f32 %v2799, %v5149
      %v5197 = vmul.f32 %v2800, %v5149
      %v5246 = vrot.slane %v5150, 1
      %v5247 = vrot.slane %v5151, 1
      %v5248 = vsel %vm766, %v5246, %v5247
      %v5249 = vrot.slane %v5152, 1
      %v5250 = vsel %vm766, %v5247, %v5249
      %v5251 = vrot.slane %v5153, 1
      %v5252 = vrot.slane %v5154, 1
      %v5253 = vsel %vm766, %v5251, %v5252
      %v5254 = vrot.slane %v5155, 1
      %v5255 = vsel %vm766, %v5252, %v5254
      %v5256 = vrot.slane %v5156, 1
      %v5257 = vrot.slane %v5157, 1
      %v5258 = vsel %vm766, %v5256, %v5257
      %v5259 = vrot.slane %v5158, 1
      %v5260 = vsel %vm766, %v5257, %v5259
      %v5261 = vrot.slane %v5159, 1
      %v5262 = vrot.slane %v5160, 1
      %v5263 = vsel %vm766, %v5261, %v5262
      %v5264 = vrot.slane %v5161, 1
      %v5265 = vsel %vm766, %v5262, %v5264
      %v5266 = vrot.slane %v5162, 1
      %v5267 = vrot.slane %v5163, 1
      %v5268 = vsel %vm766, %v5266, %v5267
      %v5269 = vrot.slane %v5164, 1
      %v5270 = vsel %vm766, %v5267, %v5269
      %v5271 = vrot.slane %v5165, 1
      %v5272 = vrot.slane %v5166, 1
      %v5273 = vsel %vm766, %v5271, %v5272
      %v5274 = vrot.slane %v5167, 1
      %v5275 = vsel %vm766, %v5272, %v5274
      %v5276 = vrot.slane %v5168, 1
      %v5277 = vrot.slane %v5169, 1
      %v5278 = vsel %vm766, %v5276, %v5277
      %v5279 = vrot.slane %v5170, 1
      %v5280 = vsel %vm766, %v5277, %v5279
      %v5281 = vrot.slane %v5171, 1
      %v5282 = vrot.slane %v5172, 1
      %v5283 = vsel %vm766, %v5281, %v5282
      %v5284 = vrot.slane %v5173, 1
      %v5285 = vsel %vm766, %v5282, %v5284
      %v5286 = vrot.slane %v5174, 1
      %v5287 = vrot.slane %v5175, 1
      %v5288 = vsel %vm766, %v5286, %v5287
      %v5289 = vrot.slane %v5176, 1
      %v5290 = vsel %vm766, %v5287, %v5289
      %v5291 = vrot.slane %v5177, 1
      %v5292 = vrot.slane %v5178, 1
      %v5293 = vsel %vm766, %v5291, %v5292
      %v5294 = vrot.slane %v5179, 1
      %v5295 = vsel %vm766, %v5292, %v5294
      %v5296 = vrot.slane %v5180, 1
      %v5297 = vrot.slane %v5181, 1
      %v5298 = vsel %vm766, %v5296, %v5297
      %v5299 = vrot.slane %v5182, 1
      %v5300 = vsel %vm766, %v5297, %v5299
      %v5301 = vrot.slane %v5183, 1
      %v5302 = vrot.slane %v5184, 1
      %v5303 = vsel %vm766, %v5301, %v5302
      %v5304 = vrot.slane %v5185, 1
      %v5305 = vsel %vm766, %v5302, %v5304
      %v5306 = vrot.slane %v5186, 1
      %v5307 = vrot.slane %v5187, 1
      %v5308 = vsel %vm766, %v5306, %v5307
      %v5309 = vrot.slane %v5188, 1
      %v5310 = vsel %vm766, %v5307, %v5309
      %v5311 = vrot.slane %v5189, 1
      %v5312 = vrot.slane %v5190, 1
      %v5313 = vsel %vm766, %v5311, %v5312
      %v5314 = vrot.slane %v5191, 1
      %v5315 = vsel %vm766, %v5312, %v5314
      %v5316 = vrot.slane %v5192, 1
      %v5317 = vrot.slane %v5193, 1
      %v5318 = vsel %vm766, %v5316, %v5317
      %v5319 = vrot.slane %v5194, 1
      %v5320 = vsel %vm766, %v5317, %v5319
      %v5321 = vrot.slane %v5195, 1
      %v5322 = vrot.slane %v5196, 1
      %v5323 = vsel %vm766, %v5321, %v5322
      %v5324 = vrot.slane %v5197, 1
      %v5325 = vsel %vm766, %v5322, %v5324
      %v5358 = vadd.f32 %v5114, %v5248
      %v5359 = vadd.f32 %v5115, %v5250
      %v5360 = vadd.f32 %v5116, %v5253
      %v5361 = vadd.f32 %v5117, %v5255
      %v5362 = vadd.f32 %v5118, %v5258
      %v5363 = vadd.f32 %v5119, %v5260
      %v5364 = vadd.f32 %v5120, %v5263
      %v5365 = vadd.f32 %v5121, %v5265
      %v5366 = vadd.f32 %v5122, %v5268
      %v5367 = vadd.f32 %v5123, %v5270
      %v5368 = vadd.f32 %v5124, %v5273
      %v5369 = vadd.f32 %v5125, %v5275
      %v5370 = vadd.f32 %v5126, %v5278
      %v5371 = vadd.f32 %v5127, %v5280
      %v5372 = vadd.f32 %v5128, %v5283
      %v5373 = vadd.f32 %v5129, %v5285
      %v5374 = vadd.f32 %v5130, %v5288
      %v5375 = vadd.f32 %v5131, %v5290
      %v5376 = vadd.f32 %v5132, %v5293
      %v5377 = vadd.f32 %v5133, %v5295
      %v5378 = vadd.f32 %v5134, %v5298
      %v5379 = vadd.f32 %v5135, %v5300
      %v5380 = vadd.f32 %v5136, %v5303
      %v5381 = vadd.f32 %v5137, %v5305
      %v5382 = vadd.f32 %v5138, %v5308
      %v5383 = vadd.f32 %v5139, %v5310
      %v5384 = vadd.f32 %v5140, %v5313
      %v5385 = vadd.f32 %v5141, %v5315
      %v5386 = vadd.f32 %v5142, %v5318
      %v5387 = vadd.f32 %v5143, %v5320
      %v5388 = vadd.f32 %v5144, %v5323
      %v5389 = vadd.f32 %v5145, %v5325
      %v5390 = vlaneseq
      %v5391 = vshrl.u32 %v5390, 7
      %v5392 = vsub.s32 5, %v5391
      %v5393 = vrot.slane %v4513, %v5392
      %v5394 = vmul.f32 %v2753, %v5393
      %v5395 = vmul.f32 %v2754, %v5393
      %v5396 = vmul.f32 %v2755, %v5393
      %v5397 = vmul.f32 %v2756, %v5393
      %v5398 = vmul.f32 %v2757, %v5393
      %v5399 = vmul.f32 %v2758, %v5393
      %v5400 = vmul.f32 %v2759, %v5393
      %v5401 = vmul.f32 %v2760, %v5393
      %v5402 = vmul.f32 %v2761, %v5393
      %v5403 = vmul.f32 %v2762, %v5393
      %v5404 = vmul.f32 %v2763, %v5393
      %v5405 = vmul.f32 %v2764, %v5393
      %v5406 = vmul.f32 %v2765, %v5393
      %v5407 = vmul.f32 %v2766, %v5393
      %v5408 = vmul.f32 %v2767, %v5393
      %v5409 = vmul.f32 %v2768, %v5393
      %v5410 = vmul.f32 %v2769, %v5393
      %v5411 = vmul.f32 %v2770, %v5393
      %v5412 = vmul.f32 %v2771, %v5393
      %v5413 = vmul.f32 %v2772, %v5393
      %v5414 = vmul.f32 %v2773, %v5393
      %v5415 = vmul.f32 %v2774, %v5393
      %v5416 = vmul.f32 %v2775, %v5393
      %v5417 = vmul.f32 %v2776, %v5393
      %v5418 = vmul.f32 %v2777, %v5393
      %v5419 = vmul.f32 %v2778, %v5393
      %v5420 = vmul.f32 %v2779, %v5393
      %v5421 = vmul.f32 %v2780, %v5393
      %v5422 = vmul.f32 %v2781, %v5393
      %v5423 = vmul.f32 %v2782, %v5393
      %v5424 = vmul.f32 %v2783, %v5393
      %v5425 = vmul.f32 %v2784, %v5393
      %v5426 = vmul.f32 %v2785, %v5393
      %v5427 = vmul.f32 %v2786, %v5393
      %v5428 = vmul.f32 %v2787, %v5393
      %v5429 = vmul.f32 %v2788, %v5393
      %v5430 = vmul.f32 %v2789, %v5393
      %v5431 = vmul.f32 %v2790, %v5393
      %v5432 = vmul.f32 %v2791, %v5393
      %v5433 = vmul.f32 %v2792, %v5393
      %v5434 = vmul.f32 %v2793, %v5393
      %v5435 = vmul.f32 %v2794, %v5393
      %v5436 = vmul.f32 %v2795, %v5393
      %v5437 = vmul.f32 %v2796, %v5393
      %v5438 = vmul.f32 %v2797, %v5393
      %v5439 = vmul.f32 %v2798, %v5393
      %v5440 = vmul.f32 %v2799, %v5393
      %v5441 = vmul.f32 %v2800, %v5393
      %v5490 = vrot.slane %v5394, 2
      %v5491 = vrot.slane %v5395, 2
      %v5492 = vsel %vm1011, %v5490, %v5491
      %v5493 = vrot.slane %v5396, 2
      %v5494 = vsel %vm1011, %v5491, %v5493
      %v5495 = vrot.slane %v5397, 2
      %v5496 = vrot.slane %v5398, 2
      %v5497 = vsel %vm1011, %v5495, %v5496
      %v5498 = vrot.slane %v5399, 2
      %v5499 = vsel %vm1011, %v5496, %v5498
      %v5500 = vrot.slane %v5400, 2
      %v5501 = vrot.slane %v5401, 2
      %v5502 = vsel %vm1011, %v5500, %v5501
      %v5503 = vrot.slane %v5402, 2
      %v5504 = vsel %vm1011, %v5501, %v5503
      %v5505 = vrot.slane %v5403, 2
      %v5506 = vrot.slane %v5404, 2
      %v5507 = vsel %vm1011, %v5505, %v5506
      %v5508 = vrot.slane %v5405, 2
      %v5509 = vsel %vm1011, %v5506, %v5508
      %v5510 = vrot.slane %v5406, 2
      %v5511 = vrot.slane %v5407, 2
      %v5512 = vsel %vm1011, %v5510, %v5511
      %v5513 = vrot.slane %v5408, 2
      %v5514 = vsel %vm1011, %v5511, %v5513
      %v5515 = vrot.slane %v5409, 2
      %v5516 = vrot.slane %v5410, 2
      %v5517 = vsel %vm1011, %v5515, %v5516
      %v5518 = vrot.slane %v5411, 2
      %v5519 = vsel %vm1011, %v5516, %v5518
      %v5520 = vrot.slane %v5412, 2
      %v5521 = vrot.slane %v5413, 2
      %v5522 = vsel %vm1011, %v5520, %v5521
      %v5523 = vrot.slane %v5414, 2
      %v5524 = vsel %vm1011, %v5521, %v5523
      %v5525 = vrot.slane %v5415, 2
      %v5526 = vrot.slane %v5416, 2
      %v5527 = vsel %vm1011, %v5525, %v5526
      %v5528 = vrot.slane %v5417, 2
      %v5529 = vsel %vm1011, %v5526, %v5528
      %v5530 = vrot.slane %v5418, 2
      %v5531 = vrot.slane %v5419, 2
      %v5532 = vsel %vm1011, %v5530, %v5531
      %v5533 = vrot.slane %v5420, 2
      %v5534 = vsel %vm1011, %v5531, %v5533
      %v5535 = vrot.slane %v5421, 2
      %v5536 = vrot.slane %v5422, 2
      %v5537 = vsel %vm1011, %v5535, %v5536
      %v5538 = vrot.slane %v5423, 2
      %v5539 = vsel %vm1011, %v5536, %v5538
      %v5540 = vrot.slane %v5424, 2
      %v5541 = vrot.slane %v5425, 2
      %v5542 = vsel %vm1011, %v5540, %v5541
      %v5543 = vrot.slane %v5426, 2
      %v5544 = vsel %vm1011, %v5541, %v5543
      %v5545 = vrot.slane %v5427, 2
      %v5546 = vrot.slane %v5428, 2
      %v5547 = vsel %vm1011, %v5545, %v5546
      %v5548 = vrot.slane %v5429, 2
      %v5549 = vsel %vm1011, %v5546, %v5548
      %v5550 = vrot.slane %v5430, 2
      %v5551 = vrot.slane %v5431, 2
      %v5552 = vsel %vm1011, %v5550, %v5551
      %v5553 = vrot.slane %v5432, 2
      %v5554 = vsel %vm1011, %v5551, %v5553
      %v5555 = vrot.slane %v5433, 2
      %v5556 = vrot.slane %v5434, 2
      %v5557 = vsel %vm1011, %v5555, %v5556
      %v5558 = vrot.slane %v5435, 2
      %v5559 = vsel %vm1011, %v5556, %v5558
      %v5560 = vrot.slane %v5436, 2
      %v5561 = vrot.slane %v5437, 2
      %v5562 = vsel %vm1011, %v5560, %v5561
      %v5563 = vrot.slane %v5438, 2
      %v5564 = vsel %vm1011, %v5561, %v5563
      %v5565 = vrot.slane %v5439, 2
      %v5566 = vrot.slane %v5440, 2
      %v5567 = vsel %vm1011, %v5565, %v5566
      %v5568 = vrot.slane %v5441, 2
      %v5569 = vsel %vm1011, %v5566, %v5568
      %v5602 = vadd.f32 %v5358, %v5492
      %v5603 = vadd.f32 %v5359, %v5494
      %v5604 = vadd.f32 %v5360, %v5497
      %v5605 = vadd.f32 %v5361, %v5499
      %v5606 = vadd.f32 %v5362, %v5502
      %v5607 = vadd.f32 %v5363, %v5504
      %v5608 = vadd.f32 %v5364, %v5507
      %v5609 = vadd.f32 %v5365, %v5509
      %v5610 = vadd.f32 %v5366, %v5512
      %v5611 = vadd.f32 %v5367, %v5514
      %v5612 = vadd.f32 %v5368, %v5517
      %v5613 = vadd.f32 %v5369, %v5519
      %v5614 = vadd.f32 %v5370, %v5522
      %v5615 = vadd.f32 %v5371, %v5524
      %v5616 = vadd.f32 %v5372, %v5527
      %v5617 = vadd.f32 %v5373, %v5529
      %v5618 = vadd.f32 %v5374, %v5532
      %v5619 = vadd.f32 %v5375, %v5534
      %v5620 = vadd.f32 %v5376, %v5537
      %v5621 = vadd.f32 %v5377, %v5539
      %v5622 = vadd.f32 %v5378, %v5542
      %v5623 = vadd.f32 %v5379, %v5544
      %v5624 = vadd.f32 %v5380, %v5547
      %v5625 = vadd.f32 %v5381, %v5549
      %v5626 = vadd.f32 %v5382, %v5552
      %v5627 = vadd.f32 %v5383, %v5554
      %v5628 = vadd.f32 %v5384, %v5557
      %v5629 = vadd.f32 %v5385, %v5559
      %v5630 = vadd.f32 %v5386, %v5562
      %v5631 = vadd.f32 %v5387, %v5564
      %v5632 = vadd.f32 %v5388, %v5567
      %v5633 = vadd.f32 %v5389, %v5569
      %v5634 = vlaneseq
      %v5635 = vshrl.u32 %v5634, 7
      %v5636 = vsub.s32 6, %v5635
      %v5637 = vrot.slane %v4513, %v5636
      %v5638 = vmul.f32 %v2756, %v5637
      %v5639 = vmul.f32 %v2757, %v5637
      %v5640 = vmul.f32 %v2759, %v5637
      %v5641 = vmul.f32 %v2760, %v5637
      %v5642 = vmul.f32 %v2762, %v5637
      %v5643 = vmul.f32 %v2763, %v5637
      %v5644 = vmul.f32 %v2765, %v5637
      %v5645 = vmul.f32 %v2766, %v5637
      %v5646 = vmul.f32 %v2768, %v5637
      %v5647 = vmul.f32 %v2769, %v5637
      %v5648 = vmul.f32 %v2771, %v5637
      %v5649 = vmul.f32 %v2772, %v5637
      %v5650 = vmul.f32 %v2774, %v5637
      %v5651 = vmul.f32 %v2775, %v5637
      %v5652 = vmul.f32 %v2777, %v5637
      %v5653 = vmul.f32 %v2778, %v5637
      %v5654 = vmul.f32 %v2780, %v5637
      %v5655 = vmul.f32 %v2781, %v5637
      %v5656 = vmul.f32 %v2783, %v5637
      %v5657 = vmul.f32 %v2784, %v5637
      %v5658 = vmul.f32 %v2786, %v5637
      %v5659 = vmul.f32 %v2787, %v5637
      %v5660 = vmul.f32 %v2789, %v5637
      %v5661 = vmul.f32 %v2790, %v5637
      %v5662 = vmul.f32 %v2792, %v5637
      %v5663 = vmul.f32 %v2793, %v5637
      %v5664 = vmul.f32 %v2795, %v5637
      %v5665 = vmul.f32 %v2796, %v5637
      %v5666 = vmul.f32 %v2798, %v5637
      %v5667 = vmul.f32 %v2799, %v5637
      %v5668 = vmul.f32 %v2801, %v5637
      %v5669 = vmul.f32 %v2802, %v5637
      %v5670 = vadd.f32 %v5602, %v5638
      %v5671 = vadd.f32 %v5603, %v5639
      %v5672 = vadd.f32 %v5604, %v5640
      %v5673 = vadd.f32 %v5605, %v5641
      %v5674 = vadd.f32 %v5606, %v5642
      %v5675 = vadd.f32 %v5607, %v5643
      %v5676 = vadd.f32 %v5608, %v5644
      %v5677 = vadd.f32 %v5609, %v5645
      %v5678 = vadd.f32 %v5610, %v5646
      %v5679 = vadd.f32 %v5611, %v5647
      %v5680 = vadd.f32 %v5612, %v5648
      %v5681 = vadd.f32 %v5613, %v5649
      %v5682 = vadd.f32 %v5614, %v5650
      %v5683 = vadd.f32 %v5615, %v5651
      %v5684 = vadd.f32 %v5616, %v5652
      %v5685 = vadd.f32 %v5617, %v5653
      %v5686 = vadd.f32 %v5618, %v5654
      %v5687 = vadd.f32 %v5619, %v5655
      %v5688 = vadd.f32 %v5620, %v5656
      %v5689 = vadd.f32 %v5621, %v5657
      %v5690 = vadd.f32 %v5622, %v5658
      %v5691 = vadd.f32 %v5623, %v5659
      %v5692 = vadd.f32 %v5624, %v5660
      %v5693 = vadd.f32 %v5625, %v5661
      %v5694 = vadd.f32 %v5626, %v5662
      %v5695 = vadd.f32 %v5627, %v5663
      %v5696 = vadd.f32 %v5628, %v5664
      %v5697 = vadd.f32 %v5629, %v5665
      %v5698 = vadd.f32 %v5630, %v5666
      %v5699 = vadd.f32 %v5631, %v5667
      %v5700 = vadd.f32 %v5632, %v5668
      %v5701 = vadd.f32 %v5633, %v5669
      %v5702 = vlaneseq
      %v5703 = vshrl.u32 %v5702, 7
      %v5704 = vsub.s32 7, %v5703
      %v5705 = vrot.slane %v4513, %v5704
      %v5706 = vmul.f32 %v2756, %v5705
      %v5707 = vmul.f32 %v2757, %v5705
      %v5708 = vmul.f32 %v2758, %v5705
      %v5709 = vmul.f32 %v2759, %v5705
      %v5710 = vmul.f32 %v2760, %v5705
      %v5711 = vmul.f32 %v2761, %v5705
      %v5712 = vmul.f32 %v2762, %v5705
      %v5713 = vmul.f32 %v2763, %v5705
      %v5714 = vmul.f32 %v2764, %v5705
      %v5715 = vmul.f32 %v2765, %v5705
      %v5716 = vmul.f32 %v2766, %v5705
      %v5717 = vmul.f32 %v2767, %v5705
      %v5718 = vmul.f32 %v2768, %v5705
      %v5719 = vmul.f32 %v2769, %v5705
      %v5720 = vmul.f32 %v2770, %v5705
      %v5721 = vmul.f32 %v2771, %v5705
      %v5722 = vmul.f32 %v2772, %v5705
      %v5723 = vmul.f32 %v2773, %v5705
      %v5724 = vmul.f32 %v2774, %v5705
      %v5725 = vmul.f32 %v2775, %v5705
      %v5726 = vmul.f32 %v2776, %v5705
      %v5727 = vmul.f32 %v2777, %v5705
      %v5728 = vmul.f32 %v2778, %v5705
      %v5729 = vmul.f32 %v2779, %v5705
      %v5730 = vmul.f32 %v2780, %v5705
      %v5731 = vmul.f32 %v2781, %v5705
      %v5732 = vmul.f32 %v2782, %v5705
      %v5733 = vmul.f32 %v2783, %v5705
      %v5734 = vmul.f32 %v2784, %v5705
      %v5735 = vmul.f32 %v2785, %v5705
      %v5736 = vmul.f32 %v2786, %v5705
      %v5737 = vmul.f32 %v2787, %v5705
      %v5738 = vmul.f32 %v2788, %v5705
      %v5739 = vmul.f32 %v2789, %v5705
      %v5740 = vmul.f32 %v2790, %v5705
      %v5741 = vmul.f32 %v2791, %v5705
      %v5742 = vmul.f32 %v2792, %v5705
      %v5743 = vmul.f32 %v2793, %v5705
      %v5744 = vmul.f32 %v2794, %v5705
      %v5745 = vmul.f32 %v2795, %v5705
      %v5746 = vmul.f32 %v2796, %v5705
      %v5747 = vmul.f32 %v2797, %v5705
      %v5748 = vmul.f32 %v2798, %v5705
      %v5749 = vmul.f32 %v2799, %v5705
      %v5750 = vmul.f32 %v2800, %v5705
      %v5751 = vmul.f32 %v2801, %v5705
      %v5752 = vmul.f32 %v2802, %v5705
      %v5753 = vmul.f32 %v2803, %v5705
      %v5802 = vrot.slane %v5706, 1
      %v5803 = vrot.slane %v5707, 1
      %v5804 = vsel %vm766, %v5802, %v5803
      %v5805 = vrot.slane %v5708, 1
      %v5806 = vsel %vm766, %v5803, %v5805
      %v5807 = vrot.slane %v5709, 1
      %v5808 = vrot.slane %v5710, 1
      %v5809 = vsel %vm766, %v5807, %v5808
      %v5810 = vrot.slane %v5711, 1
      %v5811 = vsel %vm766, %v5808, %v5810
      %v5812 = vrot.slane %v5712, 1
      %v5813 = vrot.slane %v5713, 1
      %v5814 = vsel %vm766, %v5812, %v5813
      %v5815 = vrot.slane %v5714, 1
      %v5816 = vsel %vm766, %v5813, %v5815
      %v5817 = vrot.slane %v5715, 1
      %v5818 = vrot.slane %v5716, 1
      %v5819 = vsel %vm766, %v5817, %v5818
      %v5820 = vrot.slane %v5717, 1
      %v5821 = vsel %vm766, %v5818, %v5820
      %v5822 = vrot.slane %v5718, 1
      %v5823 = vrot.slane %v5719, 1
      %v5824 = vsel %vm766, %v5822, %v5823
      %v5825 = vrot.slane %v5720, 1
      %v5826 = vsel %vm766, %v5823, %v5825
      %v5827 = vrot.slane %v5721, 1
      %v5828 = vrot.slane %v5722, 1
      %v5829 = vsel %vm766, %v5827, %v5828
      %v5830 = vrot.slane %v5723, 1
      %v5831 = vsel %vm766, %v5828, %v5830
      %v5832 = vrot.slane %v5724, 1
      %v5833 = vrot.slane %v5725, 1
      %v5834 = vsel %vm766, %v5832, %v5833
      %v5835 = vrot.slane %v5726, 1
      %v5836 = vsel %vm766, %v5833, %v5835
      %v5837 = vrot.slane %v5727, 1
      %v5838 = vrot.slane %v5728, 1
      %v5839 = vsel %vm766, %v5837, %v5838
      %v5840 = vrot.slane %v5729, 1
      %v5841 = vsel %vm766, %v5838, %v5840
      %v5842 = vrot.slane %v5730, 1
      %v5843 = vrot.slane %v5731, 1
      %v5844 = vsel %vm766, %v5842, %v5843
      %v5845 = vrot.slane %v5732, 1
      %v5846 = vsel %vm766, %v5843, %v5845
      %v5847 = vrot.slane %v5733, 1
      %v5848 = vrot.slane %v5734, 1
      %v5849 = vsel %vm766, %v5847, %v5848
      %v5850 = vrot.slane %v5735, 1
      %v5851 = vsel %vm766, %v5848, %v5850
      %v5852 = vrot.slane %v5736, 1
      %v5853 = vrot.slane %v5737, 1
      %v5854 = vsel %vm766, %v5852, %v5853
      %v5855 = vrot.slane %v5738, 1
      %v5856 = vsel %vm766, %v5853, %v5855
      %v5857 = vrot.slane %v5739, 1
      %v5858 = vrot.slane %v5740, 1
      %v5859 = vsel %vm766, %v5857, %v5858
      %v5860 = vrot.slane %v5741, 1
      %v5861 = vsel %vm766, %v5858, %v5860
      %v5862 = vrot.slane %v5742, 1
      %v5863 = vrot.slane %v5743, 1
      %v5864 = vsel %vm766, %v5862, %v5863
      %v5865 = vrot.slane %v5744, 1
      %v5866 = vsel %vm766, %v5863, %v5865
      %v5867 = vrot.slane %v5745, 1
      %v5868 = vrot.slane %v5746, 1
      %v5869 = vsel %vm766, %v5867, %v5868
      %v5870 = vrot.slane %v5747, 1
      %v5871 = vsel %vm766, %v5868, %v5870
      %v5872 = vrot.slane %v5748, 1
      %v5873 = vrot.slane %v5749, 1
      %v5874 = vsel %vm766, %v5872, %v5873
      %v5875 = vrot.slane %v5750, 1
      %v5876 = vsel %vm766, %v5873, %v5875
      %v5877 = vrot.slane %v5751, 1
      %v5878 = vrot.slane %v5752, 1
      %v5879 = vsel %vm766, %v5877, %v5878
      %v5880 = vrot.slane %v5753, 1
      %v5881 = vsel %vm766, %v5878, %v5880
      %v5914 = vadd.f32 %v5670, %v5804
      %v5915 = vadd.f32 %v5671, %v5806
      %v5916 = vadd.f32 %v5672, %v5809
      %v5917 = vadd.f32 %v5673, %v5811
      %v5918 = vadd.f32 %v5674, %v5814
      %v5919 = vadd.f32 %v5675, %v5816
      %v5920 = vadd.f32 %v5676, %v5819
      %v5921 = vadd.f32 %v5677, %v5821
      %v5922 = vadd.f32 %v5678, %v5824
      %v5923 = vadd.f32 %v5679, %v5826
      %v5924 = vadd.f32 %v5680, %v5829
      %v5925 = vadd.f32 %v5681, %v5831
      %v5926 = vadd.f32 %v5682, %v5834
      %v5927 = vadd.f32 %v5683, %v5836
      %v5928 = vadd.f32 %v5684, %v5839
      %v5929 = vadd.f32 %v5685, %v5841
      %v5930 = vadd.f32 %v5686, %v5844
      %v5931 = vadd.f32 %v5687, %v5846
      %v5932 = vadd.f32 %v5688, %v5849
      %v5933 = vadd.f32 %v5689, %v5851
      %v5934 = vadd.f32 %v5690, %v5854
      %v5935 = vadd.f32 %v5691, %v5856
      %v5936 = vadd.f32 %v5692, %v5859
      %v5937 = vadd.f32 %v5693, %v5861
      %v5938 = vadd.f32 %v5694, %v5864
      %v5939 = vadd.f32 %v5695, %v5866
      %v5940 = vadd.f32 %v5696, %v5869
      %v5941 = vadd.f32 %v5697, %v5871
      %v5942 = vadd.f32 %v5698, %v5874
      %v5943 = vadd.f32 %v5699, %v5876
      %v5944 = vadd.f32 %v5700, %v5879
      %v5945 = vadd.f32 %v5701, %v5881
      %v5946 = vlaneseq
      %v5947 = vshrl.u32 %v5946, 7
      %v5948 = vsub.s32 0, %v5947
      %v5949 = vrot.slane %v4514, %v5948
      %v5950 = vmul.f32 %v2756, %v5949
      %v5951 = vmul.f32 %v2757, %v5949
      %v5952 = vmul.f32 %v2758, %v5949
      %v5953 = vmul.f32 %v2759, %v5949
      %v5954 = vmul.f32 %v2760, %v5949
      %v5955 = vmul.f32 %v2761, %v5949
      %v5956 = vmul.f32 %v2762, %v5949
      %v5957 = vmul.f32 %v2763, %v5949
      %v5958 = vmul.f32 %v2764, %v5949
      %v5959 = vmul.f32 %v2765, %v5949
      %v5960 = vmul.f32 %v2766, %v5949
      %v5961 = vmul.f32 %v2767, %v5949
      %v5962 = vmul.f32 %v2768, %v5949
      %v5963 = vmul.f32 %v2769, %v5949
      %v5964 = vmul.f32 %v2770, %v5949
      %v5965 = vmul.f32 %v2771, %v5949
      %v5966 = vmul.f32 %v2772, %v5949
      %v5967 = vmul.f32 %v2773, %v5949
      %v5968 = vmul.f32 %v2774, %v5949
      %v5969 = vmul.f32 %v2775, %v5949
      %v5970 = vmul.f32 %v2776, %v5949
      %v5971 = vmul.f32 %v2777, %v5949
      %v5972 = vmul.f32 %v2778, %v5949
      %v5973 = vmul.f32 %v2779, %v5949
      %v5974 = vmul.f32 %v2780, %v5949
      %v5975 = vmul.f32 %v2781, %v5949
      %v5976 = vmul.f32 %v2782, %v5949
      %v5977 = vmul.f32 %v2783, %v5949
      %v5978 = vmul.f32 %v2784, %v5949
      %v5979 = vmul.f32 %v2785, %v5949
      %v5980 = vmul.f32 %v2786, %v5949
      %v5981 = vmul.f32 %v2787, %v5949
      %v5982 = vmul.f32 %v2788, %v5949
      %v5983 = vmul.f32 %v2789, %v5949
      %v5984 = vmul.f32 %v2790, %v5949
      %v5985 = vmul.f32 %v2791, %v5949
      %v5986 = vmul.f32 %v2792, %v5949
      %v5987 = vmul.f32 %v2793, %v5949
      %v5988 = vmul.f32 %v2794, %v5949
      %v5989 = vmul.f32 %v2795, %v5949
      %v5990 = vmul.f32 %v2796, %v5949
      %v5991 = vmul.f32 %v2797, %v5949
      %v5992 = vmul.f32 %v2798, %v5949
      %v5993 = vmul.f32 %v2799, %v5949
      %v5994 = vmul.f32 %v2800, %v5949
      %v5995 = vmul.f32 %v2801, %v5949
      %v5996 = vmul.f32 %v2802, %v5949
      %v5997 = vmul.f32 %v2803, %v5949
      %v6046 = vrot.slane %v5950, 2
      %v6047 = vrot.slane %v5951, 2
      %v6048 = vsel %vm1011, %v6046, %v6047
      %v6049 = vrot.slane %v5952, 2
      %v6050 = vsel %vm1011, %v6047, %v6049
      %v6051 = vrot.slane %v5953, 2
      %v6052 = vrot.slane %v5954, 2
      %v6053 = vsel %vm1011, %v6051, %v6052
      %v6054 = vrot.slane %v5955, 2
      %v6055 = vsel %vm1011, %v6052, %v6054
      %v6056 = vrot.slane %v5956, 2
      %v6057 = vrot.slane %v5957, 2
      %v6058 = vsel %vm1011, %v6056, %v6057
      %v6059 = vrot.slane %v5958, 2
      %v6060 = vsel %vm1011, %v6057, %v6059
      %v6061 = vrot.slane %v5959, 2
      %v6062 = vrot.slane %v5960, 2
      %v6063 = vsel %vm1011, %v6061, %v6062
      %v6064 = vrot.slane %v5961, 2
      %v6065 = vsel %vm1011, %v6062, %v6064
      %v6066 = vrot.slane %v5962, 2
      %v6067 = vrot.slane %v5963, 2
      %v6068 = vsel %vm1011, %v6066, %v6067
      %v6069 = vrot.slane %v5964, 2
      %v6070 = vsel %vm1011, %v6067, %v6069
      %v6071 = vrot.slane %v5965, 2
      %v6072 = vrot.slane %v5966, 2
      %v6073 = vsel %vm1011, %v6071, %v6072
      %v6074 = vrot.slane %v5967, 2
      %v6075 = vsel %vm1011, %v6072, %v6074
      %v6076 = vrot.slane %v5968, 2
      %v6077 = vrot.slane %v5969, 2
      %v6078 = vsel %vm1011, %v6076, %v6077
      %v6079 = vrot.slane %v5970, 2
      %v6080 = vsel %vm1011, %v6077, %v6079
      %v6081 = vrot.slane %v5971, 2
      %v6082 = vrot.slane %v5972, 2
      %v6083 = vsel %vm1011, %v6081, %v6082
      %v6084 = vrot.slane %v5973, 2
      %v6085 = vsel %vm1011, %v6082, %v6084
      %v6086 = vrot.slane %v5974, 2
      %v6087 = vrot.slane %v5975, 2
      %v6088 = vsel %vm1011, %v6086, %v6087
      %v6089 = vrot.slane %v5976, 2
      %v6090 = vsel %vm1011, %v6087, %v6089
      %v6091 = vrot.slane %v5977, 2
      %v6092 = vrot.slane %v5978, 2
      %v6093 = vsel %vm1011, %v6091, %v6092
      %v6094 = vrot.slane %v5979, 2
      %v6095 = vsel %vm1011, %v6092, %v6094
      %v6096 = vrot.slane %v5980, 2
      %v6097 = vrot.slane %v5981, 2
      %v6098 = vsel %vm1011, %v6096, %v6097
      %v6099 = vrot.slane %v5982, 2
      %v6100 = vsel %vm1011, %v6097, %v6099
      %v6101 = vrot.slane %v5983, 2
      %v6102 = vrot.slane %v5984, 2
      %v6103 = vsel %vm1011, %v6101, %v6102
      %v6104 = vrot.slane %v5985, 2
      %v6105 = vsel %vm1011, %v6102, %v6104
      %v6106 = vrot.slane %v5986, 2
      %v6107 = vrot.slane %v5987, 2
      %v6108 = vsel %vm1011, %v6106, %v6107
      %v6109 = vrot.slane %v5988, 2
      %v6110 = vsel %vm1011, %v6107, %v6109
      %v6111 = vrot.slane %v5989, 2
      %v6112 = vrot.slane %v5990, 2
      %v6113 = vsel %vm1011, %v6111, %v6112
      %v6114 = vrot.slane %v5991, 2
      %v6115 = vsel %vm1011, %v6112, %v6114
      %v6116 = vrot.slane %v5992, 2
      %v6117 = vrot.slane %v5993, 2
      %v6118 = vsel %vm1011, %v6116, %v6117
      %v6119 = vrot.slane %v5994, 2
      %v6120 = vsel %vm1011, %v6117, %v6119
      %v6121 = vrot.slane %v5995, 2
      %v6122 = vrot.slane %v5996, 2
      %v6123 = vsel %vm1011, %v6121, %v6122
      %v6124 = vrot.slane %v5997, 2
      %v6125 = vsel %vm1011, %v6122, %v6124
      %v6158 = vadd.f32 %v5914, %v6048
      %v6159 = vadd.f32 %v5915, %v6050
      %v6160 = vadd.f32 %v5916, %v6053
      %v6161 = vadd.f32 %v5917, %v6055
      %v6162 = vadd.f32 %v5918, %v6058
      %v6163 = vadd.f32 %v5919, %v6060
      %v6164 = vadd.f32 %v5920, %v6063
      %v6165 = vadd.f32 %v5921, %v6065
      %v6166 = vadd.f32 %v5922, %v6068
      %v6167 = vadd.f32 %v5923, %v6070
      %v6168 = vadd.f32 %v5924, %v6073
      %v6169 = vadd.f32 %v5925, %v6075
      %v6170 = vadd.f32 %v5926, %v6078
      %v6171 = vadd.f32 %v5927, %v6080
      %v6172 = vadd.f32 %v5928, %v6083
      %v6173 = vadd.f32 %v5929, %v6085
      %v6174 = vadd.f32 %v5930, %v6088
      %v6175 = vadd.f32 %v5931, %v6090
      %v6176 = vadd.f32 %v5932, %v6093
      %v6177 = vadd.f32 %v5933, %v6095
      %v6178 = vadd.f32 %v5934, %v6098
      %v6179 = vadd.f32 %v5935, %v6100
      %v6180 = vadd.f32 %v5936, %v6103
      %v6181 = vadd.f32 %v5937, %v6105
      %v6182 = vadd.f32 %v5938, %v6108
      %v6183 = vadd.f32 %v5939, %v6110
      %v6184 = vadd.f32 %v5940, %v6113
      %v6185 = vadd.f32 %v5941, %v6115
      %v6186 = vadd.f32 %v5942, %v6118
      %v6187 = vadd.f32 %v5943, %v6120
      %v6188 = vadd.f32 %v5944, %v6123
      %v6189 = vadd.f32 %v5945, %v6125
      %v6190 = vmax.f32 %v6158, 0.0
      %v6191 = vmax.f32 %v6159, 0.0
      %v6192 = vmax.f32 %v6160, 0.0
      %v6193 = vmax.f32 %v6161, 0.0
      %v6194 = vmax.f32 %v6162, 0.0
      %v6195 = vmax.f32 %v6163, 0.0
      %v6196 = vmax.f32 %v6164, 0.0
      %v6197 = vmax.f32 %v6165, 0.0
      %v6198 = vmax.f32 %v6166, 0.0
      %v6199 = vmax.f32 %v6167, 0.0
      %v6200 = vmax.f32 %v6168, 0.0
      %v6201 = vmax.f32 %v6169, 0.0
      %v6202 = vmax.f32 %v6170, 0.0
      %v6203 = vmax.f32 %v6171, 0.0
      %v6204 = vmax.f32 %v6172, 0.0
      %v6205 = vmax.f32 %v6173, 0.0
      %v6206 = vmax.f32 %v6174, 0.0
      %v6207 = vmax.f32 %v6175, 0.0
      %v6208 = vmax.f32 %v6176, 0.0
      %v6209 = vmax.f32 %v6177, 0.0
      %v6210 = vmax.f32 %v6178, 0.0
      %v6211 = vmax.f32 %v6179, 0.0
      %v6212 = vmax.f32 %v6180, 0.0
      %v6213 = vmax.f32 %v6181, 0.0
      %v6214 = vmax.f32 %v6182, 0.0
      %v6215 = vmax.f32 %v6183, 0.0
      %v6216 = vmax.f32 %v6184, 0.0
      %v6217 = vmax.f32 %v6185, 0.0
      %v6218 = vmax.f32 %v6186, 0.0
      %v6219 = vmax.f32 %v6187, 0.0
      %v6220 = vmax.f32 %v6188, 0.0
      %v6221 = vmax.f32 %v6189, 0.0
      %v6222 = vld [vmem:[%s9] sm:$0xff]
      %v6223 = vld [vmem:[%s10] sm:$0x3f]
      %v6225 = vsel %vm2661, %v6190, 0
      %v6228 = vsel %vm2661, %v6191, 0
      %v6231 = vsel %vm2661, %v6192, 0
      %v6234 = vsel %vm2661, %v6193, 0
      %v6237 = vsel %vm2661, %v6194, 0
      %v6240 = vsel %vm2661, %v6195, 0
      %v6243 = vsel %vm2661, %v6196, 0
      %v6246 = vsel %vm2661, %v6197, 0
      %v6249 = vsel %vm2661, %v6198, 0
      %v6252 = vsel %vm2661, %v6199, 0
      %v6255 = vsel %vm2661, %v6200, 0
      %v6258 = vsel %vm2661, %v6201, 0
      %v6261 = vsel %vm2661, %v6202, 0
      %v6264 = vsel %vm2661, %v6203, 0
      %v6267 = vsel %vm2661, %v6204, 0
      %v6270 = vsel %vm2661, %v6205, 0
      %v6273 = vsel %vm2661, %v6206, 0
      %v6276 = vsel %vm2661, %v6207, 0
      %v6279 = vsel %vm2661, %v6208, 0
      %v6282 = vsel %vm2661, %v6209, 0
      %v6285 = vsel %vm2661, %v6210, 0
      %v6288 = vsel %vm2661, %v6211, 0
      %v6291 = vsel %vm2661, %v6212, 0
      %v6294 = vsel %vm2661, %v6213, 0
      %v6297 = vsel %vm2661, %v6214, 0
      %v6300 = vsel %vm2661, %v6215, 0
      %v6303 = vsel %vm2661, %v6216, 0
      %v6306 = vsel %vm2661, %v6217, 0
      %v6309 = vsel %vm2661, %v6218, 0
      %v6312 = vsel %vm2661, %v6219, 0
      %v6315 = vsel %vm2661, %v6220, 0
      %v6318 = vsel %vm2661, %v6221, 0
      %v6321 = vsel %vm1011, %v6223, 0
      %6323 = vmatprep.subr.mxu0 0.0
      %6324 = vmatpush1.msra.mxu0 %v6321
      %6325 = vmatprep.subr.mxu0 0.0
      %6326 = vmatpush1.msra.mxu0 0.0
      %6327 = vmatprep.subr.mxu0 0.0
      %6328 = vmatpush1.msra.mxu0 0.0
      %6329 = vmatprep.subr.mxu0 0.0
      %6330 = vmatpush1.msra.mxu0 0.0
      %6331 = vmatprep.subr.mxu0 0.0
      %6332 = vmatpush1.msra.mxu0 0.0
      %6333 = vmatprep.subr.mxu0 0.0
      %6334 = vmatpush1.msra.mxu0 0.0
      %6335 = vmatprep.subr.mxu0 0.0
      %6336 = vmatpush1.msra.mxu0 0.0
      %6337 = vmatprep.subr.mxu0 0.0
      %6338 = vmatpush1.msra.mxu0 0.0
      %6339 = vmatprep.subr.mxu0 0.0
      %6340 = vmatpush1.msra.mxu0 0.0
      %6341 = vmatprep.subr.mxu0 0.0
      %6342 = vmatpush1.msra.mxu0 0.0
      %6343 = vmatprep.subr.mxu0 0.0
      %6344 = vmatpush1.msra.mxu0 0.0
      %6345 = vmatprep.subr.mxu0 0.0
      %6346 = vmatpush1.msra.mxu0 0.0
      %6347 = vmatprep.subr.mxu0 0.0
      %6348 = vmatpush1.msra.mxu0 0.0
      %6349 = vmatprep.subr.mxu0 0.0
      %6350 = vmatpush1.msra.mxu0 0.0
      %6351 = vmatprep.subr.mxu0 0.0
      %6352 = vmatpush1.msra.mxu0 0.0
      %6353 = vmatprep.subr.mxu0 0.0
      %6354 = vmatpush1.msra.mxu0 0.0
      %6355 = vmatprep.subr.mxu0 0.0
      %6356 = vmatpush1.msra.mxu0 0.0
      %6357 = vmatprep.subr.mxu0 0.0
      %6358 = vmatpush1.msra.mxu0 0.0
      %6359 = vmatprep.subr.mxu0 0.0
      %6360 = vmatpush1.msra.mxu0 0.0
      %6361 = vmatprep.subr.mxu0 0.0
      %6362 = vmatpush1.msra.mxu0 0.0
      %6363 = vmatprep.subr.mxu0 0.0
      %6364 = vmatpush1.msra.mxu0 0.0
      %6365 = vmatprep.subr.mxu0 0.0
      %6366 = vmatpush1.msra.mxu0 0.0
      %6367 = vmatprep.subr.mxu0 0.0
      %6368 = vmatpush1.msra.mxu0 0.0
      %6369 = vmatprep.subr.mxu0 0.0
      %6370 = vmatpush1.msra.mxu0 0.0
      %6371 = vmatprep.subr.mxu0 0.0
      %6372 = vmatpush1.msra.mxu0 0.0
      %6373 = vmatprep.subr.mxu0 0.0
      %6374 = vmatpush1.msra.mxu0 0.0
      %6375 = vmatprep.subr.mxu0 0.0
      %6376 = vmatpush1.msra.mxu0 0.0
      %6377 = vmatprep.subr.mxu0 0.0
      %6378 = vmatpush1.msra.mxu0 0.0
      %6379 = vmatprep.subr.mxu0 0.0
      %6380 = vmatpush1.msra.mxu0 0.0
      %6381 = vmatprep.subr.mxu0 0.0
      %6382 = vmatpush1.msra.mxu0 0.0
      %6383 = vmatprep.subr.mxu0 0.0
      %6384 = vmatpush1.msra.mxu0 0.0
      %6385 = vmatprep.subr.mxu0 0.0
      %6386 = vmatpush1.msra.mxu0 0.0
      %6387 = vmatprep.mubr.f32.mxu0 0.0
      %6388 = vmatmul.mubr.f32.gmra.mrb[0].mxu0 %v6225
      %v6389 = vpop.f32.mrb[0].mxu0
      %v6390 = vadd.f32 0.0, %v6389
      %v6391 = vpop.f32.mrb[0].mxu0
      %6392 = vmatprep.mubr.f32.mxu0 0.0
      %6393 = vmatmul.mubr.f32.gmra.mrb[0].mxu0 %v6228
      %v6394 = vpop.f32.mrb[0].mxu0
      %v6395 = vadd.f32 0.0, %v6394
      %v6396 = vpop.f32.mrb[0].mxu0
      %6397 = vmatprep.mubr.f32.mxu0 0.0
      %6398 = vmatmul.mubr.f32.gmra.mrb[0].mxu0 %v6231
      %v6399 = vpop.f32.mrb[0].mxu0
      %v6400 = vadd.f32 0.0, %v6399
      %v6401 = vpop.f32.mrb[0].mxu0
      %6402 = vmatprep.mubr.f32.mxu0 0.0
      %6403 = vmatmul.mubr.f32.gmra.mrb[0].mxu0 %v6234
      %v6404 = vpop.f32.mrb[0].mxu0
      %v6405 = vadd.f32 0.0, %v6404
      %v6406 = vpop.f32.mrb[0].mxu0
      %6407 = vmatprep.mubr.f32.mxu0 0.0
      %6408 = vmatmul.mubr.f32.gmra.mrb[0].mxu0 %v6237
      %v6409 = vpop.f32.mrb[0].mxu0
      %v6410 = vadd.f32 0.0, %v6409
      %v6411 = vpop.f32.mrb[0].mxu0
      %6412 = vmatprep.mubr.f32.mxu0 0.0
      %6413 = vmatmul.mubr.f32.gmra.mrb[0].mxu0 %v6240
      %v6414 = vpop.f32.mrb[0].mxu0
      %v6415 = vadd.f32 0.0, %v6414
      %v6416 = vpop.f32.mrb[0].mxu0
      %6417 = vmatprep.mubr.f32.mxu0 0.0
      %6418 = vmatmul.mubr.f32.gmra.mrb[0].mxu0 %v6243
      %v6419 = vpop.f32.mrb[0].mxu0
      %v6420 = vadd.f32 0.0, %v6419
      %v6421 = vpop.f32.mrb[0].mxu0
      %6422 = vmatprep.mubr.f32.mxu0 0.0
      %6423 = vmatmul.mubr.f32.gmra.mrb[0].mxu0 %v6246
      %v6424 = vpop.f32.mrb[0].mxu0
      %v6425 = vadd.f32 0.0, %v6424
      %v6426 = vpop.f32.mrb[0].mxu0
      %6427 = vmatprep.mubr.f32.mxu0 0.0
      %6428 = vmatmul.mubr.f32.gmra.mrb[0].mxu0 %v6249
      %v6429 = vpop.f32.mrb[0].mxu0
      %v6430 = vadd.f32 0.0, %v6429
      %v6431 = vpop.f32.mrb[0].mxu0
      %6432 = vmatprep.mubr.f32.mxu0 0.0
      %6433 = vmatmul.mubr.f32.gmra.mrb[0].mxu0 %v6252
      %v6434 = vpop.f32.mrb[0].mxu0
      %v6435 = vadd.f32 0.0, %v6434
      %v6436 = vpop.f32.mrb[0].mxu0
      %6437 = vmatprep.mubr.f32.mxu0 0.0
      %6438 = vmatmul.mubr.f32.gmra.mrb[0].mxu0 %v6255
      %v6439 = vpop.f32.mrb[0].mxu0
      %v6440 = vadd.f32 0.0, %v6439
      %v6441 = vpop.f32.mrb[0].mxu0
      %6442 = vmatprep.mubr.f32.mxu0 0.0
      %6443 = vmatmul.mubr.f32.gmra.mrb[0].mxu0 %v6258
      %v6444 = vpop.f32.mrb[0].mxu0
      %v6445 = vadd.f32 0.0, %v6444
      %v6446 = vpop.f32.mrb[0].mxu0
      %6447 = vmatprep.mubr.f32.mxu0 0.0
      %6448 = vmatmul.mubr.f32.gmra.mrb[0].mxu0 %v6261
      %v6449 = vpop.f32.mrb[0].mxu0
      %v6450 = vadd.f32 0.0, %v6449
      %v6451 = vpop.f32.mrb[0].mxu0
      %6452 = vmatprep.mubr.f32.mxu0 0.0
      %6453 = vmatmul.mubr.f32.gmra.mrb[0].mxu0 %v6264
      %v6454 = vpop.f32.mrb[0].mxu0
      %v6455 = vadd.f32 0.0, %v6454
      %v6456 = vpop.f32.mrb[0].mxu0
      %6457 = vmatprep.mubr.f32.mxu0 0.0
      %6458 = vmatmul.mubr.f32.gmra.mrb[0].mxu0 %v6267
      %v6459 = vpop.f32.mrb[0].mxu0
      %v6460 = vadd.f32 0.0, %v6459
      %v6461 = vpop.f32.mrb[0].mxu0
      %6462 = vmatprep.mubr.f32.mxu0 0.0
      %6463 = vmatmul.mubr.f32.gmra.mrb[0].mxu0 %v6270
      %v6464 = vpop.f32.mrb[0].mxu0
      %v6465 = vadd.f32 0.0, %v6464
      %v6466 = vpop.f32.mrb[0].mxu0
      %6467 = vmatprep.mubr.f32.mxu0 0.0
      %6468 = vmatmul.mubr.f32.gmra.mrb[0].mxu0 %v6273
      %v6469 = vpop.f32.mrb[0].mxu0
      %v6470 = vadd.f32 0.0, %v6469
      %v6471 = vpop.f32.mrb[0].mxu0
      %6472 = vmatprep.mubr.f32.mxu0 0.0
      %6473 = vmatmul.mubr.f32.gmra.mrb[0].mxu0 %v6276
      %v6474 = vpop.f32.mrb[0].mxu0
      %v6475 = vadd.f32 0.0, %v6474
      %v6476 = vpop.f32.mrb[0].mxu0
      %6477 = vmatprep.mubr.f32.mxu0 0.0
      %6478 = vmatmul.mubr.f32.gmra.mrb[0].mxu0 %v6279
      %v6479 = vpop.f32.mrb[0].mxu0
      %v6480 = vadd.f32 0.0, %v6479
      %v6481 = vpop.f32.mrb[0].mxu0
      %6482 = vmatprep.mubr.f32.mxu0 0.0
      %6483 = vmatmul.mubr.f32.gmra.mrb[0].mxu0 %v6282
      %v6484 = vpop.f32.mrb[0].mxu0
      %v6485 = vadd.f32 0.0, %v6484
      %v6486 = vpop.f32.mrb[0].mxu0
      %6487 = vmatprep.mubr.f32.mxu0 0.0
      %6488 = vmatmul.mubr.f32.gmra.mrb[0].mxu0 %v6285
      %v6489 = vpop.f32.mrb[0].mxu0
      %v6490 = vadd.f32 0.0, %v6489
      %v6491 = vpop.f32.mrb[0].mxu0
      %6492 = vmatprep.mubr.f32.mxu0 0.0
      %6493 = vmatmul.mubr.f32.gmra.mrb[0].mxu0 %v6288
      %v6494 = vpop.f32.mrb[0].mxu0
      %v6495 = vadd.f32 0.0, %v6494
      %v6496 = vpop.f32.mrb[0].mxu0
      %6497 = vmatprep.mubr.f32.mxu0 0.0
      %6498 = vmatmul.mubr.f32.gmra.mrb[0].mxu0 %v6291
      %v6499 = vpop.f32.mrb[0].mxu0
      %v6500 = vadd.f32 0.0, %v6499
      %v6501 = vpop.f32.mrb[0].mxu0
      %6502 = vmatprep.mubr.f32.mxu0 0.0
      %6503 = vmatmul.mubr.f32.gmra.mrb[0].mxu0 %v6294
      %v6504 = vpop.f32.mrb[0].mxu0
      %v6505 = vadd.f32 0.0, %v6504
      %v6506 = vpop.f32.mrb[0].mxu0
      %6507 = vmatprep.mubr.f32.mxu0 0.0
      %6508 = vmatmul.mubr.f32.gmra.mrb[0].mxu0 %v6297
      %v6509 = vpop.f32.mrb[0].mxu0
      %v6510 = vadd.f32 0.0, %v6509
      %v6511 = vpop.f32.mrb[0].mxu0
      %6512 = vmatprep.mubr.f32.mxu0 0.0
      %6513 = vmatmul.mubr.f32.gmra.mrb[0].mxu0 %v6300
      %v6514 = vpop.f32.mrb[0].mxu0
      %v6515 = vadd.f32 0.0, %v6514
      %v6516 = vpop.f32.mrb[0].mxu0
      %6517 = vmatprep.mubr.f32.mxu0 0.0
      %6518 = vmatmul.mubr.f32.gmra.mrb[0].mxu0 %v6303
      %v6519 = vpop.f32.mrb[0].mxu0
      %v6520 = vadd.f32 0.0, %v6519
      %v6521 = vpop.f32.mrb[0].mxu0
      %6522 = vmatprep.mubr.f32.mxu0 0.0
      %6523 = vmatmul.mubr.f32.gmra.mrb[0].mxu0 %v6306
      %v6524 = vpop.f32.mrb[0].mxu0
      %v6525 = vadd.f32 0.0, %v6524
      %v6526 = vpop.f32.mrb[0].mxu0
      %6527 = vmatprep.mubr.f32.mxu0 0.0
      %6528 = vmatmul.mubr.f32.gmra.mrb[0].mxu0 %v6309
      %v6529 = vpop.f32.mrb[0].mxu0
      %v6530 = vadd.f32 0.0, %v6529
      %v6531 = vpop.f32.mrb[0].mxu0
      %6532 = vmatprep.mubr.f32.mxu0 0.0
      %6533 = vmatmul.mubr.f32.gmra.mrb[0].mxu0 %v6312
      %v6534 = vpop.f32.mrb[0].mxu0
      %v6535 = vadd.f32 0.0, %v6534
      %v6536 = vpop.f32.mrb[0].mxu0
      %6537 = vmatprep.mubr.f32.mxu0 0.0
      %6538 = vmatmul.mubr.f32.gmra.mrb[0].mxu0 %v6315
      %v6539 = vpop.f32.mrb[0].mxu0
      %v6540 = vadd.f32 0.0, %v6539
      %v6541 = vpop.f32.mrb[0].mxu0
      %6542 = vmatprep.mubr.f32.mxu0 0.0
      %6543 = vmatmul.mubr.f32.gmra.mrb[0].mxu0 %v6318
      %v6544 = vpop.f32.mrb[0].mxu0
      %v6545 = vadd.f32 0.0, %v6544
      %v6546 = vpop.f32.mrb[0].mxu0
      %6547 = vdwg.mxu0
      %v6549 = vsel %vm414, %v4481, 0
      %v6552 = vsel %vm414, %v4482, 0
      %v6555 = vsel %vm414, %v4483, 0
      %v6558 = vsel %vm414, %v4484, 0
      %v6561 = vsel %vm414, %v4485, 0
      %v6564 = vsel %vm414, %v4486, 0
      %v6567 = vsel %vm414, %v4487, 0
      %v6570 = vsel %vm414, %v4488, 0
      %v6573 = vsel %vm414, %v4489, 0
      %v6576 = vsel %vm414, %v4490, 0
      %v6579 = vsel %vm414, %v4491, 0
      %v6582 = vsel %vm414, %v4492, 0
      %v6585 = vsel %vm414, %v4493, 0
      %v6588 = vsel %vm414, %v4494, 0
      %v6591 = vsel %vm414, %v4495, 0
      %v6594 = vsel %vm414, %v4496, 0
      %v6597 = vsel %vm414, %v4497, 0
      %v6600 = vsel %vm414, %v4498, 0
      %v6603 = vsel %vm414, %v4499, 0
      %v6606 = vsel %vm414, %v4500, 0
      %v6609 = vsel %vm414, %v4501, 0
      %v6612 = vsel %vm414, %v4502, 0
      %v6615 = vsel %vm414, %v4503, 0
      %v6618 = vsel %vm414, %v4504, 0
      %v6621 = vsel %vm414, %v4505, 0
      %v6624 = vsel %vm414, %v4506, 0
      %v6627 = vsel %vm414, %v4507, 0
      %v6630 = vsel %vm414, %v4508, 0
      %v6633 = vsel %vm414, %v4509, 0
      %v6636 = vsel %vm414, %v4510, 0
      %v6639 = vsel %vm414, %v4511, 0
      %v6642 = vsel %vm414, %v4512, 0
      %6644 = vmatprep.subr.mxu0 0.0
      %6645 = vmatpush1.msra.mxu0 %v6222
      %6646 = vmatprep.subr.mxu0 0.0
      %6647 = vmatpush1.msra.mxu0 0.0
      %6648 = vmatprep.subr.mxu0 0.0
      %6649 = vmatpush1.msra.mxu0 0.0
      %6650 = vmatprep.subr.mxu0 0.0
      %6651 = vmatpush1.msra.mxu0 0.0
      %6652 = vmatprep.subr.mxu0 0.0
      %6653 = vmatpush1.msra.mxu0 0.0
      %6654 = vmatprep.subr.mxu0 0.0
      %6655 = vmatpush1.msra.mxu0 0.0
      %6656 = vmatprep.subr.mxu0 0.0
      %6657 = vmatpush1.msra.mxu0 0.0
      %6658 = vmatprep.subr.mxu0 0.0
      %6659 = vmatpush1.msra.mxu0 0.0
      %6660 = vmatprep.subr.mxu0 0.0
      %6661 = vmatpush1.msra.mxu0 0.0
      %6662 = vmatprep.subr.mxu0 0.0
      %6663 = vmatpush1.msra.mxu0 0.0
      %6664 = vmatprep.subr.mxu0 0.0
      %6665 = vmatpush1.msra.mxu0 0.0
      %6666 = vmatprep.subr.mxu0 0.0
      %6667 = vmatpush1.msra.mxu0 0.0
      %6668 = vmatprep.subr.mxu0 0.0
      %6669 = vmatpush1.msra.mxu0 0.0
      %6670 = vmatprep.subr.mxu0 0.0
      %6671 = vmatpush1.msra.mxu0 0.0
      %6672 = vmatprep.subr.mxu0 0.0
      %6673 = vmatpush1.msra.mxu0 0.0
      %6674 = vmatprep.subr.mxu0 0.0
      %6675 = vmatpush1.msra.mxu0 0.0
      %6676 = vmatprep.subr.mxu0 0.0
      %6677 = vmatpush1.msra.mxu0 0.0
      %6678 = vmatprep.subr.mxu0 0.0
      %6679 = vmatpush1.msra.mxu0 0.0
      %6680 = vmatprep.subr.mxu0 0.0
      %6681 = vmatpush1.msra.mxu0 0.0
      %6682 = vmatprep.subr.mxu0 0.0
      %6683 = vmatpush1.msra.mxu0 0.0
      %6684 = vmatprep.subr.mxu0 0.0
      %6685 = vmatpush1.msra.mxu0 0.0
      %6686 = vmatprep.subr.mxu0 0.0
      %6687 = vmatpush1.msra.mxu0 0.0
      %6688 = vmatprep.subr.mxu0 0.0
      %6689 = vmatpush1.msra.mxu0 0.0
      %6690 = vmatprep.subr.mxu0 0.0
      %6691 = vmatpush1.msra.mxu0 0.0
      %6692 = vmatprep.subr.mxu0 0.0
      %6693 = vmatpush1.msra.mxu0 0.0
      %6694 = vmatprep.subr.mxu0 0.0
      %6695 = vmatpush1.msra.mxu0 0.0
      %6696 = vmatprep.subr.mxu0 0.0
      %6697 = vmatpush1.msra.mxu0 0.0
      %6698 = vmatprep.subr.mxu0 0.0
      %6699 = vmatpush1.msra.mxu0 0.0
      %6700 = vmatprep.subr.mxu0 0.0
      %6701 = vmatpush1.msra.mxu0 0.0
      %6702 = vmatprep.subr.mxu0 0.0
      %6703 = vmatpush1.msra.mxu0 0.0
      %6704 = vmatprep.subr.mxu0 0.0
      %6705 = vmatpush1.msra.mxu0 0.0
      %6706 = vmatprep.subr.mxu0 0.0
      %6707 = vmatpush1.msra.mxu0 0.0
      %6708 = vmatprep.mubr.f32.mxu0 0.0
      %6709 = vmatmul.mubr.f32.gmra.mrb[0].mxu0 %v6549
      %v6710 = vpop.f32.mrb[0].mxu0
      %v6711 = vadd.f32 %v6390, %v6710
      %v6712 = vpop.f32.mrb[0].mxu0
      %6713 = vmatprep.mubr.f32.mxu0 0.0
      %6714 = vmatmul.mubr.f32.gmra.mrb[0].mxu0 %v6552
      %v6715 = vpop.f32.mrb[0].mxu0
      %v6716 = vadd.f32 %v6395, %v6715
      %v6717 = vpop.f32.mrb[0].mxu0
      %6718 = vmatprep.mubr.f32.mxu0 0.0
      %6719 = vmatmul.mubr.f32.gmra.mrb[0].mxu0 %v6555
      %v6720 = vpop.f32.mrb[0].mxu0
      %v6721 = vadd.f32 %v6400, %v6720
      %v6722 = vpop.f32.mrb[0].mxu0
      %6723 = vmatprep.mubr.f32.mxu0 0.0
      %6724 = vmatmul.mubr.f32.gmra.mrb[0].mxu0 %v6558
      %v6725 = vpop.f32.mrb[0].mxu0
      %v6726 = vadd.f32 %v6405, %v6725
      %v6727 = vpop.f32.mrb[0].mxu0
      %6728 = vmatprep.mubr.f32.mxu0 0.0
      %6729 = vmatmul.mubr.f32.gmra.mrb[0].mxu0 %v6561
      %v6730 = vpop.f32.mrb[0].mxu0
      %v6731 = vadd.f32 %v6410, %v6730
      %v6732 = vpop.f32.mrb[0].mxu0
      %6733 = vmatprep.mubr.f32.mxu0 0.0
      %6734 = vmatmul.mubr.f32.gmra.mrb[0].mxu0 %v6564
      %v6735 = vpop.f32.mrb[0].mxu0
      %v6736 = vadd.f32 %v6415, %v6735
      %v6737 = vpop.f32.mrb[0].mxu0
      %6738 = vmatprep.mubr.f32.mxu0 0.0
      %6739 = vmatmul.mubr.f32.gmra.mrb[0].mxu0 %v6567
      %v6740 = vpop.f32.mrb[0].mxu0
      %v6741 = vadd.f32 %v6420, %v6740
      %v6742 = vpop.f32.mrb[0].mxu0
      %6743 = vmatprep.mubr.f32.mxu0 0.0
      %6744 = vmatmul.mubr.f32.gmra.mrb[0].mxu0 %v6570
      %v6745 = vpop.f32.mrb[0].mxu0
      %v6746 = vadd.f32 %v6425, %v6745
      %v6747 = vpop.f32.mrb[0].mxu0
      %6748 = vmatprep.mubr.f32.mxu0 0.0
      %6749 = vmatmul.mubr.f32.gmra.mrb[0].mxu0 %v6573
      %v6750 = vpop.f32.mrb[0].mxu0
      %v6751 = vadd.f32 %v6430, %v6750
      %v6752 = vpop.f32.mrb[0].mxu0
      %6753 = vmatprep.mubr.f32.mxu0 0.0
      %6754 = vmatmul.mubr.f32.gmra.mrb[0].mxu0 %v6576
      %v6755 = vpop.f32.mrb[0].mxu0
      %v6756 = vadd.f32 %v6435, %v6755
      %v6757 = vpop.f32.mrb[0].mxu0
      %6758 = vmatprep.mubr.f32.mxu0 0.0
      %6759 = vmatmul.mubr.f32.gmra.mrb[0].mxu0 %v6579
      %v6760 = vpop.f32.mrb[0].mxu0
      %v6761 = vadd.f32 %v6440, %v6760
      %v6762 = vpop.f32.mrb[0].mxu0
      %6763 = vmatprep.mubr.f32.mxu0 0.0
      %6764 = vmatmul.mubr.f32.gmra.mrb[0].mxu0 %v6582
      %v6765 = vpop.f32.mrb[0].mxu0
      %v6766 = vadd.f32 %v6445, %v6765
      %v6767 = vpop.f32.mrb[0].mxu0
      %6768 = vmatprep.mubr.f32.mxu0 0.0
      %6769 = vmatmul.mubr.f32.gmra.mrb[0].mxu0 %v6585
      %v6770 = vpop.f32.mrb[0].mxu0
      %v6771 = vadd.f32 %v6450, %v6770
      %v6772 = vpop.f32.mrb[0].mxu0
      %6773 = vmatprep.mubr.f32.mxu0 0.0
      %6774 = vmatmul.mubr.f32.gmra.mrb[0].mxu0 %v6588
      %v6775 = vpop.f32.mrb[0].mxu0
      %v6776 = vadd.f32 %v6455, %v6775
      %v6777 = vpop.f32.mrb[0].mxu0
      %6778 = vmatprep.mubr.f32.mxu0 0.0
      %6779 = vmatmul.mubr.f32.gmra.mrb[0].mxu0 %v6591
      %v6780 = vpop.f32.mrb[0].mxu0
      %v6781 = vadd.f32 %v6460, %v6780
      %v6782 = vpop.f32.mrb[0].mxu0
      %6783 = vmatprep.mubr.f32.mxu0 0.0
      %6784 = vmatmul.mubr.f32.gmra.mrb[0].mxu0 %v6594
      %v6785 = vpop.f32.mrb[0].mxu0
      %v6786 = vadd.f32 %v6465, %v6785
      %v6787 = vpop.f32.mrb[0].mxu0
      %6788 = vmatprep.mubr.f32.mxu0 0.0
      %6789 = vmatmul.mubr.f32.gmra.mrb[0].mxu0 %v6597
      %v6790 = vpop.f32.mrb[0].mxu0
      %v6791 = vadd.f32 %v6470, %v6790
      %v6792 = vpop.f32.mrb[0].mxu0
      %6793 = vmatprep.mubr.f32.mxu0 0.0
      %6794 = vmatmul.mubr.f32.gmra.mrb[0].mxu0 %v6600
      %v6795 = vpop.f32.mrb[0].mxu0
      %v6796 = vadd.f32 %v6475, %v6795
      %v6797 = vpop.f32.mrb[0].mxu0
      %6798 = vmatprep.mubr.f32.mxu0 0.0
      %6799 = vmatmul.mubr.f32.gmra.mrb[0].mxu0 %v6603
      %v6800 = vpop.f32.mrb[0].mxu0
      %v6801 = vadd.f32 %v6480, %v6800
      %v6802 = vpop.f32.mrb[0].mxu0
      %6803 = vmatprep.mubr.f32.mxu0 0.0
      %6804 = vmatmul.mubr.f32.gmra.mrb[0].mxu0 %v6606
      %v6805 = vpop.f32.mrb[0].mxu0
      %v6806 = vadd.f32 %v6485, %v6805
      %v6807 = vpop.f32.mrb[0].mxu0
      %6808 = vmatprep.mubr.f32.mxu0 0.0
      %6809 = vmatmul.mubr.f32.gmra.mrb[0].mxu0 %v6609
      %v6810 = vpop.f32.mrb[0].mxu0
      %v6811 = vadd.f32 %v6490, %v6810
      %v6812 = vpop.f32.mrb[0].mxu0
      %6813 = vmatprep.mubr.f32.mxu0 0.0
      %6814 = vmatmul.mubr.f32.gmra.mrb[0].mxu0 %v6612
      %v6815 = vpop.f32.mrb[0].mxu0
      %v6816 = vadd.f32 %v6495, %v6815
      %v6817 = vpop.f32.mrb[0].mxu0
      %6818 = vmatprep.mubr.f32.mxu0 0.0
      %6819 = vmatmul.mubr.f32.gmra.mrb[0].mxu0 %v6615
      %v6820 = vpop.f32.mrb[0].mxu0
      %v6821 = vadd.f32 %v6500, %v6820
      %v6822 = vpop.f32.mrb[0].mxu0
      %6823 = vmatprep.mubr.f32.mxu0 0.0
      %6824 = vmatmul.mubr.f32.gmra.mrb[0].mxu0 %v6618
      %v6825 = vpop.f32.mrb[0].mxu0
      %v6826 = vadd.f32 %v6505, %v6825
      %v6827 = vpop.f32.mrb[0].mxu0
      %6828 = vmatprep.mubr.f32.mxu0 0.0
      %6829 = vmatmul.mubr.f32.gmra.mrb[0].mxu0 %v6621
      %v6830 = vpop.f32.mrb[0].mxu0
      %v6831 = vadd.f32 %v6510, %v6830
      %v6832 = vpop.f32.mrb[0].mxu0
      %6833 = vmatprep.mubr.f32.mxu0 0.0
      %6834 = vmatmul.mubr.f32.gmra.mrb[0].mxu0 %v6624
      %v6835 = vpop.f32.mrb[0].mxu0
      %v6836 = vadd.f32 %v6515, %v6835
      %v6837 = vpop.f32.mrb[0].mxu0
      %6838 = vmatprep.mubr.f32.mxu0 0.0
      %6839 = vmatmul.mubr.f32.gmra.mrb[0].mxu0 %v6627
      %v6840 = vpop.f32.mrb[0].mxu0
      %v6841 = vadd.f32 %v6520, %v6840
      %v6842 = vpop.f32.mrb[0].mxu0
      %6843 = vmatprep.mubr.f32.mxu0 0.0
      %6844 = vmatmul.mubr.f32.gmra.mrb[0].mxu0 %v6630
      %v6845 = vpop.f32.mrb[0].mxu0
      %v6846 = vadd.f32 %v6525, %v6845
      %v6847 = vpop.f32.mrb[0].mxu0
      %6848 = vmatprep.mubr.f32.mxu0 0.0
      %6849 = vmatmul.mubr.f32.gmra.mrb[0].mxu0 %v6633
      %v6850 = vpop.f32.mrb[0].mxu0
      %v6851 = vadd.f32 %v6530, %v6850
      %v6852 = vpop.f32.mrb[0].mxu0
      %6853 = vmatprep.mubr.f32.mxu0 0.0
      %6854 = vmatmul.mubr.f32.gmra.mrb[0].mxu0 %v6636
      %v6855 = vpop.f32.mrb[0].mxu0
      %v6856 = vadd.f32 %v6535, %v6855
      %v6857 = vpop.f32.mrb[0].mxu0
      %6858 = vmatprep.mubr.f32.mxu0 0.0
      %6859 = vmatmul.mubr.f32.gmra.mrb[0].mxu0 %v6639
      %v6860 = vpop.f32.mrb[0].mxu0
      %v6861 = vadd.f32 %v6540, %v6860
      %v6862 = vpop.f32.mrb[0].mxu0
      %6863 = vmatprep.mubr.f32.mxu0 0.0
      %6864 = vmatmul.mubr.f32.gmra.mrb[0].mxu0 %v6642
      %v6865 = vpop.f32.mrb[0].mxu0
      %v6866 = vadd.f32 %v6545, %v6865
      %v6867 = vpop.f32.mrb[0].mxu0
      %6868 = vdwg.mxu0
      %v6869 = vld [vmem:[%s11] sm:$0x1]
      %v6871 = vlaneseq
      %v6872 = vshrl.u32 %v6871, 7
      %v6873 = vsub.s32 0, %v6872
      %v6874 = vrot.slane %v6869, %v6873
      %v6876 = vadd.f32 %v6711, %v6874
      %v6877 = vadd.f32 %v6716, %v6874
      %v6878 = vadd.f32 %v6721, %v6874
      %v6879 = vadd.f32 %v6726, %v6874
      %v6880 = vadd.f32 %v6731, %v6874
      %v6881 = vadd.f32 %v6736, %v6874
      %v6882 = vadd.f32 %v6741, %v6874
      %v6883 = vadd.f32 %v6746, %v6874
      %v6884 = vadd.f32 %v6751, %v6874
      %v6885 = vadd.f32 %v6756, %v6874
      %v6886 = vadd.f32 %v6761, %v6874
      %v6887 = vadd.f32 %v6766, %v6874
      %v6888 = vadd.f32 %v6771, %v6874
      %v6889 = vadd.f32 %v6776, %v6874
      %v6890 = vadd.f32 %v6781, %v6874
      %v6891 = vadd.f32 %v6786, %v6874
      %v6892 = vadd.f32 %v6791, %v6874
      %v6893 = vadd.f32 %v6796, %v6874
      %v6894 = vadd.f32 %v6801, %v6874
      %v6895 = vadd.f32 %v6806, %v6874
      %v6896 = vadd.f32 %v6811, %v6874
      %v6897 = vadd.f32 %v6816, %v6874
      %v6898 = vadd.f32 %v6821, %v6874
      %v6899 = vadd.f32 %v6826, %v6874
      %v6900 = vadd.f32 %v6831, %v6874
      %v6901 = vadd.f32 %v6836, %v6874
      %v6902 = vadd.f32 %v6841, %v6874
      %v6903 = vadd.f32 %v6846, %v6874
      %v6904 = vadd.f32 %v6851, %v6874
      %v6905 = vadd.f32 %v6856, %v6874
      %v6906 = vadd.f32 %v6861, %v6874
      %v6907 = vadd.f32 %v6866, %v6874
      %v6908 = vmax.f32 %v6876, 0.0
      %v6909 = vmax.f32 %v6877, 0.0
      %v6910 = vmax.f32 %v6878, 0.0
      %v6911 = vmax.f32 %v6879, 0.0
      %v6912 = vmax.f32 %v6880, 0.0
      %v6913 = vmax.f32 %v6881, 0.0
      %v6914 = vmax.f32 %v6882, 0.0
      %v6915 = vmax.f32 %v6883, 0.0
      %v6916 = vmax.f32 %v6884, 0.0
      %v6917 = vmax.f32 %v6885, 0.0
      %v6918 = vmax.f32 %v6886, 0.0
      %v6919 = vmax.f32 %v6887, 0.0
      %v6920 = vmax.f32 %v6888, 0.0
      %v6921 = vmax.f32 %v6889, 0.0
      %v6922 = vmax.f32 %v6890, 0.0
      %v6923 = vmax.f32 %v6891, 0.0
      %v6924 = vmax.f32 %v6892, 0.0
      %v6925 = vmax.f32 %v6893, 0.0
      %v6926 = vmax.f32 %v6894, 0.0
      %v6927 = vmax.f32 %v6895, 0.0
      %v6928 = vmax.f32 %v6896, 0.0
      %v6929 = vmax.f32 %v6897, 0.0
      %v6930 = vmax.f32 %v6898, 0.0
      %v6931 = vmax.f32 %v6899, 0.0
      %v6932 = vmax.f32 %v6900, 0.0
      %v6933 = vmax.f32 %v6901, 0.0
      %v6934 = vmax.f32 %v6902, 0.0
      %v6935 = vmax.f32 %v6903, 0.0
      %v6936 = vmax.f32 %v6904, 0.0
      %v6937 = vmax.f32 %v6905, 0.0
      %v6938 = vmax.f32 %v6906, 0.0
      %v6939 = vmax.f32 %v6907, 0.0
      %v6940 = vadd.f32 %v2629, %v6908
      %v6941 = vadd.f32 %v2630, %v6909
      %v6942 = vadd.f32 %v2631, %v6910
      %v6943 = vadd.f32 %v2632, %v6911
      %v6944 = vadd.f32 %v2633, %v6912
      %v6945 = vadd.f32 %v2634, %v6913
      %v6946 = vadd.f32 %v2635, %v6914
      %v6947 = vadd.f32 %v2636, %v6915
      %v6948 = vadd.f32 %v2637, %v6916
      %v6949 = vadd.f32 %v2638, %v6917
      %v6950 = vadd.f32 %v2639, %v6918
      %v6951 = vadd.f32 %v2640, %v6919
      %v6952 = vadd.f32 %v2641, %v6920
      %v6953 = vadd.f32 %v2642, %v6921
      %v6954 = vadd.f32 %v2643, %v6922
      %v6955 = vadd.f32 %v2644, %v6923
      %v6956 = vadd.f32 %v2645, %v6924
      %v6957 = vadd.f32 %v2646, %v6925
      %v6958 = vadd.f32 %v2647, %v6926
      %v6959 = vadd.f32 %v2648, %v6927
      %v6960 = vadd.f32 %v2649, %v6928
      %v6961 = vadd.f32 %v2650, %v6929
      %v6962 = vadd.f32 %v2651, %v6930
      %v6963 = vadd.f32 %v2652, %v6931
      %v6964 = vadd.f32 %v2653, %v6932
      %v6965 = vadd.f32 %v2654, %v6933
      %v6966 = vadd.f32 %v2655, %v6934
      %v6967 = vadd.f32 %v2656, %v6935
      %v6968 = vadd.f32 %v2657, %v6936
      %v6969 = vadd.f32 %v2658, %v6937
      %v6970 = vadd.f32 %v2659, %v6938
      %v6971 = vadd.f32 %v2660, %v6939
      %6972 = vst.msk [vmem:[%s413] sm:$0xff] %vm414, %v6940
      %6973 = vst.msk [vmem:[%s413 + $0x8] sm:$0xff] %vm414, %v6941
      %6974 = vst.msk [vmem:[%s413 + $0x10] sm:$0xff] %vm414, %v6942
      %6975 = vst.msk [vmem:[%s413 + $0x18] sm:$0xff] %vm414, %v6943
      %6976 = vst.msk [vmem:[%s413 + $0x20] sm:$0xff] %vm414, %v6944
      %6977 = vst.msk [vmem:[%s413 + $0x28] sm:$0xff] %vm414, %v6945
      %6978 = vst.msk [vmem:[%s413 + $0x30] sm:$0xff] %vm414, %v6946
      %6979 = vst.msk [vmem:[%s413 + $0x38] sm:$0xff] %vm414, %v6947
      %6980 = vst.msk [vmem:[%s413 + $0x40] sm:$0xff] %vm414, %v6948
      %6981 = vst.msk [vmem:[%s413 + $0x48] sm:$0xff] %vm414, %v6949
      %6982 = vst.msk [vmem:[%s413 + $0x50] sm:$0xff] %vm414, %v6950
      %6983 = vst.msk [vmem:[%s413 + $0x58] sm:$0xff] %vm414, %v6951
      %6984 = vst.msk [vmem:[%s413 + $0x60] sm:$0xff] %vm414, %v6952
      %6985 = vst.msk [vmem:[%s413 + $0x68] sm:$0xff] %vm414, %v6953
      %6986 = vst.msk [vmem:[%s413 + $0x70] sm:$0xff] %vm414, %v6954
      %6987 = vst.msk [vmem:[%s413 + $0x78] sm:$0xff] %vm414, %v6955
      %6988 = vst.msk [vmem:[%s413 + $0x80] sm:$0xff] %vm414, %v6956
      %6989 = vst.msk [vmem:[%s413 + $0x88] sm:$0xff] %vm414, %v6957
      %6990 = vst.msk [vmem:[%s413 + $0x90] sm:$0xff] %vm414, %v6958
      %6991 = vst.msk [vmem:[%s413 + $0x98] sm:$0xff] %vm414, %v6959
      %6992 = vst.msk [vmem:[%s413 + $0xa0] sm:$0xff] %vm414, %v6960
      %6993 = vst.msk [vmem:[%s413 + $0xa8] sm:$0xff] %vm414, %v6961
      %6994 = vst.msk [vmem:[%s413 + $0xb0] sm:$0xff] %vm414, %v6962
      %6995 = vst.msk [vmem:[%s413 + $0xb8] sm:$0xff] %vm414, %v6963
      %6996 = vst.msk [vmem:[%s413 + $0xc0] sm:$0xff] %vm414, %v6964
      %6997 = vst.msk [vmem:[%s413 + $0xc8] sm:$0xff] %vm414, %v6965
      %6998 = vst.msk [vmem:[%s413 + $0xd0] sm:$0xff] %vm414, %v6966
      %6999 = vst.msk [vmem:[%s413 + $0xd8] sm:$0xff] %vm414, %v6967
      %7000 = vst.msk [vmem:[%s413 + $0xe0] sm:$0xff] %vm414, %v6968
      %7001 = vst.msk [vmem:[%s413 + $0xe8] sm:$0xff] %vm414, %v6969
      %7002 = vst.msk [vmem:[%s413 + $0xf0] sm:$0xff] %vm414, %v6970
      %7003 = vst.msk [vmem:[%s413 + $0xf8] sm:$0xff] %vm414, %v6971
      %p7004 = scmp.lt.s32.totalorder %s23, 1
      %s7005 = scalar_select %p7004, %s23, 1
      %s7006 = smul.addr %s7005, 32
      %s7007 = smul.addr %s7006, 8
      %s7008 = scalar_lea.vmem %s12, %s7007
      // Predicated region
      $region69: #{dense_block2_no_expand.1} parent=67 // pred_check
        %p7009 = pneg %p298
      $region70: #{dense_block2_no_expand.1} parent=67 // pred_check_branch
        %7011 = sbr.rel (%p7009) target = $region72
      $region71: #{dense_block2_no_expand.1} parent=67 // pred_region
        _
      $region72: #{dense_block2_no_expand.1} parent=67 // pred_fallthru
        _
    $region68: #{dense_block2_no_expand.1} parent=5 // pred_fallthru
      _
    %p7012 = scmp.le.s32.totalorder 2, %s18
    // Predicated region
    $region73: #{dense_block2_no_expand.1} parent=5 // pred_check
      %p7013 = pneg %p7012
    $region74: #{dense_block2_no_expand.1} parent=5 // pred_check_branch
      %7015 = sbr.rel (%p7013) target = $region76
    $region75: #{dense_block2_no_expand.1} parent=5 // pred_region
      %s7016 = ssub.s32 %s18, 2
      // Predicated region
      $region77: #{dense_block2_no_expand.1} parent=75 // pred_check
        %p7017 = pneg %p304
      $region78: #{dense_block2_no_expand.1} parent=75 // pred_check_branch
        %7019 = sbr.rel (%p7017) target = $region80
      $region79: #{dense_block2_no_expand.1} parent=75 // pred_region
        %p7020 = scmp.lt.s32.totalorder %s24, 1
        %s7021 = scalar_select %p7020, %s24, 1
        %s7022 = smul.addr %s7021, 32
        %s7023 = smul.addr %s7022, 8
        %s7024 = scalar_lea.vmem %s12, %s7023
      $region80: #{dense_block2_no_expand.1} parent=75 // pred_fallthru
        _
    $region76: #{dense_block2_no_expand.1} parent=5 // pred_fallthru
      _
  $region6: #{dense_block2_no_expand.1} parent=0 // loop_footer
    %s22 = sadd.s32 1, %s18
  $region7: #{dense_block2_no_expand.1} parent=0 // loop_footer_branch
    %17 = sbr.rel target = $region3
  $region8: #{dense_block2_no_expand.1} parent=0 // loop_exit
    _

</llo_original>
